<compile_context>
chip_gen: v6e
topology: v6e:2x2x1
jax: 0.10.0
libtpu: 0.0.40
codegen_flags: <defaults>
</compile_context>

<pallas_src>
import jax
import jax.numpy as jnp
from jax import lax
from jax.experimental import pallas as pl
from jax.experimental.pallas import tpu as pltpu

C1 = 16              # number of distribution bins per box side
NG = 4               # four box sides (l, t, r, b)
DEFAULT_TILE_A = 2048  # anchor (lane) tile per grid step
LANE_CHUNK = 512       # in-kernel lane chunk: bounds live vregs, avoids spills


def _make_dfl_kernel(chunk, num_chunks):
    def dfl_kernel(x_ref, o_ref):
        # x_ref: (1, NG*C1, TILE_A) in storage dtype;  o_ref: (1, NG, TILE_A)
        # Reduction matrix (8, C1): row 0 = ones  -> softmax denominator,
        # row 1 = arange(C1) (frozen conv weight) -> weighted numerator,
        # rows 2..7 = zeros. Hoisted out of both loops; one tiny constant vreg.
        row = lax.broadcasted_iota(jnp.int32, (8, C1), 0)
        col = lax.broadcasted_iota(jnp.int32, (8, C1), 1)
        red = jnp.where(row == 0, jnp.float32(1.0),
                        jnp.where(row == 1, col.astype(jnp.float32),
                                  jnp.float32(0.0)))

        def chunk_body(ci, carry):
            off = pl.multiple_of(ci * chunk, 128)
            rs = []
            for j in range(NG):                        # static unroll: 4 sides
                g = x_ref[0, j * C1:(j + 1) * C1, pl.ds(off, chunk)]
                g = g.astype(jnp.float32)              # cast in VMEM, not HBM
                m = jnp.max(g, axis=0, keepdims=True)  # per-lane max (stable)
                e = jnp.exp(g - m)                     # (C1, chunk)
                # One small MXU matmul: rows 0/1 = denominator / weighted sum.
                rs.append(jnp.dot(red, e, preferred_element_type=jnp.float32))
            den = jnp.concatenate([r[0:1] for r in rs], axis=0)   # (NG, chunk)
            num = jnp.concatenate([r[1:2] for r in rs], axis=0)   # (NG, chunk)
            # Batched normalization + single lane-dense store per chunk.
            o_ref[0, :, pl.ds(off, chunk)] = (num / den).astype(o_ref.dtype)
            return carry

        lax.fori_loop(0, num_chunks, chunk_body, 0, unroll=True)

    return dfl_kernel


def dfl_forward(x, *, tile_a=DEFAULT_TILE_A):
    """x: (b, 4*C1, A) any float dtype; returns (b, 4, A) in x.dtype."""
    b, c, a = x.shape
    assert c == NG * C1, f"expected {NG * C1} channels, got {c}"

    # Lane-aligned anchor tile. No wrapper pad / upcast (no extra HBM passes);
    # the ragged last block (if any) is handled by Pallas: garbage lanes are
    # lane-isolated in the softmax and never written back to HBM.
    tile = min(tile_a, pl.cdiv(a, 128) * 128)
    # In-kernel lane chunk must divide tile exactly (tile is a multiple of 128).
    if tile % LANE_CHUNK == 0:
        chunk = LANE_CHUNK
    elif tile % 256 == 0:
        chunk = 256
    else:
        chunk = 128

    grid = (b, pl.cdiv(a, tile))
    kernel = _make_dfl_kernel(chunk, tile // chunk)

    return pl.pallas_call(
        kernel,
        out_shape=jax.ShapeDtypeStruct((b, NG, a), x.dtype),
        grid_spec=pltpu.PrefetchScalarGridSpec(
            num_scalar_prefetch=0,
            grid=grid,
            in_specs=[
                pl.BlockSpec((1, NG * C1, tile), lambda bi, ai: (bi, 0, ai)),
            ],
            out_specs=pl.BlockSpec((1, NG, tile), lambda bi, ai: (bi, 0, ai)),
        ),
        compiler_params=pltpu.CompilerParams(
            dimension_semantics=("parallel", "parallel")),
    )(x)


def dfl_reference(x):
    """Pure-JAX reference mirroring the PyTorch forward."""
    b, c, a = x.shape
    xr = x.astype(jnp.float32).reshape(b, NG, C1, a)   # (b, 4, C1, a)
    p = jax.nn.softmax(xr, axis=2)                     # softmax over bins
    w = jnp.arange(C1, dtype=jnp.float32)
    return jnp.einsum("bgia,i->bga", p, w)             # (b, 4, a)


if __name__ == "__main__":
    key = jax.random.PRNGKey(0)
    # Small but exercises multi-chunk tiles and a ragged last block.
    b, a = 2, 2100
    x = jax.random.normal(key, (b, NG * C1, a), dtype=jnp.float32)

    out = dfl_forward(x)
    jax.block_until_ready(out)

    ref = dfl_reference(x)
    assert out.shape == (b, NG, a)
    assert jnp.allclose(out, ref, atol=1e-4, rtol=1e-4), "mismatch vs reference"
    print("KERNEL_OK")
</pallas_src>

<mosaic_0001>
module attributes {stable_mosaic.version = 11 : i64} {
  func.func @dfl_kernel(%arg0: i32, %arg1: i32, %arg2: memref<1x64x2048xf32, #tpu.memory_space<vmem>>, %arg3: memref<1x4x2048xf32, #tpu.memory_space<vmem>>) attributes {dimension_semantics = [#tpu.dimension_semantics<parallel>, #tpu.dimension_semantics<parallel>], iteration_bounds = array<i64: 2, 2>, scalar_prefetch = 0 : i64, scratch_operands = 0 : i64, tpu.core_type = #tpu.core_type<tc>, window_params = [{transform_indices = @transform_0, window_bounds = array<i64: 1, 64, 2048>}, {transform_indices = @transform_1, window_bounds = array<i64: 1, 4, 2048>}]} {
    %0 = tpu.iota {dimensions = array<i32: 0>} : vector<8x16xi32>
    %1 = tpu.iota {dimensions = array<i32: 1>} : vector<8x16xi32>
    %c0_i32 = arith.constant 0 : i32
    %2 = vector.broadcast %c0_i32 : i32 to vector<8x16xi32>
    %3 = arith.cmpi eq, %0, %2 : vector<8x16xi32>
    %c1_i32 = arith.constant 1 : i32
    %4 = vector.broadcast %c1_i32 : i32 to vector<8x16xi32>
    %5 = arith.cmpi eq, %0, %4 : vector<8x16xi32>
    %6 = arith.sitofp %1 : vector<8x16xi32> to vector<8x16xf32>
    %cst = arith.constant 0.000000e+00 : f32
    %7 = vector.broadcast %cst : f32 to vector<8x16xf32>
    %8 = arith.select %5, %6, %7 : vector<8x16xi1>, vector<8x16xf32>
    %cst_0 = arith.constant 1.000000e+00 : f32
    %9 = vector.broadcast %cst_0 : f32 to vector<8x16xf32>
    %10 = arith.select %3, %9, %8 : vector<8x16xi1>, vector<8x16xf32>
    %c0_i32_1 = arith.constant 0 : i32
    %c512_i32 = arith.constant 512 : i32
    %11 = arith.muli %c0_i32_1, %c512_i32 : i32
    %12 = tpu.assume_multiple %11, 128 : i32
    %c0 = arith.constant 0 : index
    %c0_2 = arith.constant 0 : index
    %13 = arith.index_cast %12 : i32 to index
    %14 = vector.load %arg2[%c0, %c0_2, %13] : memref<1x64x2048xf32, #tpu.memory_space<vmem>>, vector<1x16x512xf32>
    %15 = vector.shape_cast %14 : vector<1x16x512xf32> to vector<16x512xf32>
    %cst_3 = arith.constant dense<0xFF800000> : vector<512xf32>
    %16 = vector.multi_reduction <maximumf>, %15, %cst_3 [0] : vector<16x512xf32> to vector<512xf32>
    %17 = vector.shape_cast %16 : vector<512xf32> to vector<1x512xf32>
    %18 = vector.broadcast %17 : vector<1x512xf32> to vector<16x512xf32>
    %19 = arith.subf %15, %18 : vector<16x512xf32>
    %20 = math.exp %19 : vector<16x512xf32>
    %cst_4 = arith.constant dense<0.000000e+00> : vector<8x512xf32>
    %21 = tpu.matmul %10, %20, %cst_4 {dimension_numbers = #tpu.dot_dimension_numbers<[1], [0], [0], [1], [0, 0, 1, 1], [], []>} : vector<8x16xf32>, vector<16x512xf32>, vector<8x512xf32> -> vector<8x512xf32>
    %c0_5 = arith.constant 0 : index
    %c16 = arith.constant 16 : index
    %22 = arith.index_cast %12 : i32 to index
    %23 = vector.load %arg2[%c0_5, %c16, %22] : memref<1x64x2048xf32, #tpu.memory_space<vmem>>, vector<1x16x512xf32>
    %24 = vector.shape_cast %23 : vector<1x16x512xf32> to vector<16x512xf32>
    %cst_6 = arith.constant dense<0xFF800000> : vector<512xf32>
    %25 = vector.multi_reduction <maximumf>, %24, %cst_6 [0] : vector<16x512xf32> to vector<512xf32>
    %26 = vector.shape_cast %25 : vector<512xf32> to vector<1x512xf32>
    %27 = vector.broadcast %26 : vector<1x512xf32> to vector<16x512xf32>
    %28 = arith.subf %24, %27 : vector<16x512xf32>
    %29 = math.exp %28 : vector<16x512xf32>
    %cst_7 = arith.constant dense<0.000000e+00> : vector<8x512xf32>
    %30 = tpu.matmul %10, %29, %cst_7 {dimension_numbers = #tpu.dot_dimension_numbers<[1], [0], [0], [1], [0, 0, 1, 1], [], []>} : vector<8x16xf32>, vector<16x512xf32>, vector<8x512xf32> -> vector<8x512xf32>
    %c0_8 = arith.constant 0 : index
    %c32 = arith.constant 32 : index
    %31 = arith.index_cast %12 : i32 to index
    %32 = vector.load %arg2[%c0_8, %c32, %31] : memref<1x64x2048xf32, #tpu.memory_space<vmem>>, vector<1x16x512xf32>
    %33 = vector.shape_cast %32 : vector<1x16x512xf32> to vector<16x512xf32>
    %cst_9 = arith.constant dense<0xFF800000> : vector<512xf32>
    %34 = vector.multi_reduction <maximumf>, %33, %cst_9 [0] : vector<16x512xf32> to vector<512xf32>
    %35 = vector.shape_cast %34 : vector<512xf32> to vector<1x512xf32>
    %36 = vector.broadcast %35 : vector<1x512xf32> to vector<16x512xf32>
    %37 = arith.subf %33, %36 : vector<16x512xf32>
    %38 = math.exp %37 : vector<16x512xf32>
    %cst_10 = arith.constant dense<0.000000e+00> : vector<8x512xf32>
    %39 = tpu.matmul %10, %38, %cst_10 {dimension_numbers = #tpu.dot_dimension_numbers<[1], [0], [0], [1], [0, 0, 1, 1], [], []>} : vector<8x16xf32>, vector<16x512xf32>, vector<8x512xf32> -> vector<8x512xf32>
    %c0_11 = arith.constant 0 : index
    %c48 = arith.constant 48 : index
    %40 = arith.index_cast %12 : i32 to index
    %41 = vector.load %arg2[%c0_11, %c48, %40] : memref<1x64x2048xf32, #tpu.memory_space<vmem>>, vector<1x16x512xf32>
    %42 = vector.shape_cast %41 : vector<1x16x512xf32> to vector<16x512xf32>
    %cst_12 = arith.constant dense<0xFF800000> : vector<512xf32>
    %43 = vector.multi_reduction <maximumf>, %42, %cst_12 [0] : vector<16x512xf32> to vector<512xf32>
    %44 = vector.shape_cast %43 : vector<512xf32> to vector<1x512xf32>
    %45 = vector.broadcast %44 : vector<1x512xf32> to vector<16x512xf32>
    %46 = arith.subf %42, %45 : vector<16x512xf32>
    %47 = math.exp %46 : vector<16x512xf32>
    %cst_13 = arith.constant dense<0.000000e+00> : vector<8x512xf32>
    %48 = tpu.matmul %10, %47, %cst_13 {dimension_numbers = #tpu.dot_dimension_numbers<[1], [0], [0], [1], [0, 0, 1, 1], [], []>} : vector<8x16xf32>, vector<16x512xf32>, vector<8x512xf32> -> vector<8x512xf32>
    %49 = vector.extract_strided_slice %21 {offsets = [0, 0], sizes = [1, 512], strides = [1, 1]} : vector<8x512xf32> to vector<1x512xf32>
    %50 = vector.extract_strided_slice %30 {offsets = [0, 0], sizes = [1, 512], strides = [1, 1]} : vector<8x512xf32> to vector<1x512xf32>
    %51 = vector.extract_strided_slice %39 {offsets = [0, 0], sizes = [1, 512], strides = [1, 1]} : vector<8x512xf32> to vector<1x512xf32>
    %52 = vector.extract_strided_slice %48 {offsets = [0, 0], sizes = [1, 512], strides = [1, 1]} : vector<8x512xf32> to vector<1x512xf32>
    %53 = tpu.concatenate %49, %50, %51, %52 in 0 : vector<1x512xf32>, vector<1x512xf32>, vector<1x512xf32>, vector<1x512xf32> -> vector<4x512xf32>
    %54 = vector.extract_strided_slice %21 {offsets = [1, 0], sizes = [1, 512], strides = [1, 1]} : vector<8x512xf32> to vector<1x512xf32>
    %55 = vector.extract_strided_slice %30 {offsets = [1, 0], sizes = [1, 512], strides = [1, 1]} : vector<8x512xf32> to vector<1x512xf32>
    %56 = vector.extract_strided_slice %39 {offsets = [1, 0], sizes = [1, 512], strides = [1, 1]} : vector<8x512xf32> to vector<1x512xf32>
    %57 = vector.extract_strided_slice %48 {offsets = [1, 0], sizes = [1, 512], strides = [1, 1]} : vector<8x512xf32> to vector<1x512xf32>
    %58 = tpu.concatenate %54, %55, %56, %57 in 0 : vector<1x512xf32>, vector<1x512xf32>, vector<1x512xf32>, vector<1x512xf32> -> vector<4x512xf32>
    %59 = arith.divf %58, %53 : vector<4x512xf32>
    %c0_14 = arith.constant 0 : index
    %c0_15 = arith.constant 0 : index
    %60 = arith.index_cast %12 : i32 to index
    %61 = vector.load %arg3[%c0_14, %c0_15, %60] : memref<1x4x2048xf32, #tpu.memory_space<vmem>>, vector<1x4x512xf32>
    %62 = vector.shape_cast %61 : vector<1x4x512xf32> to vector<4x512xf32>
    %63 = vector.shape_cast %59 : vector<4x512xf32> to vector<1x4x512xf32>
    tpu.vector_store %arg3[%c0_14, %c0_15, %60], %63 {strides = array<i32>} : memref<1x4x2048xf32, #tpu.memory_space<vmem>>, vector<1x4x512xf32>,
    %c1_i32_16 = arith.constant 1 : i32
    %c512_i32_17 = arith.constant 512 : i32
    %64 = arith.muli %c1_i32_16, %c512_i32_17 : i32
    %65 = tpu.assume_multiple %64, 128 : i32
    %c0_18 = arith.constant 0 : index
    %c0_19 = arith.constant 0 : index
    %66 = arith.index_cast %65 : i32 to index
    %67 = vector.load %arg2[%c0_18, %c0_19, %66] : memref<1x64x2048xf32, #tpu.memory_space<vmem>>, vector<1x16x512xf32>
    %68 = vector.shape_cast %67 : vector<1x16x512xf32> to vector<16x512xf32>
    %cst_20 = arith.constant dense<0xFF800000> : vector<512xf32>
    %69 = vector.multi_reduction <maximumf>, %68, %cst_20 [0] : vector<16x512xf32> to vector<512xf32>
    %70 = vector.shape_cast %69 : vector<512xf32> to vector<1x512xf32>
    %71 = vector.broadcast %70 : vector<1x512xf32> to vector<16x512xf32>
    %72 = arith.subf %68, %71 : vector<16x512xf32>
    %73 = math.exp %72 : vector<16x512xf32>
    %cst_21 = arith.constant dense<0.000000e+00> : vector<8x512xf32>
    %74 = tpu.matmul %10, %73, %cst_21 {dimension_numbers = #tpu.dot_dimension_numbers<[1], [0], [0], [1], [0, 0, 1, 1], [], []>} : vector<8x16xf32>, vector<16x512xf32>, vector<8x512xf32> -> vector<8x512xf32>
    %c0_22 = arith.constant 0 : index
    %c16_23 = arith.constant 16 : index
    %75 = arith.index_cast %65 : i32 to index
    %76 = vector.load %arg2[%c0_22, %c16_23, %75] : memref<1x64x2048xf32, #tpu.memory_space<vmem>>, vector<1x16x512xf32>
    %77 = vector.shape_cast %76 : vector<1x16x512xf32> to vector<16x512xf32>
    %cst_24 = arith.constant dense<0xFF800000> : vector<512xf32>
    %78 = vector.multi_reduction <maximumf>, %77, %cst_24 [0] : vector<16x512xf32> to vector<512xf32>
    %79 = vector.shape_cast %78 : vector<512xf32> to vector<1x512xf32>
    %80 = vector.broadcast %79 : vector<1x512xf32> to vector<16x512xf32>
    %81 = arith.subf %77, %80 : vector<16x512xf32>
    %82 = math.exp %81 : vector<16x512xf32>
    %cst_25 = arith.constant dense<0.000000e+00> : vector<8x512xf32>
    %83 = tpu.matmul %10, %82, %cst_25 {dimension_numbers = #tpu.dot_dimension_numbers<[1], [0], [0], [1], [0, 0, 1, 1], [], []>} : vector<8x16xf32>, vector<16x512xf32>, vector<8x512xf32> -> vector<8x512xf32>
    %c0_26 = arith.constant 0 : index
    %c32_27 = arith.constant 32 : index
    %84 = arith.index_cast %65 : i32 to index
    %85 = vector.load %arg2[%c0_26, %c32_27, %84] : memref<1x64x2048xf32, #tpu.memory_space<vmem>>, vector<1x16x512xf32>
    %86 = vector.shape_cast %85 : vector<1x16x512xf32> to vector<16x512xf32>
    %cst_28 = arith.constant dense<0xFF800000> : vector<512xf32>
    %87 = vector.multi_reduction <maximumf>, %86, %cst_28 [0] : vector<16x512xf32> to vector<512xf32>
    %88 = vector.shape_cast %87 : vector<512xf32> to vector<1x512xf32>
    %89 = vector.broadcast %88 : vector<1x512xf32> to vector<16x512xf32>
    %90 = arith.subf %86, %89 : vector<16x512xf32>
    %91 = math.exp %90 : vector<16x512xf32>
    %cst_29 = arith.constant dense<0.000000e+00> : vector<8x512xf32>
    %92 = tpu.matmul %10, %91, %cst_29 {dimension_numbers = #tpu.dot_dimension_numbers<[1], [0], [0], [1], [0, 0, 1, 1], [], []>} : vector<8x16xf32>, vector<16x512xf32>, vector<8x512xf32> -> vector<8x512xf32>
    %c0_30 = arith.constant 0 : index
    %c48_31 = arith.constant 48 : index
    %93 = arith.index_cast %65 : i32 to index
    %94 = vector.load %arg2[%c0_30, %c48_31, %93] : memref<1x64x2048xf32, #tpu.memory_space<vmem>>, vector<1x16x512xf32>
    %95 = vector.shape_cast %94 : vector<1x16x512xf32> to vector<16x512xf32>
    %cst_32 = arith.constant dense<0xFF800000> : vector<512xf32>
    %96 = vector.multi_reduction <maximumf>, %95, %cst_32 [0] : vector<16x512xf32> to vector<512xf32>
    %97 = vector.shape_cast %96 : vector<512xf32> to vector<1x512xf32>
    %98 = vector.broadcast %97 : vector<1x512xf32> to vector<16x512xf32>
    %99 = arith.subf %95, %98 : vector<16x512xf32>
    %100 = math.exp %99 : vector<16x512xf32>
    %cst_33 = arith.constant dense<0.000000e+00> : vector<8x512xf32>
    %101 = tpu.matmul %10, %100, %cst_33 {dimension_numbers = #tpu.dot_dimension_numbers<[1], [0], [0], [1], [0, 0, 1, 1], [], []>} : vector<8x16xf32>, vector<16x512xf32>, vector<8x512xf32> -> vector<8x512xf32>
    %102 = vector.extract_strided_slice %74 {offsets = [0, 0], sizes = [1, 512], strides = [1, 1]} : vector<8x512xf32> to vector<1x512xf32>
    %103 = vector.extract_strided_slice %83 {offsets = [0, 0], sizes = [1, 512], strides = [1, 1]} : vector<8x512xf32> to vector<1x512xf32>
    %104 = vector.extract_strided_slice %92 {offsets = [0, 0], sizes = [1, 512], strides = [1, 1]} : vector<8x512xf32> to vector<1x512xf32>
    %105 = vector.extract_strided_slice %101 {offsets = [0, 0], sizes = [1, 512], strides = [1, 1]} : vector<8x512xf32> to vector<1x512xf32>
    %106 = tpu.concatenate %102, %103, %104, %105 in 0 : vector<1x512xf32>, vector<1x512xf32>, vector<1x512xf32>, vector<1x512xf32> -> vector<4x512xf32>
    %107 = vector.extract_strided_slice %74 {offsets = [1, 0], sizes = [1, 512], strides = [1, 1]} : vector<8x512xf32> to vector<1x512xf32>
    %108 = vector.extract_strided_slice %83 {offsets = [1, 0], sizes = [1, 512], strides = [1, 1]} : vector<8x512xf32> to vector<1x512xf32>
    %109 = vector.extract_strided_slice %92 {offsets = [1, 0], sizes = [1, 512], strides = [1, 1]} : vector<8x512xf32> to vector<1x512xf32>
    %110 = vector.extract_strided_slice %101 {offsets = [1, 0], sizes = [1, 512], strides = [1, 1]} : vector<8x512xf32> to vector<1x512xf32>
    %111 = tpu.concatenate %107, %108, %109, %110 in 0 : vector<1x512xf32>, vector<1x512xf32>, vector<1x512xf32>, vector<1x512xf32> -> vector<4x512xf32>
    %112 = arith.divf %111, %106 : vector<4x512xf32>
    %c0_34 = arith.constant 0 : index
    %c0_35 = arith.constant 0 : index
    %113 = arith.index_cast %65 : i32 to index
    %114 = vector.load %arg3[%c0_34, %c0_35, %113] : memref<1x4x2048xf32, #tpu.memory_space<vmem>>, vector<1x4x512xf32>
    %115 = vector.shape_cast %114 : vector<1x4x512xf32> to vector<4x512xf32>
    %116 = vector.shape_cast %112 : vector<4x512xf32> to vector<1x4x512xf32>
    tpu.vector_store %arg3[%c0_34, %c0_35, %113], %116 {strides = array<i32>} : memref<1x4x2048xf32, #tpu.memory_space<vmem>>, vector<1x4x512xf32>,
    %c2_i32 = arith.constant 2 : i32
    %c512_i32_36 = arith.constant 512 : i32
    %117 = arith.muli %c2_i32, %c512_i32_36 : i32
    %118 = tpu.assume_multiple %117, 128 : i32
    %c0_37 = arith.constant 0 : index
    %c0_38 = arith.constant 0 : index
    %119 = arith.index_cast %118 : i32 to index
    %120 = vector.load %arg2[%c0_37, %c0_38, %119] : memref<1x64x2048xf32, #tpu.memory_space<vmem>>, vector<1x16x512xf32>
    %121 = vector.shape_cast %120 : vector<1x16x512xf32> to vector<16x512xf32>
    %cst_39 = arith.constant dense<0xFF800000> : vector<512xf32>
    %122 = vector.multi_reduction <maximumf>, %121, %cst_39 [0] : vector<16x512xf32> to vector<512xf32>
    %123 = vector.shape_cast %122 : vector<512xf32> to vector<1x512xf32>
    %124 = vector.broadcast %123 : vector<1x512xf32> to vector<16x512xf32>
    %125 = arith.subf %121, %124 : vector<16x512xf32>
    %126 = math.exp %125 : vector<16x512xf32>
    %cst_40 = arith.constant dense<0.000000e+00> : vector<8x512xf32>
    %127 = tpu.matmul %10, %126, %cst_40 {dimension_numbers = #tpu.dot_dimension_numbers<[1], [0], [0], [1], [0, 0, 1, 1], [], []>} : vector<8x16xf32>, vector<16x512xf32>, vector<8x512xf32> -> vector<8x512xf32>
    %c0_41 = arith.constant 0 : index
    %c16_42 = arith.constant 16 : index
    %128 = arith.index_cast %118 : i32 to index
    %129 = vector.load %arg2[%c0_41, %c16_42, %128] : memref<1x64x2048xf32, #tpu.memory_space<vmem>>, vector<1x16x512xf32>
    %130 = vector.shape_cast %129 : vector<1x16x512xf32> to vector<16x512xf32>
    %cst_43 = arith.constant dense<0xFF800000> : vector<512xf32>
    %131 = vector.multi_reduction <maximumf>, %130, %cst_43 [0] : vector<16x512xf32> to vector<512xf32>
    %132 = vector.shape_cast %131 : vector<512xf32> to vector<1x512xf32>
    %133 = vector.broadcast %132 : vector<1x512xf32> to vector<16x512xf32>
    %134 = arith.subf %130, %133 : vector<16x512xf32>
    %135 = math.exp %134 : vector<16x512xf32>
    %cst_44 = arith.constant dense<0.000000e+00> : vector<8x512xf32>
    %136 = tpu.matmul %10, %135, %cst_44 {dimension_numbers = #tpu.dot_dimension_numbers<[1], [0], [0], [1], [0, 0, 1, 1], [], []>} : vector<8x16xf32>, vector<16x512xf32>, vector<8x512xf32> -> vector<8x512xf32>
    %c0_45 = arith.constant 0 : index
    %c32_46 = arith.constant 32 : index
    %137 = arith.index_cast %118 : i32 to index
    %138 = vector.load %arg2[%c0_45, %c32_46, %137] : memref<1x64x2048xf32, #tpu.memory_space<vmem>>, vector<1x16x512xf32>
    %139 = vector.shape_cast %138 : vector<1x16x512xf32> to vector<16x512xf32>
    %cst_47 = arith.constant dense<0xFF800000> : vector<512xf32>
    %140 = vector.multi_reduction <maximumf>, %139, %cst_47 [0] : vector<16x512xf32> to vector<512xf32>
    %141 = vector.shape_cast %140 : vector<512xf32> to vector<1x512xf32>
    %142 = vector.broadcast %141 : vector<1x512xf32> to vector<16x512xf32>
    %143 = arith.subf %139, %142 : vector<16x512xf32>
    %144 = math.exp %143 : vector<16x512xf32>
    %cst_48 = arith.constant dense<0.000000e+00> : vector<8x512xf32>
    %145 = tpu.matmul %10, %144, %cst_48 {dimension_numbers = #tpu.dot_dimension_numbers<[1], [0], [0], [1], [0, 0, 1, 1], [], []>} : vector<8x16xf32>, vector<16x512xf32>, vector<8x512xf32> -> vector<8x512xf32>
    %c0_49 = arith.constant 0 : index
    %c48_50 = arith.constant 48 : index
    %146 = arith.index_cast %118 : i32 to index
    %147 = vector.load %arg2[%c0_49, %c48_50, %146] : memref<1x64x2048xf32, #tpu.memory_space<vmem>>, vector<1x16x512xf32>
    %148 = vector.shape_cast %147 : vector<1x16x512xf32> to vector<16x512xf32>
    %cst_51 = arith.constant dense<0xFF800000> : vector<512xf32>
    %149 = vector.multi_reduction <maximumf>, %148, %cst_51 [0] : vector<16x512xf32> to vector<512xf32>
    %150 = vector.shape_cast %149 : vector<512xf32> to vector<1x512xf32>
    %151 = vector.broadcast %150 : vector<1x512xf32> to vector<16x512xf32>
    %152 = arith.subf %148, %151 : vector<16x512xf32>
    %153 = math.exp %152 : vector<16x512xf32>
    %cst_52 = arith.constant dense<0.000000e+00> : vector<8x512xf32>
    %154 = tpu.matmul %10, %153, %cst_52 {dimension_numbers = #tpu.dot_dimension_numbers<[1], [0], [0], [1], [0, 0, 1, 1], [], []>} : vector<8x16xf32>, vector<16x512xf32>, vector<8x512xf32> -> vector<8x512xf32>
    %155 = vector.extract_strided_slice %127 {offsets = [0, 0], sizes = [1, 512], strides = [1, 1]} : vector<8x512xf32> to vector<1x512xf32>
    %156 = vector.extract_strided_slice %136 {offsets = [0, 0], sizes = [1, 512], strides = [1, 1]} : vector<8x512xf32> to vector<1x512xf32>
    %157 = vector.extract_strided_slice %145 {offsets = [0, 0], sizes = [1, 512], strides = [1, 1]} : vector<8x512xf32> to vector<1x512xf32>
    %158 = vector.extract_strided_slice %154 {offsets = [0, 0], sizes = [1, 512], strides = [1, 1]} : vector<8x512xf32> to vector<1x512xf32>
    %159 = tpu.concatenate %155, %156, %157, %158 in 0 : vector<1x512xf32>, vector<1x512xf32>, vector<1x512xf32>, vector<1x512xf32> -> vector<4x512xf32>
    %160 = vector.extract_strided_slice %127 {offsets = [1, 0], sizes = [1, 512], strides = [1, 1]} : vector<8x512xf32> to vector<1x512xf32>
    %161 = vector.extract_strided_slice %136 {offsets = [1, 0], sizes = [1, 512], strides = [1, 1]} : vector<8x512xf32> to vector<1x512xf32>
    %162 = vector.extract_strided_slice %145 {offsets = [1, 0], sizes = [1, 512], strides = [1, 1]} : vector<8x512xf32> to vector<1x512xf32>
    %163 = vector.extract_strided_slice %154 {offsets = [1, 0], sizes = [1, 512], strides = [1, 1]} : vector<8x512xf32> to vector<1x512xf32>
    %164 = tpu.concatenate %160, %161, %162, %163 in 0 : vector<1x512xf32>, vector<1x512xf32>, vector<1x512xf32>, vector<1x512xf32> -> vector<4x512xf32>
    %165 = arith.divf %164, %159 : vector<4x512xf32>
    %c0_53 = arith.constant 0 : index
    %c0_54 = arith.constant 0 : index
    %166 = arith.index_cast %118 : i32 to index
    %167 = vector.load %arg3[%c0_53, %c0_54, %166] : memref<1x4x2048xf32, #tpu.memory_space<vmem>>, vector<1x4x512xf32>
    %168 = vector.shape_cast %167 : vector<1x4x512xf32> to vector<4x512xf32>
    %169 = vector.shape_cast %165 : vector<4x512xf32> to vector<1x4x512xf32>
    tpu.vector_store %arg3[%c0_53, %c0_54, %166], %169 {strides = array<i32>} : memref<1x4x2048xf32, #tpu.memory_space<vmem>>, vector<1x4x512xf32>,
    %c3_i32 = arith.constant 3 : i32
    %c512_i32_55 = arith.constant 512 : i32
    %170 = arith.muli %c3_i32, %c512_i32_55 : i32
    %171 = tpu.assume_multiple %170, 128 : i32
    %c0_56 = arith.constant 0 : index
    %c0_57 = arith.constant 0 : index
    %172 = arith.index_cast %171 : i32 to index
    %173 = vector.load %arg2[%c0_56, %c0_57, %172] : memref<1x64x2048xf32, #tpu.memory_space<vmem>>, vector<1x16x512xf32>
    %174 = vector.shape_cast %173 : vector<1x16x512xf32> to vector<16x512xf32>
    %cst_58 = arith.constant dense<0xFF800000> : vector<512xf32>
    %175 = vector.multi_reduction <maximumf>, %174, %cst_58 [0] : vector<16x512xf32> to vector<512xf32>
    %176 = vector.shape_cast %175 : vector<512xf32> to vector<1x512xf32>
    %177 = vector.broadcast %176 : vector<1x512xf32> to vector<16x512xf32>
    %178 = arith.subf %174, %177 : vector<16x512xf32>
    %179 = math.exp %178 : vector<16x512xf32>
    %cst_59 = arith.constant dense<0.000000e+00> : vector<8x512xf32>
    %180 = tpu.matmul %10, %179, %cst_59 {dimension_numbers = #tpu.dot_dimension_numbers<[1], [0], [0], [1], [0, 0, 1, 1], [], []>} : vector<8x16xf32>, vector<16x512xf32>, vector<8x512xf32> -> vector<8x512xf32>
    %c0_60 = arith.constant 0 : index
    %c16_61 = arith.constant 16 : index
    %181 = arith.index_cast %171 : i32 to index
    %182 = vector.load %arg2[%c0_60, %c16_61, %181] : memref<1x64x2048xf32, #tpu.memory_space<vmem>>, vector<1x16x512xf32>
    %183 = vector.shape_cast %182 : vector<1x16x512xf32> to vector<16x512xf32>
    %cst_62 = arith.constant dense<0xFF800000> : vector<512xf32>
    %184 = vector.multi_reduction <maximumf>, %183, %cst_62 [0] : vector<16x512xf32> to vector<512xf32>
    %185 = vector.shape_cast %184 : vector<512xf32> to vector<1x512xf32>
    %186 = vector.broadcast %185 : vector<1x512xf32> to vector<16x512xf32>
    %187 = arith.subf %183, %186 : vector<16x512xf32>
    %188 = math.exp %187 : vector<16x512xf32>
    %cst_63 = arith.constant dense<0.000000e+00> : vector<8x512xf32>
    %189 = tpu.matmul %10, %188, %cst_63 {dimension_numbers = #tpu.dot_dimension_numbers<[1], [0], [0], [1], [0, 0, 1, 1], [], []>} : vector<8x16xf32>, vector<16x512xf32>, vector<8x512xf32> -> vector<8x512xf32>
    %c0_64 = arith.constant 0 : index
    %c32_65 = arith.constant 32 : index
    %190 = arith.index_cast %171 : i32 to index
    %191 = vector.load %arg2[%c0_64, %c32_65, %190] : memref<1x64x2048xf32, #tpu.memory_space<vmem>>, vector<1x16x512xf32>
    %192 = vector.shape_cast %191 : vector<1x16x512xf32> to vector<16x512xf32>
    %cst_66 = arith.constant dense<0xFF800000> : vector<512xf32>
    %193 = vector.multi_reduction <maximumf>, %192, %cst_66 [0] : vector<16x512xf32> to vector<512xf32>
    %194 = vector.shape_cast %193 : vector<512xf32> to vector<1x512xf32>
    %195 = vector.broadcast %194 : vector<1x512xf32> to vector<16x512xf32>
    %196 = arith.subf %192, %195 : vector<16x512xf32>
    %197 = math.exp %196 : vector<16x512xf32>
    %cst_67 = arith.constant dense<0.000000e+00> : vector<8x512xf32>
    %198 = tpu.matmul %10, %197, %cst_67 {dimension_numbers = #tpu.dot_dimension_numbers<[1], [0], [0], [1], [0, 0, 1, 1], [], []>} : vector<8x16xf32>, vector<16x512xf32>, vector<8x512xf32> -> vector<8x512xf32>
    %c0_68 = arith.constant 0 : index
    %c48_69 = arith.constant 48 : index
    %199 = arith.index_cast %171 : i32 to index
    %200 = vector.load %arg2[%c0_68, %c48_69, %199] : memref<1x64x2048xf32, #tpu.memory_space<vmem>>, vector<1x16x512xf32>
    %201 = vector.shape_cast %200 : vector<1x16x512xf32> to vector<16x512xf32>
    %cst_70 = arith.constant dense<0xFF800000> : vector<512xf32>
    %202 = vector.multi_reduction <maximumf>, %201, %cst_70 [0] : vector<16x512xf32> to vector<512xf32>
    %203 = vector.shape_cast %202 : vector<512xf32> to vector<1x512xf32>
    %204 = vector.broadcast %203 : vector<1x512xf32> to vector<16x512xf32>
    %205 = arith.subf %201, %204 : vector<16x512xf32>
    %206 = math.exp %205 : vector<16x512xf32>
    %cst_71 = arith.constant dense<0.000000e+00> : vector<8x512xf32>
    %207 = tpu.matmul %10, %206, %cst_71 {dimension_numbers = #tpu.dot_dimension_numbers<[1], [0], [0], [1], [0, 0, 1, 1], [], []>} : vector<8x16xf32>, vector<16x512xf32>, vector<8x512xf32> -> vector<8x512xf32>
    %208 = vector.extract_strided_slice %180 {offsets = [0, 0], sizes = [1, 512], strides = [1, 1]} : vector<8x512xf32> to vector<1x512xf32>
    %209 = vector.extract_strided_slice %189 {offsets = [0, 0], sizes = [1, 512], strides = [1, 1]} : vector<8x512xf32> to vector<1x512xf32>
    %210 = vector.extract_strided_slice %198 {offsets = [0, 0], sizes = [1, 512], strides = [1, 1]} : vector<8x512xf32> to vector<1x512xf32>
    %211 = vector.extract_strided_slice %207 {offsets = [0, 0], sizes = [1, 512], strides = [1, 1]} : vector<8x512xf32> to vector<1x512xf32>
    %212 = tpu.concatenate %208, %209, %210, %211 in 0 : vector<1x512xf32>, vector<1x512xf32>, vector<1x512xf32>, vector<1x512xf32> -> vector<4x512xf32>
    %213 = vector.extract_strided_slice %180 {offsets = [1, 0], sizes = [1, 512], strides = [1, 1]} : vector<8x512xf32> to vector<1x512xf32>
    %214 = vector.extract_strided_slice %189 {offsets = [1, 0], sizes = [1, 512], strides = [1, 1]} : vector<8x512xf32> to vector<1x512xf32>
    %215 = vector.extract_strided_slice %198 {offsets = [1, 0], sizes = [1, 512], strides = [1, 1]} : vector<8x512xf32> to vector<1x512xf32>
    %216 = vector.extract_strided_slice %207 {offsets = [1, 0], sizes = [1, 512], strides = [1, 1]} : vector<8x512xf32> to vector<1x512xf32>
    %217 = tpu.concatenate %213, %214, %215, %216 in 0 : vector<1x512xf32>, vector<1x512xf32>, vector<1x512xf32>, vector<1x512xf32> -> vector<4x512xf32>
    %218 = arith.divf %217, %212 : vector<4x512xf32>
    %c0_72 = arith.constant 0 : index
    %c0_73 = arith.constant 0 : index
    %219 = arith.index_cast %171 : i32 to index
    %220 = vector.load %arg3[%c0_72, %c0_73, %219] : memref<1x4x2048xf32, #tpu.memory_space<vmem>>, vector<1x4x512xf32>
    %221 = vector.shape_cast %220 : vector<1x4x512xf32> to vector<4x512xf32>
    %222 = vector.shape_cast %218 : vector<4x512xf32> to vector<1x4x512xf32>
    tpu.vector_store %arg3[%c0_72, %c0_73, %219], %222 {strides = array<i32>} : memref<1x4x2048xf32, #tpu.memory_space<vmem>>, vector<1x4x512xf32>,
    %c4_i32 = arith.constant 4 : i32
    return
  }
  func.func @transform_0(%arg0: i32, %arg1: i32) -> (i32, i32, i32) {
    %c0_i32 = arith.constant 0 : i32
    %c0_i32_0 = arith.constant 0 : i32
    return %arg0, %c0_i32, %arg1 : i32, i32, i32
  }
  func.func @transform_1(%arg0: i32, %arg1: i32) -> (i32, i32, i32) {
    %c0_i32 = arith.constant 0 : i32
    %c0_i32_0 = arith.constant 0 : i32
    return %arg0, %c0_i32, %arg1 : i32, i32, i32
  }
}

</mosaic_0001>

<llo_original>
// kernel: tpu_custom_call.1
$region0: #{tpu_custom_call.1}
  #allocation0 [shape = 'u32[]', space=smem, size = 0x4, offset = 0x4, fixed_abs, tag = 'smem constant byte address 0x4 - core index']
  #allocation1 [shape = 'u32[144,128]{1,0:T(1,128)}', space=vmem, size = 0x12000, scoped, tag = 'internal scratch']
  %s0 = inlined_call_operand.hbm [shape: f32[2,64,2100], index: 0, kind: input, shape index: {}]
  %s1 = inlined_call_operand.hbm [shape: f32[2,4,2100], index: 1, kind: output, shape index: {}]
  %s2 = sld [smem:[#allocation0]]
  $region41: #{tpu_custom_call.1} parent=0
    _
  %s4 = ssub.s32 1, %s2
  %s5 = scalar_select 0, %s4, %s2
  $region1: #{tpu_custom_call.1} parent=0
    #allocation2 [shape = 'u8[1048576]{0}', space=vmem, size = 0x100000, scoped, tag = 'input window, operand 0']
    #allocation3 [shape = 's32[2]{0}', space=sflag, size = 0x8, scoped, tag = 'scoped memory for tpu_custom_call.1']
    #allocation4 [shape = 's32[2]{0}', space=sflag, size = 0x8, scoped, tag = 'scoped memory for tpu_custom_call.1']
    #allocation5 [shape = 'u8[65536]{0}', space=vmem, size = 0x10000, scoped, tag = 'output window, operand 0']
    %6 = vsyncpa [#allocation3], 0
    %s7 = scalar_lea.sflag [#allocation3], 1
    %8 = vsyncpa %s7, 0
    %9 = vsyncpa [#allocation4], 0
    %s10 = scalar_lea.sflag [#allocation4], 1
    %11 = vsyncpa %s10, 0
    loop: start=0, step=1, limit=6
    $region2: #{tpu_custom_call.1} parent=1 // loop_pre_header
      _
    $region3: #{tpu_custom_call.1} parent=1 // loop_header
      %s13 = sphi 0, %s17
      %p14 = scmp.ge.s32.totalorder %s13, 6
      %s20 = sphi 0, %s32
      %s21 = sphi 0, %s28
      %s22 = sphi 0, %s20
      %s23 = sphi 0, %s21
      %s24 = sphi 0, %s22
      %s25 = sphi 0, %s23
      %s37 = sphi 0, %s39
      %s40 = sphi 0, %s37
      %s41 = sphi 0, %s40
      %s57 = sphi 0, %s41
      %s65 = sphi 0, %s67
      %s68 = sphi 0, %s65
      %s69 = sphi 0, %s68
      %s85 = sphi 0, %s69
    $region4: #{tpu_custom_call.1} parent=1 // loop_header_branch
      %16 = sbr.rel (%p14) target = $region8
    $region5: #{tpu_custom_call.1} parent=1 // loop_body
      %s18 = ssub.s32 %s13, 1
      %s19 = ssub.s32 %s13, 2
      %s26 = sadd.s32 1, %s21
      %p27 = scmp.ge.s32.totalorder %s26, 2
      %s28 = scalar_select %p27, 0, %s26
      %s29 = sadd.s32 1, %s20
      %s30 = scalar_select %p27, %s29, %s20
      %p31 = scmp.ge.s32.totalorder %s30, 2
      %s32 = scalar_select %p31, 0, %s30
      %s33 = ssub.s32 %s20, %s32
      %s34 = ssub.s32 %s21, %s28
      %s35 = sor.u32 %s33, %s34
      %p36 = scmp.eq.s32.totalorder %s35, 0
      %s38 = sadd.s32 %s37, 1
      %s39 = scalar_select %p36, %s37, %s38
      %p42 = pneg %p36
      %p43 = scmp.eq.s32.totalorder %s13, 3
      %p44 = por %p42, %p43
      %p45 = scmp.ne.s32.totalorder %s37, %s40
      %p46 = scmp.eq.s32.totalorder %s13, 0
      %p47 = por %p45, %p46
      %p48 = scmp.ne.s32.totalorder %s37, %s40
      %p49 = scmp.eq.s32.totalorder %s18, 3
      %p50 = por %p48, %p49
      %p51 = scmp.ne.s32.totalorder %s40, %s41
      %p52 = scmp.eq.s32.totalorder %s18, 0
      %p53 = por %p51, %p52
      %p54 = scmp.ne.s32.totalorder %s40, %s41
      %p55 = scmp.eq.s32.totalorder %s19, 3
      %p56 = por %p54, %p55
      %p58 = scmp.ne.s32.totalorder %s41, %s57
      %p59 = scmp.eq.s32.totalorder %s19, 0
      %p60 = por %p58, %p59
      %s61 = ssub.s32 %s20, %s32
      %s62 = ssub.s32 %s21, %s28
      %s63 = sor.u32 %s61, %s62
      %p64 = scmp.eq.s32.totalorder %s63, 0
      %s66 = sadd.s32 %s65, 1
      %s67 = scalar_select %p64, %s65, %s66
      %p70 = pneg %p64
      %p71 = scmp.eq.s32.totalorder %s13, 3
      %p72 = por %p70, %p71
      %p73 = scmp.ne.s32.totalorder %s65, %s68
      %p74 = scmp.eq.s32.totalorder %s13, 0
      %p75 = por %p73, %p74
      %p76 = scmp.ne.s32.totalorder %s65, %s68
      %p77 = scmp.eq.s32.totalorder %s18, 3
      %p78 = por %p76, %p77
      %p79 = scmp.ne.s32.totalorder %s68, %s69
      %p80 = scmp.eq.s32.totalorder %s18, 0
      %p81 = por %p79, %p80
      %p82 = scmp.ne.s32.totalorder %s68, %s69
      %p83 = scmp.eq.s32.totalorder %s19, 3
      %p84 = por %p82, %p83
      %p86 = scmp.ne.s32.totalorder %s69, %s85
      %p87 = scmp.eq.s32.totalorder %s19, 0
      %p88 = por %p86, %p87
      %p89 = scmp.le.s32.totalorder 1, %s13
      %p90 = scmp.lt.s32.totalorder %s13, 5
      %p91 = pnand %p89, %p90
      %p92 = pneg %p91
      // Predicated region
      $region9: #{tpu_custom_call.1} parent=5 // pred_check
        _
      $region10: #{tpu_custom_call.1} parent=5 // pred_check_branch
        %94 = sbr.rel (%p91) target = $region12
      $region11: #{tpu_custom_call.1} parent=5 // pred_region
        %s95 = ssub.s32 %s13, 1
      $region12: #{tpu_custom_call.1} parent=5 // pred_fallthru
        _
      %p96 = scmp.lt.s32.totalorder %s13, 4
      // Predicated region
      $region13: #{tpu_custom_call.1} parent=5 // pred_check
        %p97 = pneg %p96
      $region14: #{tpu_custom_call.1} parent=5 // pred_check_branch
        %99 = sbr.rel (%p97) target = $region16
      $region15: #{tpu_custom_call.1} parent=5 // pred_region
        // Predicated region
        $region17: #{tpu_custom_call.1} parent=15 // pred_check
          %p100 = pneg %p47
        $region18: #{tpu_custom_call.1} parent=15 // pred_check_branch
          %102 = sbr.rel (%p100) target = $region20
        $region19: #{tpu_custom_call.1} parent=15 // pred_region
          %s103 = sand.u32 %s37, 1
          %s104 = scalar_lea.sflag [#allocation3], %s103
          %s105 = sand.u32 %s37, 1
          %s106 = smul.addr %s105, 1024
          %s107 = scalar_lea.vmem [#allocation2], %s106
          %s108 = smul.u32 16, %s21
          %s109 = ssub.s32 17, %s108
          %p110 = scmp.lt.s32.totalorder %s109, 16
          %s111 = scalar_select %p110, %s109, 16
          %s112 = smul.u32 1024, %s111
          %s114 = ssub.s32 16384, %s112
          %115 = vsyncadd %s104, %s114
          %p116 = scmp.ne.s32.totalorder 0, %s112
          %s117 = smul.addr %s20, 136
          %s118 = sadd.s32 %s108, %s117
          %s119 = smul.addr %s118, 128
          %s120 = scalar_lea.hbm %s0, %s119
          %s121 = smul.u32 %s111, 8
          %s122 = smul.u32 %s121, 8
          %s123 = sshll.u32 %s107, 4
          %s124 = int_to_ptr.vmem [resolvable:$true] %s123
          %s125 = sshll.u32 %s122, 4
          %129 = dma.hbm_to_vmem [thread:$0]  (%p116), %s120, %s125, %s124, %s104, 2176, 2048, %s121
        $region20: #{tpu_custom_call.1} parent=15 // pred_fallthru
          _
      $region16: #{tpu_custom_call.1} parent=5 // pred_fallthru
        _
      %p130 = scmp.le.s32.totalorder 1, %s13
      %p131 = scmp.lt.s32.totalorder %s13, 5
      %p132 = pnand %p130, %p131
      %p133 = pneg %p132
      // Predicated region
      $region21: #{tpu_custom_call.1} parent=5 // pred_check
        _
      $region22: #{tpu_custom_call.1} parent=5 // pred_check_branch
        %135 = sbr.rel (%p132) target = $region24
      $region23: #{tpu_custom_call.1} parent=5 // pred_region
        %s136 = ssub.s32 %s13, 1
        %s137 = sand.u32 %s40, 1
        %s138 = scalar_lea.sflag [#allocation3], %s137
        %s139 = sand.u32 %s40, 1
        %s140 = smul.addr %s139, 1024
        %s141 = scalar_lea.vmem [#allocation2], %s140
        // Predicated region
        $region25: #{tpu_custom_call.1} parent=23 // pred_check
          %p142 = pneg %p53
        $region26: #{tpu_custom_call.1} parent=23 // pred_check_branch
          %144 = sbr.rel (%p142) target = $region28
        $region27: #{tpu_custom_call.1} parent=23 // pred_region
          %145 = dma.done %s138, 16384
        $region28: #{tpu_custom_call.1} parent=23 // pred_fallthru
          _
        %s146 = sand.u32 %s40, 1
        %s147 = scalar_lea.sflag [#allocation3], %s146
        %s148 = sand.u32 %s40, 1
        %s149 = smul.addr %s148, 1024
        %s150 = scalar_lea.vmem [#allocation2], %s149
        %p151 = pneg %p53
        %p152 = pneg %p50
        %p153 = pneg %p81
        %p154 = pneg %p78
        %s155 = sand.u32 %s68, 1
        %s156 = scalar_lea.sflag [#allocation4], %s155
        %s157 = sand.u32 %s68, 1
        %s158 = smul.addr %s157, 64
        %s159 = scalar_lea.vmem [#allocation5], %s158
        %s160 = smul.u32 16, %s23
        %s161 = ssub.s32 17, %s160
        %p162 = scmp.lt.s32.totalorder %s161, 16
        %s163 = scalar_select %p162, %s161, 16
        %s164 = smul.u32 1024, %s163
        %s165 = smul.u32 16, %s23
        %s166 = ssub.s32 17, %s165
        %p167 = scmp.lt.s32.totalorder %s166, 16
        %s168 = scalar_select %p167, %s166, 16
        %s169 = smul.u32 64, %s168
        %v170 = vlaneseq
        %v171 = vshrl.u32 %v170, 7
        %v172 = vlaneseq
        %v173 = vand.u32 %v172, 127
        %vm174 = vcmp.eq.s32.totalorder %v171, 0
        %vm175 = vcmp.eq.s32.totalorder %v171, 1
        %v176 = vcvt.s32.f32 %v173
        %v177 = vsel %vm175, %v176, 0.0
        %v178 = vsel %vm174, 1.0, %v177
        %v179 = vld [vmem:[%s141] sm:$0xff]
        %v180 = vld [vmem:[%s141 + $0x8] sm:$0xff]
        %v181 = vld [vmem:[%s141 + $0x10] sm:$0xff]
        %v182 = vld [vmem:[%s141 + $0x18] sm:$0xff]
        %v183 = vld [vmem:[%s141 + $0x80] sm:$0xff]
        %v184 = vld [vmem:[%s141 + $0x88] sm:$0xff]
        %v185 = vld [vmem:[%s141 + $0x90] sm:$0xff]
        %v186 = vld [vmem:[%s141 + $0x98] sm:$0xff]
        %v187 = vmax.f32 %v179, %v183
        %v188 = vrot.slane %v187, 4
        %v189 = vmax.f32 %v187, %v188
        %v190 = vrot.slane %v189, 2
        %v191 = vmax.f32 %v189, %v190
        %v192 = vrot.slane %v191, 1
        %v193 = vmax.f32 %v191, %v192
        %v194 = vmax.f32 %v180, %v184
        %v195 = vrot.slane %v194, 4
        %v196 = vmax.f32 %v194, %v195
        %v197 = vrot.slane %v196, 2
        %v198 = vmax.f32 %v196, %v197
        %v199 = vrot.slane %v198, 1
        %v200 = vmax.f32 %v198, %v199
        %v201 = vmax.f32 %v181, %v185
        %v202 = vrot.slane %v201, 4
        %v203 = vmax.f32 %v201, %v202
        %v204 = vrot.slane %v203, 2
        %v205 = vmax.f32 %v203, %v204
        %v206 = vrot.slane %v205, 1
        %v207 = vmax.f32 %v205, %v206
        %v208 = vmax.f32 %v182, %v186
        %v209 = vrot.slane %v208, 4
        %v210 = vmax.f32 %v208, %v209
        %v211 = vrot.slane %v210, 2
        %v212 = vmax.f32 %v210, %v211
        %v213 = vrot.slane %v212, 1
        %v214 = vmax.f32 %v212, %v213
        %v215 = vsub.f32 %v179, %v193
        %v216 = vsub.f32 %v180, %v200
        %v217 = vsub.f32 %v181, %v207
        %v218 = vsub.f32 %v182, %v214
        %v219 = vsub.f32 %v183, %v193
        %v220 = vsub.f32 %v184, %v200
        %v221 = vsub.f32 %v185, %v207
        %v222 = vsub.f32 %v186, %v214
        %v223 = vmul.f32 %v215, 1.442695
        %v224 = vpow.pop %v223
        %v225 = vmul.f32 %v216, 1.442695
        %v226 = vpow.pop %v225
        %v227 = vmul.f32 %v217, 1.442695
        %v228 = vpow.pop %v227
        %v229 = vmul.f32 %v218, 1.442695
        %v230 = vpow.pop %v229
        %v231 = vmul.f32 %v219, 1.442695
        %v232 = vpow.pop %v231
        %v233 = vmul.f32 %v220, 1.442695
        %v234 = vpow.pop %v233
        %v235 = vmul.f32 %v221, 1.442695
        %v236 = vpow.pop %v235
        %v237 = vmul.f32 %v222, 1.442695
        %v238 = vpow.pop %v237
        %vm239 = vcmask 130048
        %v241 = vsel %vm239, %v178, 0
        %243 = vmatprep.subr.mxu0 0.0
        %244 = vmatpush1.msra.mxu0 0.0
        %245 = vmatprep.subr.mxu0 0.0
        %246 = vmatpush1.msra.mxu0 0.0
        %247 = vmatprep.subr.mxu0 0.0
        %248 = vmatpush1.msra.mxu0 0.0
        %249 = vmatprep.subr.mxu0 0.0
        %250 = vmatpush1.msra.mxu0 0.0
        %251 = vmatprep.subr.mxu0 0.0
        %252 = vmatpush1.msra.mxu0 0.0
        %253 = vmatprep.subr.mxu0 0.0
        %254 = vmatpush1.msra.mxu0 0.0
        %255 = vmatprep.subr.mxu0 0.0
        %256 = vmatpush1.msra.mxu0 0.0
        %257 = vmatprep.subr.mxu0 0.0
        %258 = vmatpush1.msra.mxu0 0.0
        %259 = vmatprep.subr.mxu0 0.0
        %260 = vmatpush1.msra.mxu0 0.0
        %261 = vmatprep.subr.mxu0 0.0
        %262 = vmatpush1.msra.mxu0 0.0
        %263 = vmatprep.subr.mxu0 0.0
        %264 = vmatpush1.msra.mxu0 0.0
        %265 = vmatprep.subr.mxu0 0.0
        %266 = vmatpush1.msra.mxu0 0.0
        %267 = vmatprep.subr.mxu0 0.0
        %268 = vmatpush1.msra.mxu0 0.0
        %269 = vmatprep.subr.mxu0 0.0
        %270 = vmatpush1.msra.mxu0 0.0
        %271 = vmatprep.subr.mxu0 %v234
        %272 = vmatpush1.msra.mxu0 %v232
        %273 = vmatprep.subr.mxu0 %v226
        %274 = vmatpush1.msra.mxu0 %v224
        %275 = vmatprep.subr.mxu0 0.0
        %276 = vmatpush2.msra.mxu0 0.0
        %277 = vmatprep.subr.mxu0 0.0
        %278 = vmatpush2.msra.mxu0 0.0
        %279 = vmatprep.subr.mxu0 0.0
        %280 = vmatpush2.msra.mxu0 0.0
        %281 = vmatprep.subr.mxu0 0.0
        %282 = vmatpush2.msra.mxu0 0.0
        %283 = vmatprep.subr.mxu0 0.0
        %284 = vmatpush2.msra.mxu0 0.0
        %285 = vmatprep.subr.mxu0 0.0
        %286 = vmatpush2.msra.mxu0 0.0
        %287 = vmatprep.subr.mxu0 0.0
        %288 = vmatpush2.msra.mxu0 0.0
        %289 = vmatprep.subr.mxu0 0.0
        %290 = vmatpush2.msra.mxu0 0.0
        %291 = vmatprep.subr.mxu0 0.0
        %292 = vmatpush2.msra.mxu0 0.0
        %293 = vmatprep.subr.mxu0 0.0
        %294 = vmatpush2.msra.mxu0 0.0
        %295 = vmatprep.subr.mxu0 0.0
        %296 = vmatpush2.msra.mxu0 0.0
        %297 = vmatprep.subr.mxu0 0.0
        %298 = vmatpush2.msra.mxu0 0.0
        %299 = vmatprep.subr.mxu0 0.0
        %300 = vmatpush2.msra.mxu0 0.0
        %301 = vmatprep.subr.mxu0 0.0
        %302 = vmatpush2.msra.mxu0 0.0
        %303 = vmatprep.subr.mxu0 0.0
        %304 = vmatpush2.msra.mxu0 0.0
        %305 = vmatprep.subr.mxu0 0.0
        %306 = vmatpush2.msra.mxu0 0.0
        %307 = vmatprep.mubr.f32.mxu0 0.0
        %308 = vmatmul.mubr.f32.gmra.mxu0 %v241
        %v309 = vpop.f32.mrf.mxu0
        %v310 = vadd.f32 0.0, %v309
        %v311 = vpop.f32.mrf.mxu0
        %v312 = vadd.f32 0.0, %v311
        %313 = vdwg.mxu0
        %314 = vmatprep.subr.mxu0 0.0
        %315 = vmatpush1.msra.mxu0 0.0
        %316 = vmatprep.subr.mxu0 0.0
        %317 = vmatpush1.msra.mxu0 0.0
        %318 = vmatprep.subr.mxu0 0.0
        %319 = vmatpush1.msra.mxu0 0.0
        %320 = vmatprep.subr.mxu0 0.0
        %321 = vmatpush1.msra.mxu0 0.0
        %322 = vmatprep.subr.mxu0 0.0
        %323 = vmatpush1.msra.mxu0 0.0
        %324 = vmatprep.subr.mxu0 0.0
        %325 = vmatpush1.msra.mxu0 0.0
        %326 = vmatprep.subr.mxu0 0.0
        %327 = vmatpush1.msra.mxu0 0.0
        %328 = vmatprep.subr.mxu0 0.0
        %329 = vmatpush1.msra.mxu0 0.0
        %330 = vmatprep.subr.mxu0 0.0
        %331 = vmatpush1.msra.mxu0 0.0
        %332 = vmatprep.subr.mxu0 0.0
        %333 = vmatpush1.msra.mxu0 0.0
        %334 = vmatprep.subr.mxu0 0.0
        %335 = vmatpush1.msra.mxu0 0.0
        %336 = vmatprep.subr.mxu0 0.0
        %337 = vmatpush1.msra.mxu0 0.0
        %338 = vmatprep.subr.mxu0 0.0
        %339 = vmatpush1.msra.mxu0 0.0
        %340 = vmatprep.subr.mxu0 0.0
        %341 = vmatpush1.msra.mxu0 0.0
        %342 = vmatprep.subr.mxu0 %v238
        %343 = vmatpush1.msra.mxu0 %v236
        %344 = vmatprep.subr.mxu0 %v230
        %345 = vmatpush1.msra.mxu0 %v228
        %346 = vmatprep.subr.mxu0 0.0
        %347 = vmatpush2.msra.mxu0 0.0
        %348 = vmatprep.subr.mxu0 0.0
        %349 = vmatpush2.msra.mxu0 0.0
        %350 = vmatprep.subr.mxu0 0.0
        %351 = vmatpush2.msra.mxu0 0.0
        %352 = vmatprep.subr.mxu0 0.0
        %353 = vmatpush2.msra.mxu0 0.0
        %354 = vmatprep.subr.mxu0 0.0
        %355 = vmatpush2.msra.mxu0 0.0
        %356 = vmatprep.subr.mxu0 0.0
        %357 = vmatpush2.msra.mxu0 0.0
        %358 = vmatprep.subr.mxu0 0.0
        %359 = vmatpush2.msra.mxu0 0.0
        %360 = vmatprep.subr.mxu0 0.0
        %361 = vmatpush2.msra.mxu0 0.0
        %362 = vmatprep.subr.mxu0 0.0
        %363 = vmatpush2.msra.mxu0 0.0
        %364 = vmatprep.subr.mxu0 0.0
        %365 = vmatpush2.msra.mxu0 0.0
        %366 = vmatprep.subr.mxu0 0.0
        %367 = vmatpush2.msra.mxu0 0.0
        %368 = vmatprep.subr.mxu0 0.0
        %369 = vmatpush2.msra.mxu0 0.0
        %370 = vmatprep.subr.mxu0 0.0
        %371 = vmatpush2.msra.mxu0 0.0
        %372 = vmatprep.subr.mxu0 0.0
        %373 = vmatpush2.msra.mxu0 0.0
        %374 = vmatprep.subr.mxu0 0.0
        %375 = vmatpush2.msra.mxu0 0.0
        %376 = vmatprep.subr.mxu0 0.0
        %377 = vmatpush2.msra.mxu0 0.0
        %378 = vmatprep.mubr.f32.mxu0 0.0
        %379 = vmatmul.mubr.f32.gmra.mxu0 %v241
        %v380 = vpop.f32.mrf.mxu0
        %v381 = vadd.f32 0.0, %v380
        %v382 = vpop.f32.mrf.mxu0
        %v383 = vadd.f32 0.0, %v382
        %384 = vdwg.mxu0
        %v385 = vld [vmem:[%s141 + $0x100] sm:$0xff]
        %v386 = vld [vmem:[%s141 + $0x108] sm:$0xff]
        %v387 = vld [vmem:[%s141 + $0x110] sm:$0xff]
        %v388 = vld [vmem:[%s141 + $0x118] sm:$0xff]
        %v389 = vld [vmem:[%s141 + $0x180] sm:$0xff]
        %v390 = vld [vmem:[%s141 + $0x188] sm:$0xff]
        %v391 = vld [vmem:[%s141 + $0x190] sm:$0xff]
        %v392 = vld [vmem:[%s141 + $0x198] sm:$0xff]
        %v393 = vmax.f32 %v385, %v389
        %v394 = vrot.slane %v393, 4
        %v395 = vmax.f32 %v393, %v394
        %v396 = vrot.slane %v395, 2
        %v397 = vmax.f32 %v395, %v396
        %v398 = vrot.slane %v397, 1
        %v399 = vmax.f32 %v397, %v398
        %v400 = vmax.f32 %v386, %v390
        %v401 = vrot.slane %v400, 4
        %v402 = vmax.f32 %v400, %v401
        %v403 = vrot.slane %v402, 2
        %v404 = vmax.f32 %v402, %v403
        %v405 = vrot.slane %v404, 1
        %v406 = vmax.f32 %v404, %v405
        %v407 = vmax.f32 %v387, %v391
        %v408 = vrot.slane %v407, 4
        %v409 = vmax.f32 %v407, %v408
        %v410 = vrot.slane %v409, 2
        %v411 = vmax.f32 %v409, %v410
        %v412 = vrot.slane %v411, 1
        %v413 = vmax.f32 %v411, %v412
        %v414 = vmax.f32 %v388, %v392
        %v415 = vrot.slane %v414, 4
        %v416 = vmax.f32 %v414, %v415
        %v417 = vrot.slane %v416, 2
        %v418 = vmax.f32 %v416, %v417
        %v419 = vrot.slane %v418, 1
        %v420 = vmax.f32 %v418, %v419
        %v421 = vsub.f32 %v385, %v399
        %v422 = vsub.f32 %v386, %v406
        %v423 = vsub.f32 %v387, %v413
        %v424 = vsub.f32 %v388, %v420
        %v425 = vsub.f32 %v389, %v399
        %v426 = vsub.f32 %v390, %v406
        %v427 = vsub.f32 %v391, %v413
        %v428 = vsub.f32 %v392, %v420
        %v429 = vmul.f32 %v421, 1.442695
        %v430 = vpow.pop %v429
        %v431 = vmul.f32 %v422, 1.442695
        %v432 = vpow.pop %v431
        %v433 = vmul.f32 %v423, 1.442695
        %v434 = vpow.pop %v433
        %v435 = vmul.f32 %v424, 1.442695
        %v436 = vpow.pop %v435
        %v437 = vmul.f32 %v425, 1.442695
        %v438 = vpow.pop %v437
        %v439 = vmul.f32 %v426, 1.442695
        %v440 = vpow.pop %v439
        %v441 = vmul.f32 %v427, 1.442695
        %v442 = vpow.pop %v441
        %v443 = vmul.f32 %v428, 1.442695
        %v444 = vpow.pop %v443
        %445 = vmatprep.subr.mxu0 0.0
        %446 = vmatpush1.msra.mxu0 0.0
        %447 = vmatprep.subr.mxu0 0.0
        %448 = vmatpush1.msra.mxu0 0.0
        %449 = vmatprep.subr.mxu0 0.0
        %450 = vmatpush1.msra.mxu0 0.0
        %451 = vmatprep.subr.mxu0 0.0
        %452 = vmatpush1.msra.mxu0 0.0
        %453 = vmatprep.subr.mxu0 0.0
        %454 = vmatpush1.msra.mxu0 0.0
        %455 = vmatprep.subr.mxu0 0.0
        %456 = vmatpush1.msra.mxu0 0.0
        %457 = vmatprep.subr.mxu0 0.0
        %458 = vmatpush1.msra.mxu0 0.0
        %459 = vmatprep.subr.mxu0 0.0
        %460 = vmatpush1.msra.mxu0 0.0
        %461 = vmatprep.subr.mxu0 0.0
        %462 = vmatpush1.msra.mxu0 0.0
        %463 = vmatprep.subr.mxu0 0.0
        %464 = vmatpush1.msra.mxu0 0.0
        %465 = vmatprep.subr.mxu0 0.0
        %466 = vmatpush1.msra.mxu0 0.0
        %467 = vmatprep.subr.mxu0 0.0
        %468 = vmatpush1.msra.mxu0 0.0
        %469 = vmatprep.subr.mxu0 0.0
        %470 = vmatpush1.msra.mxu0 0.0
        %471 = vmatprep.subr.mxu0 0.0
        %472 = vmatpush1.msra.mxu0 0.0
        %473 = vmatprep.subr.mxu0 %v440
        %474 = vmatpush1.msra.mxu0 %v438
        %475 = vmatprep.subr.mxu0 %v432
        %476 = vmatpush1.msra.mxu0 %v430
        %477 = vmatprep.subr.mxu0 0.0
        %478 = vmatpush2.msra.mxu0 0.0
        %479 = vmatprep.subr.mxu0 0.0
        %480 = vmatpush2.msra.mxu0 0.0
        %481 = vmatprep.subr.mxu0 0.0
        %482 = vmatpush2.msra.mxu0 0.0
        %483 = vmatprep.subr.mxu0 0.0
        %484 = vmatpush2.msra.mxu0 0.0
        %485 = vmatprep.subr.mxu0 0.0
        %486 = vmatpush2.msra.mxu0 0.0
        %487 = vmatprep.subr.mxu0 0.0
        %488 = vmatpush2.msra.mxu0 0.0
        %489 = vmatprep.subr.mxu0 0.0
        %490 = vmatpush2.msra.mxu0 0.0
        %491 = vmatprep.subr.mxu0 0.0
        %492 = vmatpush2.msra.mxu0 0.0
        %493 = vmatprep.subr.mxu0 0.0
        %494 = vmatpush2.msra.mxu0 0.0
        %495 = vmatprep.subr.mxu0 0.0
        %496 = vmatpush2.msra.mxu0 0.0
        %497 = vmatprep.subr.mxu0 0.0
        %498 = vmatpush2.msra.mxu0 0.0
        %499 = vmatprep.subr.mxu0 0.0
        %500 = vmatpush2.msra.mxu0 0.0
        %501 = vmatprep.subr.mxu0 0.0
        %502 = vmatpush2.msra.mxu0 0.0
        %503 = vmatprep.subr.mxu0 0.0
        %504 = vmatpush2.msra.mxu0 0.0
        %505 = vmatprep.subr.mxu0 0.0
        %506 = vmatpush2.msra.mxu0 0.0
        %507 = vmatprep.subr.mxu0 0.0
        %508 = vmatpush2.msra.mxu0 0.0
        %509 = vmatprep.mubr.f32.mxu0 0.0
        %510 = vmatmul.mubr.f32.gmra.mxu0 %v241
        %v511 = vpop.f32.mrf.mxu0
        %v512 = vadd.f32 0.0, %v511
        %v513 = vpop.f32.mrf.mxu0
        %v514 = vadd.f32 0.0, %v513
        %515 = vdwg.mxu0
        %516 = vmatprep.subr.mxu0 0.0
        %517 = vmatpush1.msra.mxu0 0.0
        %518 = vmatprep.subr.mxu0 0.0
        %519 = vmatpush1.msra.mxu0 0.0
        %520 = vmatprep.subr.mxu0 0.0
        %521 = vmatpush1.msra.mxu0 0.0
        %522 = vmatprep.subr.mxu0 0.0
        %523 = vmatpush1.msra.mxu0 0.0
        %524 = vmatprep.subr.mxu0 0.0
        %525 = vmatpush1.msra.mxu0 0.0
        %526 = vmatprep.subr.mxu0 0.0
        %527 = vmatpush1.msra.mxu0 0.0
        %528 = vmatprep.subr.mxu0 0.0
        %529 = vmatpush1.msra.mxu0 0.0
        %530 = vmatprep.subr.mxu0 0.0
        %531 = vmatpush1.msra.mxu0 0.0
        %532 = vmatprep.subr.mxu0 0.0
        %533 = vmatpush1.msra.mxu0 0.0
        %534 = vmatprep.subr.mxu0 0.0
        %535 = vmatpush1.msra.mxu0 0.0
        %536 = vmatprep.subr.mxu0 0.0
        %537 = vmatpush1.msra.mxu0 0.0
        %538 = vmatprep.subr.mxu0 0.0
        %539 = vmatpush1.msra.mxu0 0.0
        %540 = vmatprep.subr.mxu0 0.0
        %541 = vmatpush1.msra.mxu0 0.0
        %542 = vmatprep.subr.mxu0 0.0
        %543 = vmatpush1.msra.mxu0 0.0
        %544 = vmatprep.subr.mxu0 %v444
        %545 = vmatpush1.msra.mxu0 %v442
        %546 = vmatprep.subr.mxu0 %v436
        %547 = vmatpush1.msra.mxu0 %v434
        %548 = vmatprep.subr.mxu0 0.0
        %549 = vmatpush2.msra.mxu0 0.0
        %550 = vmatprep.subr.mxu0 0.0
        %551 = vmatpush2.msra.mxu0 0.0
        %552 = vmatprep.subr.mxu0 0.0
        %553 = vmatpush2.msra.mxu0 0.0
        %554 = vmatprep.subr.mxu0 0.0
        %555 = vmatpush2.msra.mxu0 0.0
        %556 = vmatprep.subr.mxu0 0.0
        %557 = vmatpush2.msra.mxu0 0.0
        %558 = vmatprep.subr.mxu0 0.0
        %559 = vmatpush2.msra.mxu0 0.0
        %560 = vmatprep.subr.mxu0 0.0
        %561 = vmatpush2.msra.mxu0 0.0
        %562 = vmatprep.subr.mxu0 0.0
        %563 = vmatpush2.msra.mxu0 0.0
        %564 = vmatprep.subr.mxu0 0.0
        %565 = vmatpush2.msra.mxu0 0.0
        %566 = vmatprep.subr.mxu0 0.0
        %567 = vmatpush2.msra.mxu0 0.0
        %568 = vmatprep.subr.mxu0 0.0
        %569 = vmatpush2.msra.mxu0 0.0
        %570 = vmatprep.subr.mxu0 0.0
        %571 = vmatpush2.msra.mxu0 0.0
        %572 = vmatprep.subr.mxu0 0.0
        %573 = vmatpush2.msra.mxu0 0.0
        %574 = vmatprep.subr.mxu0 0.0
        %575 = vmatpush2.msra.mxu0 0.0
        %576 = vmatprep.subr.mxu0 0.0
        %577 = vmatpush2.msra.mxu0 0.0
        %578 = vmatprep.subr.mxu0 0.0
        %579 = vmatpush2.msra.mxu0 0.0
        %580 = vmatprep.mubr.f32.mxu0 0.0
        %581 = vmatmul.mubr.f32.gmra.mxu0 %v241
        %v582 = vpop.f32.mrf.mxu0
        %v583 = vadd.f32 0.0, %v582
        %v584 = vpop.f32.mrf.mxu0
        %v585 = vadd.f32 0.0, %v584
        %586 = vdwg.mxu0
        %v587 = vld [vmem:[%s141 + $0x200] sm:$0xff]
        %v588 = vld [vmem:[%s141 + $0x208] sm:$0xff]
        %v589 = vld [vmem:[%s141 + $0x210] sm:$0xff]
        %v590 = vld [vmem:[%s141 + $0x218] sm:$0xff]
        %v591 = vld [vmem:[%s141 + $0x280] sm:$0xff]
        %v592 = vld [vmem:[%s141 + $0x288] sm:$0xff]
        %v593 = vld [vmem:[%s141 + $0x290] sm:$0xff]
        %v594 = vld [vmem:[%s141 + $0x298] sm:$0xff]
        %v595 = vmax.f32 %v587, %v591
        %v596 = vrot.slane %v595, 4
        %v597 = vmax.f32 %v595, %v596
        %v598 = vrot.slane %v597, 2
        %v599 = vmax.f32 %v597, %v598
        %v600 = vrot.slane %v599, 1
        %v601 = vmax.f32 %v599, %v600
        %v602 = vmax.f32 %v588, %v592
        %v603 = vrot.slane %v602, 4
        %v604 = vmax.f32 %v602, %v603
        %v605 = vrot.slane %v604, 2
        %v606 = vmax.f32 %v604, %v605
        %v607 = vrot.slane %v606, 1
        %v608 = vmax.f32 %v606, %v607
        %v609 = vmax.f32 %v589, %v593
        %v610 = vrot.slane %v609, 4
        %v611 = vmax.f32 %v609, %v610
        %v612 = vrot.slane %v611, 2
        %v613 = vmax.f32 %v611, %v612
        %v614 = vrot.slane %v613, 1
        %v615 = vmax.f32 %v613, %v614
        %v616 = vmax.f32 %v590, %v594
        %v617 = vrot.slane %v616, 4
        %v618 = vmax.f32 %v616, %v617
        %v619 = vrot.slane %v618, 2
        %v620 = vmax.f32 %v618, %v619
        %v621 = vrot.slane %v620, 1
        %v622 = vmax.f32 %v620, %v621
        %v623 = vsub.f32 %v587, %v601
        %v624 = vsub.f32 %v588, %v608
        %v625 = vsub.f32 %v589, %v615
        %v626 = vsub.f32 %v590, %v622
        %v627 = vsub.f32 %v591, %v601
        %v628 = vsub.f32 %v592, %v608
        %v629 = vsub.f32 %v593, %v615
        %v630 = vsub.f32 %v594, %v622
        %v631 = vmul.f32 %v623, 1.442695
        %v632 = vpow.pop %v631
        %v633 = vmul.f32 %v624, 1.442695
        %v634 = vpow.pop %v633
        %v635 = vmul.f32 %v625, 1.442695
        %v636 = vpow.pop %v635
        %v637 = vmul.f32 %v626, 1.442695
        %v638 = vpow.pop %v637
        %v639 = vmul.f32 %v627, 1.442695
        %v640 = vpow.pop %v639
        %v641 = vmul.f32 %v628, 1.442695
        %v642 = vpow.pop %v641
        %v643 = vmul.f32 %v629, 1.442695
        %v644 = vpow.pop %v643
        %v645 = vmul.f32 %v630, 1.442695
        %v646 = vpow.pop %v645
        %647 = vmatprep.subr.mxu0 0.0
        %648 = vmatpush1.msra.mxu0 0.0
        %649 = vmatprep.subr.mxu0 0.0
        %650 = vmatpush1.msra.mxu0 0.0
        %651 = vmatprep.subr.mxu0 0.0
        %652 = vmatpush1.msra.mxu0 0.0
        %653 = vmatprep.subr.mxu0 0.0
        %654 = vmatpush1.msra.mxu0 0.0
        %655 = vmatprep.subr.mxu0 0.0
        %656 = vmatpush1.msra.mxu0 0.0
        %657 = vmatprep.subr.mxu0 0.0
        %658 = vmatpush1.msra.mxu0 0.0
        %659 = vmatprep.subr.mxu0 0.0
        %660 = vmatpush1.msra.mxu0 0.0
        %661 = vmatprep.subr.mxu0 0.0
        %662 = vmatpush1.msra.mxu0 0.0
        %663 = vmatprep.subr.mxu0 0.0
        %664 = vmatpush1.msra.mxu0 0.0
        %665 = vmatprep.subr.mxu0 0.0
        %666 = vmatpush1.msra.mxu0 0.0
        %667 = vmatprep.subr.mxu0 0.0
        %668 = vmatpush1.msra.mxu0 0.0
        %669 = vmatprep.subr.mxu0 0.0
        %670 = vmatpush1.msra.mxu0 0.0
        %671 = vmatprep.subr.mxu0 0.0
        %672 = vmatpush1.msra.mxu0 0.0
        %673 = vmatprep.subr.mxu0 0.0
        %674 = vmatpush1.msra.mxu0 0.0
        %675 = vmatprep.subr.mxu0 %v642
        %676 = vmatpush1.msra.mxu0 %v640
        %677 = vmatprep.subr.mxu0 %v634
        %678 = vmatpush1.msra.mxu0 %v632
        %679 = vmatprep.subr.mxu0 0.0
        %680 = vmatpush2.msra.mxu0 0.0
        %681 = vmatprep.subr.mxu0 0.0
        %682 = vmatpush2.msra.mxu0 0.0
        %683 = vmatprep.subr.mxu0 0.0
        %684 = vmatpush2.msra.mxu0 0.0
        %685 = vmatprep.subr.mxu0 0.0
        %686 = vmatpush2.msra.mxu0 0.0
        %687 = vmatprep.subr.mxu0 0.0
        %688 = vmatpush2.msra.mxu0 0.0
        %689 = vmatprep.subr.mxu0 0.0
        %690 = vmatpush2.msra.mxu0 0.0
        %691 = vmatprep.subr.mxu0 0.0
        %692 = vmatpush2.msra.mxu0 0.0
        %693 = vmatprep.subr.mxu0 0.0
        %694 = vmatpush2.msra.mxu0 0.0
        %695 = vmatprep.subr.mxu0 0.0
        %696 = vmatpush2.msra.mxu0 0.0
        %697 = vmatprep.subr.mxu0 0.0
        %698 = vmatpush2.msra.mxu0 0.0
        %699 = vmatprep.subr.mxu0 0.0
        %700 = vmatpush2.msra.mxu0 0.0
        %701 = vmatprep.subr.mxu0 0.0
        %702 = vmatpush2.msra.mxu0 0.0
        %703 = vmatprep.subr.mxu0 0.0
        %704 = vmatpush2.msra.mxu0 0.0
        %705 = vmatprep.subr.mxu0 0.0
        %706 = vmatpush2.msra.mxu0 0.0
        %707 = vmatprep.subr.mxu0 0.0
        %708 = vmatpush2.msra.mxu0 0.0
        %709 = vmatprep.subr.mxu0 0.0
        %710 = vmatpush2.msra.mxu0 0.0
        %711 = vmatprep.mubr.f32.mxu0 0.0
        %712 = vmatmul.mubr.f32.gmra.mxu0 %v241
        %v713 = vpop.f32.mrf.mxu0
        %v714 = vadd.f32 0.0, %v713
        %v715 = vpop.f32.mrf.mxu0
        %v716 = vadd.f32 0.0, %v715
        %717 = vdwg.mxu0
        %718 = vmatprep.subr.mxu0 0.0
        %719 = vmatpush1.msra.mxu0 0.0
        %720 = vmatprep.subr.mxu0 0.0
        %721 = vmatpush1.msra.mxu0 0.0
        %722 = vmatprep.subr.mxu0 0.0
        %723 = vmatpush1.msra.mxu0 0.0
        %724 = vmatprep.subr.mxu0 0.0
        %725 = vmatpush1.msra.mxu0 0.0
        %726 = vmatprep.subr.mxu0 0.0
        %727 = vmatpush1.msra.mxu0 0.0
        %728 = vmatprep.subr.mxu0 0.0
        %729 = vmatpush1.msra.mxu0 0.0
        %730 = vmatprep.subr.mxu0 0.0
        %731 = vmatpush1.msra.mxu0 0.0
        %732 = vmatprep.subr.mxu0 0.0
        %733 = vmatpush1.msra.mxu0 0.0
        %734 = vmatprep.subr.mxu0 0.0
        %735 = vmatpush1.msra.mxu0 0.0
        %736 = vmatprep.subr.mxu0 0.0
        %737 = vmatpush1.msra.mxu0 0.0
        %738 = vmatprep.subr.mxu0 0.0
        %739 = vmatpush1.msra.mxu0 0.0
        %740 = vmatprep.subr.mxu0 0.0
        %741 = vmatpush1.msra.mxu0 0.0
        %742 = vmatprep.subr.mxu0 0.0
        %743 = vmatpush1.msra.mxu0 0.0
        %744 = vmatprep.subr.mxu0 0.0
        %745 = vmatpush1.msra.mxu0 0.0
        %746 = vmatprep.subr.mxu0 %v646
        %747 = vmatpush1.msra.mxu0 %v644
        %748 = vmatprep.subr.mxu0 %v638
        %749 = vmatpush1.msra.mxu0 %v636
        %750 = vmatprep.subr.mxu0 0.0
        %751 = vmatpush2.msra.mxu0 0.0
        %752 = vmatprep.subr.mxu0 0.0
        %753 = vmatpush2.msra.mxu0 0.0
        %754 = vmatprep.subr.mxu0 0.0
        %755 = vmatpush2.msra.mxu0 0.0
        %756 = vmatprep.subr.mxu0 0.0
        %757 = vmatpush2.msra.mxu0 0.0
        %758 = vmatprep.subr.mxu0 0.0
        %759 = vmatpush2.msra.mxu0 0.0
        %760 = vmatprep.subr.mxu0 0.0
        %761 = vmatpush2.msra.mxu0 0.0
        %762 = vmatprep.subr.mxu0 0.0
        %763 = vmatpush2.msra.mxu0 0.0
        %764 = vmatprep.subr.mxu0 0.0
        %765 = vmatpush2.msra.mxu0 0.0
        %766 = vmatprep.subr.mxu0 0.0
        %767 = vmatpush2.msra.mxu0 0.0
        %768 = vmatprep.subr.mxu0 0.0
        %769 = vmatpush2.msra.mxu0 0.0
        %770 = vmatprep.subr.mxu0 0.0
        %771 = vmatpush2.msra.mxu0 0.0
        %772 = vmatprep.subr.mxu0 0.0
        %773 = vmatpush2.msra.mxu0 0.0
        %774 = vmatprep.subr.mxu0 0.0
        %775 = vmatpush2.msra.mxu0 0.0
        %776 = vmatprep.subr.mxu0 0.0
        %777 = vmatpush2.msra.mxu0 0.0
        %778 = vmatprep.subr.mxu0 0.0
        %779 = vmatpush2.msra.mxu0 0.0
        %780 = vmatprep.subr.mxu0 0.0
        %781 = vmatpush2.msra.mxu0 0.0
        %782 = vmatprep.mubr.f32.mxu0 0.0
        %783 = vmatmul.mubr.f32.gmra.mxu0 %v241
        %v784 = vpop.f32.mrf.mxu0
        %v785 = vadd.f32 0.0, %v784
        %v786 = vpop.f32.mrf.mxu0
        %v787 = vadd.f32 0.0, %v786
        %788 = vdwg.mxu0
        %v789 = vld [vmem:[%s141 + $0x300] sm:$0xff]
        %v790 = vld [vmem:[%s141 + $0x308] sm:$0xff]
        %v791 = vld [vmem:[%s141 + $0x310] sm:$0xff]
        %v792 = vld [vmem:[%s141 + $0x318] sm:$0xff]
        %v793 = vld [vmem:[%s141 + $0x380] sm:$0xff]
        %v794 = vld [vmem:[%s141 + $0x388] sm:$0xff]
        %v795 = vld [vmem:[%s141 + $0x390] sm:$0xff]
        %v796 = vld [vmem:[%s141 + $0x398] sm:$0xff]
        %v797 = vmax.f32 %v789, %v793
        %v798 = vrot.slane %v797, 4
        %v799 = vmax.f32 %v797, %v798
        %v800 = vrot.slane %v799, 2
        %v801 = vmax.f32 %v799, %v800
        %v802 = vrot.slane %v801, 1
        %v803 = vmax.f32 %v801, %v802
        %v804 = vmax.f32 %v790, %v794
        %v805 = vrot.slane %v804, 4
        %v806 = vmax.f32 %v804, %v805
        %v807 = vrot.slane %v806, 2
        %v808 = vmax.f32 %v806, %v807
        %v809 = vrot.slane %v808, 1
        %v810 = vmax.f32 %v808, %v809
        %v811 = vmax.f32 %v791, %v795
        %v812 = vrot.slane %v811, 4
        %v813 = vmax.f32 %v811, %v812
        %v814 = vrot.slane %v813, 2
        %v815 = vmax.f32 %v813, %v814
        %v816 = vrot.slane %v815, 1
        %v817 = vmax.f32 %v815, %v816
        %v818 = vmax.f32 %v792, %v796
        %v819 = vrot.slane %v818, 4
        %v820 = vmax.f32 %v818, %v819
        %v821 = vrot.slane %v820, 2
        %v822 = vmax.f32 %v820, %v821
        %v823 = vrot.slane %v822, 1
        %v824 = vmax.f32 %v822, %v823
        %v825 = vsub.f32 %v789, %v803
        %v826 = vsub.f32 %v790, %v810
        %v827 = vsub.f32 %v791, %v817
        %v828 = vsub.f32 %v792, %v824
        %v829 = vsub.f32 %v793, %v803
        %v830 = vsub.f32 %v794, %v810
        %v831 = vsub.f32 %v795, %v817
        %v832 = vsub.f32 %v796, %v824
        %v833 = vmul.f32 %v825, 1.442695
        %v834 = vpow.pop %v833
        %v835 = vmul.f32 %v826, 1.442695
        %v836 = vpow.pop %v835
        %v837 = vmul.f32 %v827, 1.442695
        %v838 = vpow.pop %v837
        %v839 = vmul.f32 %v828, 1.442695
        %v840 = vpow.pop %v839
        %v841 = vmul.f32 %v829, 1.442695
        %v842 = vpow.pop %v841
        %v843 = vmul.f32 %v830, 1.442695
        %v844 = vpow.pop %v843
        %v845 = vmul.f32 %v831, 1.442695
        %v846 = vpow.pop %v845
        %v847 = vmul.f32 %v832, 1.442695
        %v848 = vpow.pop %v847
        %849 = vmatprep.subr.mxu0 0.0
        %850 = vmatpush1.msra.mxu0 0.0
        %851 = vmatprep.subr.mxu0 0.0
        %852 = vmatpush1.msra.mxu0 0.0
        %853 = vmatprep.subr.mxu0 0.0
        %854 = vmatpush1.msra.mxu0 0.0
        %855 = vmatprep.subr.mxu0 0.0
        %856 = vmatpush1.msra.mxu0 0.0
        %857 = vmatprep.subr.mxu0 0.0
        %858 = vmatpush1.msra.mxu0 0.0
        %859 = vmatprep.subr.mxu0 0.0
        %860 = vmatpush1.msra.mxu0 0.0
        %861 = vmatprep.subr.mxu0 0.0
        %862 = vmatpush1.msra.mxu0 0.0
        %863 = vmatprep.subr.mxu0 0.0
        %864 = vmatpush1.msra.mxu0 0.0
        %865 = vmatprep.subr.mxu0 0.0
        %866 = vmatpush1.msra.mxu0 0.0
        %867 = vmatprep.subr.mxu0 0.0
        %868 = vmatpush1.msra.mxu0 0.0
        %869 = vmatprep.subr.mxu0 0.0
        %870 = vmatpush1.msra.mxu0 0.0
        %871 = vmatprep.subr.mxu0 0.0
        %872 = vmatpush1.msra.mxu0 0.0
        %873 = vmatprep.subr.mxu0 0.0
        %874 = vmatpush1.msra.mxu0 0.0
        %875 = vmatprep.subr.mxu0 0.0
        %876 = vmatpush1.msra.mxu0 0.0
        %877 = vmatprep.subr.mxu0 %v844
        %878 = vmatpush1.msra.mxu0 %v842
        %879 = vmatprep.subr.mxu0 %v836
        %880 = vmatpush1.msra.mxu0 %v834
        %881 = vmatprep.subr.mxu0 0.0
        %882 = vmatpush2.msra.mxu0 0.0
        %883 = vmatprep.subr.mxu0 0.0
        %884 = vmatpush2.msra.mxu0 0.0
        %885 = vmatprep.subr.mxu0 0.0
        %886 = vmatpush2.msra.mxu0 0.0
        %887 = vmatprep.subr.mxu0 0.0
        %888 = vmatpush2.msra.mxu0 0.0
        %889 = vmatprep.subr.mxu0 0.0
        %890 = vmatpush2.msra.mxu0 0.0
        %891 = vmatprep.subr.mxu0 0.0
        %892 = vmatpush2.msra.mxu0 0.0
        %893 = vmatprep.subr.mxu0 0.0
        %894 = vmatpush2.msra.mxu0 0.0
        %895 = vmatprep.subr.mxu0 0.0
        %896 = vmatpush2.msra.mxu0 0.0
        %897 = vmatprep.subr.mxu0 0.0
        %898 = vmatpush2.msra.mxu0 0.0
        %899 = vmatprep.subr.mxu0 0.0
        %900 = vmatpush2.msra.mxu0 0.0
        %901 = vmatprep.subr.mxu0 0.0
        %902 = vmatpush2.msra.mxu0 0.0
        %903 = vmatprep.subr.mxu0 0.0
        %904 = vmatpush2.msra.mxu0 0.0
        %905 = vmatprep.subr.mxu0 0.0
        %906 = vmatpush2.msra.mxu0 0.0
        %907 = vmatprep.subr.mxu0 0.0
        %908 = vmatpush2.msra.mxu0 0.0
        %909 = vmatprep.subr.mxu0 0.0
        %910 = vmatpush2.msra.mxu0 0.0
        %911 = vmatprep.subr.mxu0 0.0
        %912 = vmatpush2.msra.mxu0 0.0
        %913 = vmatprep.mubr.f32.mxu0 0.0
        %914 = vmatmul.mubr.f32.gmra.mxu0 %v241
        %v915 = vpop.f32.mrf.mxu0
        %v916 = vadd.f32 0.0, %v915
        %v917 = vpop.f32.mrf.mxu0
        %v918 = vadd.f32 0.0, %v917
        %919 = vdwg.mxu0
        %920 = vmatprep.subr.mxu0 0.0
        %921 = vmatpush1.msra.mxu0 0.0
        %922 = vmatprep.subr.mxu0 0.0
        %923 = vmatpush1.msra.mxu0 0.0
        %924 = vmatprep.subr.mxu0 0.0
        %925 = vmatpush1.msra.mxu0 0.0
        %926 = vmatprep.subr.mxu0 0.0
        %927 = vmatpush1.msra.mxu0 0.0
        %928 = vmatprep.subr.mxu0 0.0
        %929 = vmatpush1.msra.mxu0 0.0
        %930 = vmatprep.subr.mxu0 0.0
        %931 = vmatpush1.msra.mxu0 0.0
        %932 = vmatprep.subr.mxu0 0.0
        %933 = vmatpush1.msra.mxu0 0.0
        %934 = vmatprep.subr.mxu0 0.0
        %935 = vmatpush1.msra.mxu0 0.0
        %936 = vmatprep.subr.mxu0 0.0
        %937 = vmatpush1.msra.mxu0 0.0
        %938 = vmatprep.subr.mxu0 0.0
        %939 = vmatpush1.msra.mxu0 0.0
        %940 = vmatprep.subr.mxu0 0.0
        %941 = vmatpush1.msra.mxu0 0.0
        %942 = vmatprep.subr.mxu0 0.0
        %943 = vmatpush1.msra.mxu0 0.0
        %944 = vmatprep.subr.mxu0 0.0
        %945 = vmatpush1.msra.mxu0 0.0
        %946 = vmatprep.subr.mxu0 0.0
        %947 = vmatpush1.msra.mxu0 0.0
        %948 = vmatprep.subr.mxu0 %v848
        %949 = vmatpush1.msra.mxu0 %v846
        %950 = vmatprep.subr.mxu0 %v840
        %951 = vmatpush1.msra.mxu0 %v838
        %952 = vmatprep.subr.mxu0 0.0
        %953 = vmatpush2.msra.mxu0 0.0
        %954 = vmatprep.subr.mxu0 0.0
        %955 = vmatpush2.msra.mxu0 0.0
        %956 = vmatprep.subr.mxu0 0.0
        %957 = vmatpush2.msra.mxu0 0.0
        %958 = vmatprep.subr.mxu0 0.0
        %959 = vmatpush2.msra.mxu0 0.0
        %960 = vmatprep.subr.mxu0 0.0
        %961 = vmatpush2.msra.mxu0 0.0
        %962 = vmatprep.subr.mxu0 0.0
        %963 = vmatpush2.msra.mxu0 0.0
        %964 = vmatprep.subr.mxu0 0.0
        %965 = vmatpush2.msra.mxu0 0.0
        %966 = vmatprep.subr.mxu0 0.0
        %967 = vmatpush2.msra.mxu0 0.0
        %968 = vmatprep.subr.mxu0 0.0
        %969 = vmatpush2.msra.mxu0 0.0
        %970 = vmatprep.subr.mxu0 0.0
        %971 = vmatpush2.msra.mxu0 0.0
        %972 = vmatprep.subr.mxu0 0.0
        %973 = vmatpush2.msra.mxu0 0.0
        %974 = vmatprep.subr.mxu0 0.0
        %975 = vmatpush2.msra.mxu0 0.0
        %976 = vmatprep.subr.mxu0 0.0
        %977 = vmatpush2.msra.mxu0 0.0
        %978 = vmatprep.subr.mxu0 0.0
        %979 = vmatpush2.msra.mxu0 0.0
        %980 = vmatprep.subr.mxu0 0.0
        %981 = vmatpush2.msra.mxu0 0.0
        %982 = vmatprep.subr.mxu0 0.0
        %983 = vmatpush2.msra.mxu0 0.0
        %984 = vmatprep.mubr.f32.mxu0 0.0
        %985 = vmatmul.mubr.f32.gmra.mxu0 %v241
        %v986 = vpop.f32.mrf.mxu0
        %v987 = vadd.f32 0.0, %v986
        %v988 = vpop.f32.mrf.mxu0
        %v989 = vadd.f32 0.0, %v988
        %990 = vdwg.mxu0
        %v995 = vrot.slane %v512, 7
        %v996 = vrot.slane %v514, 7
        %v997 = vrot.slane %v583, 7
        %v998 = vrot.slane %v585, 7
        %v1007 = vrot.slane %v714, 6
        %v1008 = vrot.slane %v716, 6
        %v1009 = vrot.slane %v785, 6
        %v1010 = vrot.slane %v787, 6
        %v1019 = vrot.slane %v916, 5
        %v1020 = vrot.slane %v918, 5
        %v1021 = vrot.slane %v987, 5
        %v1022 = vrot.slane %v989, 5
        %vm1027 = vcmask 1040384
        %v1028 = vsel %vm1027, %v310, %v995
        %v1029 = vsel %vm1027, %v312, %v996
        %v1030 = vsel %vm1027, %v381, %v997
        %v1031 = vsel %vm1027, %v383, %v998
        %vm1032 = vcmask 1041408
        %v1033 = vsel %vm1032, %v1028, %v1007
        %v1034 = vsel %vm1032, %v1029, %v1008
        %v1035 = vsel %vm1032, %v1030, %v1009
        %v1036 = vsel %vm1032, %v1031, %v1010
        %vm1037 = vcmask 1042432
        %v1038 = vsel %vm1037, %v1033, %v1019
        %v1039 = vsel %vm1037, %v1034, %v1020
        %v1040 = vsel %vm1037, %v1035, %v1021
        %v1041 = vsel %vm1037, %v1036, %v1022
        %v1046 = vrot.slane %v310, 1
        %v1047 = vrot.slane %v312, 1
        %v1048 = vrot.slane %v381, 1
        %v1049 = vrot.slane %v383, 1
        %v1054 = vrot.slane %v714, 7
        %v1055 = vrot.slane %v716, 7
        %v1056 = vrot.slane %v785, 7
        %v1057 = vrot.slane %v787, 7
        %v1062 = vrot.slane %v916, 6
        %v1063 = vrot.slane %v918, 6
        %v1064 = vrot.slane %v987, 6
        %v1065 = vrot.slane %v989, 6
        %v1070 = vsel %vm1027, %v1046, %v512
        %v1071 = vsel %vm1027, %v1047, %v514
        %v1072 = vsel %vm1027, %v1048, %v583
        %v1073 = vsel %vm1027, %v1049, %v585
        %v1074 = vsel %vm1032, %v1070, %v1054
        %v1075 = vsel %vm1032, %v1071, %v1055
        %v1076 = vsel %vm1032, %v1072, %v1056
        %v1077 = vsel %vm1032, %v1073, %v1057
        %v1078 = vsel %vm1037, %v1074, %v1062
        %v1079 = vsel %vm1037, %v1075, %v1063
        %v1080 = vsel %vm1037, %v1076, %v1064
        %v1081 = vsel %vm1037, %v1077, %v1065
        %v1082 = vrcp.pop %v1038
        %v1083 = vmul.f32 %v1078, %v1082
        %v1084 = vrcp.pop %v1039
        %v1085 = vmul.f32 %v1079, %v1084
        %v1086 = vrcp.pop %v1040
        %v1087 = vmul.f32 %v1080, %v1086
        %v1088 = vrcp.pop %v1041
        %v1089 = vmul.f32 %v1081, %v1088
        %v1094 = vcombine.low %v1083, %v1085
        %v1095 = vcombine.low %v1087, %v1089
        %1098 = vst [vmem:[%s159] sm:$0xff] %v1094
        %1099 = vst [vmem:[%s159 + $0x8] sm:$0xff] %v1095
        %s1100 = scalar_lea.vmem %s141, 32 [#allocation2]
        %v1101 = vld [vmem:[%s1100] sm:$0xff]
        %v1102 = vld [vmem:[%s1100 + $0x8] sm:$0xff]
        %v1103 = vld [vmem:[%s1100 + $0x10] sm:$0xff]
        %v1104 = vld [vmem:[%s1100 + $0x18] sm:$0xff]
        %v1105 = vld [vmem:[%s1100 + $0x80] sm:$0xff]
        %v1106 = vld [vmem:[%s1100 + $0x88] sm:$0xff]
        %v1107 = vld [vmem:[%s1100 + $0x90] sm:$0xff]
        %v1108 = vld [vmem:[%s1100 + $0x98] sm:$0xff]
        %v1109 = vmax.f32 %v1101, %v1105
        %v1110 = vrot.slane %v1109, 4
        %v1111 = vmax.f32 %v1109, %v1110
        %v1112 = vrot.slane %v1111, 2
        %v1113 = vmax.f32 %v1111, %v1112
        %v1114 = vrot.slane %v1113, 1
        %v1115 = vmax.f32 %v1113, %v1114
        %v1116 = vmax.f32 %v1102, %v1106
        %v1117 = vrot.slane %v1116, 4
        %v1118 = vmax.f32 %v1116, %v1117
        %v1119 = vrot.slane %v1118, 2
        %v1120 = vmax.f32 %v1118, %v1119
        %v1121 = vrot.slane %v1120, 1
        %v1122 = vmax.f32 %v1120, %v1121
        %v1123 = vmax.f32 %v1103, %v1107
        %v1124 = vrot.slane %v1123, 4
        %v1125 = vmax.f32 %v1123, %v1124
        %v1126 = vrot.slane %v1125, 2
        %v1127 = vmax.f32 %v1125, %v1126
        %v1128 = vrot.slane %v1127, 1
        %v1129 = vmax.f32 %v1127, %v1128
        %v1130 = vmax.f32 %v1104, %v1108
        %v1131 = vrot.slane %v1130, 4
        %v1132 = vmax.f32 %v1130, %v1131
        %v1133 = vrot.slane %v1132, 2
        %v1134 = vmax.f32 %v1132, %v1133
        %v1135 = vrot.slane %v1134, 1
        %v1136 = vmax.f32 %v1134, %v1135
        %v1137 = vsub.f32 %v1101, %v1115
        %v1138 = vsub.f32 %v1102, %v1122
        %v1139 = vsub.f32 %v1103, %v1129
        %v1140 = vsub.f32 %v1104, %v1136
        %v1141 = vsub.f32 %v1105, %v1115
        %v1142 = vsub.f32 %v1106, %v1122
        %v1143 = vsub.f32 %v1107, %v1129
        %v1144 = vsub.f32 %v1108, %v1136
        %v1145 = vmul.f32 %v1137, 1.442695
        %v1146 = vpow.pop %v1145
        %v1147 = vmul.f32 %v1138, 1.442695
        %v1148 = vpow.pop %v1147
        %v1149 = vmul.f32 %v1139, 1.442695
        %v1150 = vpow.pop %v1149
        %v1151 = vmul.f32 %v1140, 1.442695
        %v1152 = vpow.pop %v1151
        %v1153 = vmul.f32 %v1141, 1.442695
        %v1154 = vpow.pop %v1153
        %v1155 = vmul.f32 %v1142, 1.442695
        %v1156 = vpow.pop %v1155
        %v1157 = vmul.f32 %v1143, 1.442695
        %v1158 = vpow.pop %v1157
        %v1159 = vmul.f32 %v1144, 1.442695
        %v1160 = vpow.pop %v1159
        %1161 = vmatprep.subr.mxu0 0.0
        %1162 = vmatpush1.msra.mxu0 0.0
        %1163 = vmatprep.subr.mxu0 0.0
        %1164 = vmatpush1.msra.mxu0 0.0
        %1165 = vmatprep.subr.mxu0 0.0
        %1166 = vmatpush1.msra.mxu0 0.0
        %1167 = vmatprep.subr.mxu0 0.0
        %1168 = vmatpush1.msra.mxu0 0.0
        %1169 = vmatprep.subr.mxu0 0.0
        %1170 = vmatpush1.msra.mxu0 0.0
        %1171 = vmatprep.subr.mxu0 0.0
        %1172 = vmatpush1.msra.mxu0 0.0
        %1173 = vmatprep.subr.mxu0 0.0
        %1174 = vmatpush1.msra.mxu0 0.0
        %1175 = vmatprep.subr.mxu0 0.0
        %1176 = vmatpush1.msra.mxu0 0.0
        %1177 = vmatprep.subr.mxu0 0.0
        %1178 = vmatpush1.msra.mxu0 0.0
        %1179 = vmatprep.subr.mxu0 0.0
        %1180 = vmatpush1.msra.mxu0 0.0
        %1181 = vmatprep.subr.mxu0 0.0
        %1182 = vmatpush1.msra.mxu0 0.0
        %1183 = vmatprep.subr.mxu0 0.0
        %1184 = vmatpush1.msra.mxu0 0.0
        %1185 = vmatprep.subr.mxu0 0.0
        %1186 = vmatpush1.msra.mxu0 0.0
        %1187 = vmatprep.subr.mxu0 0.0
        %1188 = vmatpush1.msra.mxu0 0.0
        %1189 = vmatprep.subr.mxu0 %v1156
        %1190 = vmatpush1.msra.mxu0 %v1154
        %1191 = vmatprep.subr.mxu0 %v1148
        %1192 = vmatpush1.msra.mxu0 %v1146
        %1193 = vmatprep.subr.mxu0 0.0
        %1194 = vmatpush2.msra.mxu0 0.0
        %1195 = vmatprep.subr.mxu0 0.0
        %1196 = vmatpush2.msra.mxu0 0.0
        %1197 = vmatprep.subr.mxu0 0.0
        %1198 = vmatpush2.msra.mxu0 0.0
        %1199 = vmatprep.subr.mxu0 0.0
        %1200 = vmatpush2.msra.mxu0 0.0
        %1201 = vmatprep.subr.mxu0 0.0
        %1202 = vmatpush2.msra.mxu0 0.0
        %1203 = vmatprep.subr.mxu0 0.0
        %1204 = vmatpush2.msra.mxu0 0.0
        %1205 = vmatprep.subr.mxu0 0.0
        %1206 = vmatpush2.msra.mxu0 0.0
        %1207 = vmatprep.subr.mxu0 0.0
        %1208 = vmatpush2.msra.mxu0 0.0
        %1209 = vmatprep.subr.mxu0 0.0
        %1210 = vmatpush2.msra.mxu0 0.0
        %1211 = vmatprep.subr.mxu0 0.0
        %1212 = vmatpush2.msra.mxu0 0.0
        %1213 = vmatprep.subr.mxu0 0.0
        %1214 = vmatpush2.msra.mxu0 0.0
        %1215 = vmatprep.subr.mxu0 0.0
        %1216 = vmatpush2.msra.mxu0 0.0
        %1217 = vmatprep.subr.mxu0 0.0
        %1218 = vmatpush2.msra.mxu0 0.0
        %1219 = vmatprep.subr.mxu0 0.0
        %1220 = vmatpush2.msra.mxu0 0.0
        %1221 = vmatprep.subr.mxu0 0.0
        %1222 = vmatpush2.msra.mxu0 0.0
        %1223 = vmatprep.subr.mxu0 0.0
        %1224 = vmatpush2.msra.mxu0 0.0
        %1225 = vmatprep.mubr.f32.mxu0 0.0
        %1226 = vmatmul.mubr.f32.gmra.mxu0 %v241
        %v1227 = vpop.f32.mrf.mxu0
        %v1228 = vadd.f32 0.0, %v1227
        %v1229 = vpop.f32.mrf.mxu0
        %v1230 = vadd.f32 0.0, %v1229
        %1231 = vdwg.mxu0
        %1232 = vmatprep.subr.mxu0 0.0
        %1233 = vmatpush1.msra.mxu0 0.0
        %1234 = vmatprep.subr.mxu0 0.0
        %1235 = vmatpush1.msra.mxu0 0.0
        %1236 = vmatprep.subr.mxu0 0.0
        %1237 = vmatpush1.msra.mxu0 0.0
        %1238 = vmatprep.subr.mxu0 0.0
        %1239 = vmatpush1.msra.mxu0 0.0
        %1240 = vmatprep.subr.mxu0 0.0
        %1241 = vmatpush1.msra.mxu0 0.0
        %1242 = vmatprep.subr.mxu0 0.0
        %1243 = vmatpush1.msra.mxu0 0.0
        %1244 = vmatprep.subr.mxu0 0.0
        %1245 = vmatpush1.msra.mxu0 0.0
        %1246 = vmatprep.subr.mxu0 0.0
        %1247 = vmatpush1.msra.mxu0 0.0
        %1248 = vmatprep.subr.mxu0 0.0
        %1249 = vmatpush1.msra.mxu0 0.0
        %1250 = vmatprep.subr.mxu0 0.0
        %1251 = vmatpush1.msra.mxu0 0.0
        %1252 = vmatprep.subr.mxu0 0.0
        %1253 = vmatpush1.msra.mxu0 0.0
        %1254 = vmatprep.subr.mxu0 0.0
        %1255 = vmatpush1.msra.mxu0 0.0
        %1256 = vmatprep.subr.mxu0 0.0
        %1257 = vmatpush1.msra.mxu0 0.0
        %1258 = vmatprep.subr.mxu0 0.0
        %1259 = vmatpush1.msra.mxu0 0.0
        %1260 = vmatprep.subr.mxu0 %v1160
        %1261 = vmatpush1.msra.mxu0 %v1158
        %1262 = vmatprep.subr.mxu0 %v1152
        %1263 = vmatpush1.msra.mxu0 %v1150
        %1264 = vmatprep.subr.mxu0 0.0
        %1265 = vmatpush2.msra.mxu0 0.0
        %1266 = vmatprep.subr.mxu0 0.0
        %1267 = vmatpush2.msra.mxu0 0.0
        %1268 = vmatprep.subr.mxu0 0.0
        %1269 = vmatpush2.msra.mxu0 0.0
        %1270 = vmatprep.subr.mxu0 0.0
        %1271 = vmatpush2.msra.mxu0 0.0
        %1272 = vmatprep.subr.mxu0 0.0
        %1273 = vmatpush2.msra.mxu0 0.0
        %1274 = vmatprep.subr.mxu0 0.0
        %1275 = vmatpush2.msra.mxu0 0.0
        %1276 = vmatprep.subr.mxu0 0.0
        %1277 = vmatpush2.msra.mxu0 0.0
        %1278 = vmatprep.subr.mxu0 0.0
        %1279 = vmatpush2.msra.mxu0 0.0
        %1280 = vmatprep.subr.mxu0 0.0
        %1281 = vmatpush2.msra.mxu0 0.0
        %1282 = vmatprep.subr.mxu0 0.0
        %1283 = vmatpush2.msra.mxu0 0.0
        %1284 = vmatprep.subr.mxu0 0.0
        %1285 = vmatpush2.msra.mxu0 0.0
        %1286 = vmatprep.subr.mxu0 0.0
        %1287 = vmatpush2.msra.mxu0 0.0
        %1288 = vmatprep.subr.mxu0 0.0
        %1289 = vmatpush2.msra.mxu0 0.0
        %1290 = vmatprep.subr.mxu0 0.0
        %1291 = vmatpush2.msra.mxu0 0.0
        %1292 = vmatprep.subr.mxu0 0.0
        %1293 = vmatpush2.msra.mxu0 0.0
        %1294 = vmatprep.subr.mxu0 0.0
        %1295 = vmatpush2.msra.mxu0 0.0
        %1296 = vmatprep.mubr.f32.mxu0 0.0
        %1297 = vmatmul.mubr.f32.gmra.mxu0 %v241
        %v1298 = vpop.f32.mrf.mxu0
        %v1299 = vadd.f32 0.0, %v1298
        %v1300 = vpop.f32.mrf.mxu0
        %v1301 = vadd.f32 0.0, %v1300
        %1302 = vdwg.mxu0
        %v1303 = vld [vmem:[%s1100 + $0x100] sm:$0xff]
        %v1304 = vld [vmem:[%s1100 + $0x108] sm:$0xff]
        %v1305 = vld [vmem:[%s1100 + $0x110] sm:$0xff]
        %v1306 = vld [vmem:[%s1100 + $0x118] sm:$0xff]
        %v1307 = vld [vmem:[%s1100 + $0x180] sm:$0xff]
        %v1308 = vld [vmem:[%s1100 + $0x188] sm:$0xff]
        %v1309 = vld [vmem:[%s1100 + $0x190] sm:$0xff]
        %v1310 = vld [vmem:[%s1100 + $0x198] sm:$0xff]
        %v1311 = vmax.f32 %v1303, %v1307
        %v1312 = vrot.slane %v1311, 4
        %v1313 = vmax.f32 %v1311, %v1312
        %v1314 = vrot.slane %v1313, 2
        %v1315 = vmax.f32 %v1313, %v1314
        %v1316 = vrot.slane %v1315, 1
        %v1317 = vmax.f32 %v1315, %v1316
        %v1318 = vmax.f32 %v1304, %v1308
        %v1319 = vrot.slane %v1318, 4
        %v1320 = vmax.f32 %v1318, %v1319
        %v1321 = vrot.slane %v1320, 2
        %v1322 = vmax.f32 %v1320, %v1321
        %v1323 = vrot.slane %v1322, 1
        %v1324 = vmax.f32 %v1322, %v1323
        %v1325 = vmax.f32 %v1305, %v1309
        %v1326 = vrot.slane %v1325, 4
        %v1327 = vmax.f32 %v1325, %v1326
        %v1328 = vrot.slane %v1327, 2
        %v1329 = vmax.f32 %v1327, %v1328
        %v1330 = vrot.slane %v1329, 1
        %v1331 = vmax.f32 %v1329, %v1330
        %v1332 = vmax.f32 %v1306, %v1310
        %v1333 = vrot.slane %v1332, 4
        %v1334 = vmax.f32 %v1332, %v1333
        %v1335 = vrot.slane %v1334, 2
        %v1336 = vmax.f32 %v1334, %v1335
        %v1337 = vrot.slane %v1336, 1
        %v1338 = vmax.f32 %v1336, %v1337
        %v1339 = vsub.f32 %v1303, %v1317
        %v1340 = vsub.f32 %v1304, %v1324
        %v1341 = vsub.f32 %v1305, %v1331
        %v1342 = vsub.f32 %v1306, %v1338
        %v1343 = vsub.f32 %v1307, %v1317
        %v1344 = vsub.f32 %v1308, %v1324
        %v1345 = vsub.f32 %v1309, %v1331
        %v1346 = vsub.f32 %v1310, %v1338
        %v1347 = vmul.f32 %v1339, 1.442695
        %v1348 = vpow.pop %v1347
        %v1349 = vmul.f32 %v1340, 1.442695
        %v1350 = vpow.pop %v1349
        %v1351 = vmul.f32 %v1341, 1.442695
        %v1352 = vpow.pop %v1351
        %v1353 = vmul.f32 %v1342, 1.442695
        %v1354 = vpow.pop %v1353
        %v1355 = vmul.f32 %v1343, 1.442695
        %v1356 = vpow.pop %v1355
        %v1357 = vmul.f32 %v1344, 1.442695
        %v1358 = vpow.pop %v1357
        %v1359 = vmul.f32 %v1345, 1.442695
        %v1360 = vpow.pop %v1359
        %v1361 = vmul.f32 %v1346, 1.442695
        %v1362 = vpow.pop %v1361
        %1363 = vmatprep.subr.mxu0 0.0
        %1364 = vmatpush1.msra.mxu0 0.0
        %1365 = vmatprep.subr.mxu0 0.0
        %1366 = vmatpush1.msra.mxu0 0.0
        %1367 = vmatprep.subr.mxu0 0.0
        %1368 = vmatpush1.msra.mxu0 0.0
        %1369 = vmatprep.subr.mxu0 0.0
        %1370 = vmatpush1.msra.mxu0 0.0
        %1371 = vmatprep.subr.mxu0 0.0
        %1372 = vmatpush1.msra.mxu0 0.0
        %1373 = vmatprep.subr.mxu0 0.0
        %1374 = vmatpush1.msra.mxu0 0.0
        %1375 = vmatprep.subr.mxu0 0.0
        %1376 = vmatpush1.msra.mxu0 0.0
        %1377 = vmatprep.subr.mxu0 0.0
        %1378 = vmatpush1.msra.mxu0 0.0
        %1379 = vmatprep.subr.mxu0 0.0
        %1380 = vmatpush1.msra.mxu0 0.0
        %1381 = vmatprep.subr.mxu0 0.0
        %1382 = vmatpush1.msra.mxu0 0.0
        %1383 = vmatprep.subr.mxu0 0.0
        %1384 = vmatpush1.msra.mxu0 0.0
        %1385 = vmatprep.subr.mxu0 0.0
        %1386 = vmatpush1.msra.mxu0 0.0
        %1387 = vmatprep.subr.mxu0 0.0
        %1388 = vmatpush1.msra.mxu0 0.0
        %1389 = vmatprep.subr.mxu0 0.0
        %1390 = vmatpush1.msra.mxu0 0.0
        %1391 = vmatprep.subr.mxu0 %v1358
        %1392 = vmatpush1.msra.mxu0 %v1356
        %1393 = vmatprep.subr.mxu0 %v1350
        %1394 = vmatpush1.msra.mxu0 %v1348
        %1395 = vmatprep.subr.mxu0 0.0
        %1396 = vmatpush2.msra.mxu0 0.0
        %1397 = vmatprep.subr.mxu0 0.0
        %1398 = vmatpush2.msra.mxu0 0.0
        %1399 = vmatprep.subr.mxu0 0.0
        %1400 = vmatpush2.msra.mxu0 0.0
        %1401 = vmatprep.subr.mxu0 0.0
        %1402 = vmatpush2.msra.mxu0 0.0
        %1403 = vmatprep.subr.mxu0 0.0
        %1404 = vmatpush2.msra.mxu0 0.0
        %1405 = vmatprep.subr.mxu0 0.0
        %1406 = vmatpush2.msra.mxu0 0.0
        %1407 = vmatprep.subr.mxu0 0.0
        %1408 = vmatpush2.msra.mxu0 0.0
        %1409 = vmatprep.subr.mxu0 0.0
        %1410 = vmatpush2.msra.mxu0 0.0
        %1411 = vmatprep.subr.mxu0 0.0
        %1412 = vmatpush2.msra.mxu0 0.0
        %1413 = vmatprep.subr.mxu0 0.0
        %1414 = vmatpush2.msra.mxu0 0.0
        %1415 = vmatprep.subr.mxu0 0.0
        %1416 = vmatpush2.msra.mxu0 0.0
        %1417 = vmatprep.subr.mxu0 0.0
        %1418 = vmatpush2.msra.mxu0 0.0
        %1419 = vmatprep.subr.mxu0 0.0
        %1420 = vmatpush2.msra.mxu0 0.0
        %1421 = vmatprep.subr.mxu0 0.0
        %1422 = vmatpush2.msra.mxu0 0.0
        %1423 = vmatprep.subr.mxu0 0.0
        %1424 = vmatpush2.msra.mxu0 0.0
        %1425 = vmatprep.subr.mxu0 0.0
        %1426 = vmatpush2.msra.mxu0 0.0
        %1427 = vmatprep.mubr.f32.mxu0 0.0
        %1428 = vmatmul.mubr.f32.gmra.mxu0 %v241
        %v1429 = vpop.f32.mrf.mxu0
        %v1430 = vadd.f32 0.0, %v1429
        %v1431 = vpop.f32.mrf.mxu0
        %v1432 = vadd.f32 0.0, %v1431
        %1433 = vdwg.mxu0
        %1434 = vmatprep.subr.mxu0 0.0
        %1435 = vmatpush1.msra.mxu0 0.0
        %1436 = vmatprep.subr.mxu0 0.0
        %1437 = vmatpush1.msra.mxu0 0.0
        %1438 = vmatprep.subr.mxu0 0.0
        %1439 = vmatpush1.msra.mxu0 0.0
        %1440 = vmatprep.subr.mxu0 0.0
        %1441 = vmatpush1.msra.mxu0 0.0
        %1442 = vmatprep.subr.mxu0 0.0
        %1443 = vmatpush1.msra.mxu0 0.0
        %1444 = vmatprep.subr.mxu0 0.0
        %1445 = vmatpush1.msra.mxu0 0.0
        %1446 = vmatprep.subr.mxu0 0.0
        %1447 = vmatpush1.msra.mxu0 0.0
        %1448 = vmatprep.subr.mxu0 0.0
        %1449 = vmatpush1.msra.mxu0 0.0
        %1450 = vmatprep.subr.mxu0 0.0
        %1451 = vmatpush1.msra.mxu0 0.0
        %1452 = vmatprep.subr.mxu0 0.0
        %1453 = vmatpush1.msra.mxu0 0.0
        %1454 = vmatprep.subr.mxu0 0.0
        %1455 = vmatpush1.msra.mxu0 0.0
        %1456 = vmatprep.subr.mxu0 0.0
        %1457 = vmatpush1.msra.mxu0 0.0
        %1458 = vmatprep.subr.mxu0 0.0
        %1459 = vmatpush1.msra.mxu0 0.0
        %1460 = vmatprep.subr.mxu0 0.0
        %1461 = vmatpush1.msra.mxu0 0.0
        %1462 = vmatprep.subr.mxu0 %v1362
        %1463 = vmatpush1.msra.mxu0 %v1360
        %1464 = vmatprep.subr.mxu0 %v1354
        %1465 = vmatpush1.msra.mxu0 %v1352
        %1466 = vmatprep.subr.mxu0 0.0
        %1467 = vmatpush2.msra.mxu0 0.0
        %1468 = vmatprep.subr.mxu0 0.0
        %1469 = vmatpush2.msra.mxu0 0.0
        %1470 = vmatprep.subr.mxu0 0.0
        %1471 = vmatpush2.msra.mxu0 0.0
        %1472 = vmatprep.subr.mxu0 0.0
        %1473 = vmatpush2.msra.mxu0 0.0
        %1474 = vmatprep.subr.mxu0 0.0
        %1475 = vmatpush2.msra.mxu0 0.0
        %1476 = vmatprep.subr.mxu0 0.0
        %1477 = vmatpush2.msra.mxu0 0.0
        %1478 = vmatprep.subr.mxu0 0.0
        %1479 = vmatpush2.msra.mxu0 0.0
        %1480 = vmatprep.subr.mxu0 0.0
        %1481 = vmatpush2.msra.mxu0 0.0
        %1482 = vmatprep.subr.mxu0 0.0
        %1483 = vmatpush2.msra.mxu0 0.0
        %1484 = vmatprep.subr.mxu0 0.0
        %1485 = vmatpush2.msra.mxu0 0.0
        %1486 = vmatprep.subr.mxu0 0.0
        %1487 = vmatpush2.msra.mxu0 0.0
        %1488 = vmatprep.subr.mxu0 0.0
        %1489 = vmatpush2.msra.mxu0 0.0
        %1490 = vmatprep.subr.mxu0 0.0
        %1491 = vmatpush2.msra.mxu0 0.0
        %1492 = vmatprep.subr.mxu0 0.0
        %1493 = vmatpush2.msra.mxu0 0.0
        %1494 = vmatprep.subr.mxu0 0.0
        %1495 = vmatpush2.msra.mxu0 0.0
        %1496 = vmatprep.subr.mxu0 0.0
        %1497 = vmatpush2.msra.mxu0 0.0
        %1498 = vmatprep.mubr.f32.mxu0 0.0
        %1499 = vmatmul.mubr.f32.gmra.mxu0 %v241
        %v1500 = vpop.f32.mrf.mxu0
        %v1501 = vadd.f32 0.0, %v1500
        %v1502 = vpop.f32.mrf.mxu0
        %v1503 = vadd.f32 0.0, %v1502
        %1504 = vdwg.mxu0
        %v1505 = vld [vmem:[%s1100 + $0x200] sm:$0xff]
        %v1506 = vld [vmem:[%s1100 + $0x208] sm:$0xff]
        %v1507 = vld [vmem:[%s1100 + $0x210] sm:$0xff]
        %v1508 = vld [vmem:[%s1100 + $0x218] sm:$0xff]
        %v1509 = vld [vmem:[%s1100 + $0x280] sm:$0xff]
        %v1510 = vld [vmem:[%s1100 + $0x288] sm:$0xff]
        %v1511 = vld [vmem:[%s1100 + $0x290] sm:$0xff]
        %v1512 = vld [vmem:[%s1100 + $0x298] sm:$0xff]
        %v1513 = vmax.f32 %v1505, %v1509
        %v1514 = vrot.slane %v1513, 4
        %v1515 = vmax.f32 %v1513, %v1514
        %v1516 = vrot.slane %v1515, 2
        %v1517 = vmax.f32 %v1515, %v1516
        %v1518 = vrot.slane %v1517, 1
        %v1519 = vmax.f32 %v1517, %v1518
        %v1520 = vmax.f32 %v1506, %v1510
        %v1521 = vrot.slane %v1520, 4
        %v1522 = vmax.f32 %v1520, %v1521
        %v1523 = vrot.slane %v1522, 2
        %v1524 = vmax.f32 %v1522, %v1523
        %v1525 = vrot.slane %v1524, 1
        %v1526 = vmax.f32 %v1524, %v1525
        %v1527 = vmax.f32 %v1507, %v1511
        %v1528 = vrot.slane %v1527, 4
        %v1529 = vmax.f32 %v1527, %v1528
        %v1530 = vrot.slane %v1529, 2
        %v1531 = vmax.f32 %v1529, %v1530
        %v1532 = vrot.slane %v1531, 1
        %v1533 = vmax.f32 %v1531, %v1532
        %v1534 = vmax.f32 %v1508, %v1512
        %v1535 = vrot.slane %v1534, 4
        %v1536 = vmax.f32 %v1534, %v1535
        %v1537 = vrot.slane %v1536, 2
        %v1538 = vmax.f32 %v1536, %v1537
        %v1539 = vrot.slane %v1538, 1
        %v1540 = vmax.f32 %v1538, %v1539
        %v1541 = vsub.f32 %v1505, %v1519
        %v1542 = vsub.f32 %v1506, %v1526
        %v1543 = vsub.f32 %v1507, %v1533
        %v1544 = vsub.f32 %v1508, %v1540
        %v1545 = vsub.f32 %v1509, %v1519
        %v1546 = vsub.f32 %v1510, %v1526
        %v1547 = vsub.f32 %v1511, %v1533
        %v1548 = vsub.f32 %v1512, %v1540
        %v1549 = vmul.f32 %v1541, 1.442695
        %v1550 = vpow.pop %v1549
        %v1551 = vmul.f32 %v1542, 1.442695
        %v1552 = vpow.pop %v1551
        %v1553 = vmul.f32 %v1543, 1.442695
        %v1554 = vpow.pop %v1553
        %v1555 = vmul.f32 %v1544, 1.442695
        %v1556 = vpow.pop %v1555
        %v1557 = vmul.f32 %v1545, 1.442695
        %v1558 = vpow.pop %v1557
        %v1559 = vmul.f32 %v1546, 1.442695
        %v1560 = vpow.pop %v1559
        %v1561 = vmul.f32 %v1547, 1.442695
        %v1562 = vpow.pop %v1561
        %v1563 = vmul.f32 %v1548, 1.442695
        %v1564 = vpow.pop %v1563
        %1565 = vmatprep.subr.mxu0 0.0
        %1566 = vmatpush1.msra.mxu0 0.0
        %1567 = vmatprep.subr.mxu0 0.0
        %1568 = vmatpush1.msra.mxu0 0.0
        %1569 = vmatprep.subr.mxu0 0.0
        %1570 = vmatpush1.msra.mxu0 0.0
        %1571 = vmatprep.subr.mxu0 0.0
        %1572 = vmatpush1.msra.mxu0 0.0
        %1573 = vmatprep.subr.mxu0 0.0
        %1574 = vmatpush1.msra.mxu0 0.0
        %1575 = vmatprep.subr.mxu0 0.0
        %1576 = vmatpush1.msra.mxu0 0.0
        %1577 = vmatprep.subr.mxu0 0.0
        %1578 = vmatpush1.msra.mxu0 0.0
        %1579 = vmatprep.subr.mxu0 0.0
        %1580 = vmatpush1.msra.mxu0 0.0
        %1581 = vmatprep.subr.mxu0 0.0
        %1582 = vmatpush1.msra.mxu0 0.0
        %1583 = vmatprep.subr.mxu0 0.0
        %1584 = vmatpush1.msra.mxu0 0.0
        %1585 = vmatprep.subr.mxu0 0.0
        %1586 = vmatpush1.msra.mxu0 0.0
        %1587 = vmatprep.subr.mxu0 0.0
        %1588 = vmatpush1.msra.mxu0 0.0
        %1589 = vmatprep.subr.mxu0 0.0
        %1590 = vmatpush1.msra.mxu0 0.0
        %1591 = vmatprep.subr.mxu0 0.0
        %1592 = vmatpush1.msra.mxu0 0.0
        %1593 = vmatprep.subr.mxu0 %v1560
        %1594 = vmatpush1.msra.mxu0 %v1558
        %1595 = vmatprep.subr.mxu0 %v1552
        %1596 = vmatpush1.msra.mxu0 %v1550
        %1597 = vmatprep.subr.mxu0 0.0
        %1598 = vmatpush2.msra.mxu0 0.0
        %1599 = vmatprep.subr.mxu0 0.0
        %1600 = vmatpush2.msra.mxu0 0.0
        %1601 = vmatprep.subr.mxu0 0.0
        %1602 = vmatpush2.msra.mxu0 0.0
        %1603 = vmatprep.subr.mxu0 0.0
        %1604 = vmatpush2.msra.mxu0 0.0
        %1605 = vmatprep.subr.mxu0 0.0
        %1606 = vmatpush2.msra.mxu0 0.0
        %1607 = vmatprep.subr.mxu0 0.0
        %1608 = vmatpush2.msra.mxu0 0.0
        %1609 = vmatprep.subr.mxu0 0.0
        %1610 = vmatpush2.msra.mxu0 0.0
        %1611 = vmatprep.subr.mxu0 0.0
        %1612 = vmatpush2.msra.mxu0 0.0
        %1613 = vmatprep.subr.mxu0 0.0
        %1614 = vmatpush2.msra.mxu0 0.0
        %1615 = vmatprep.subr.mxu0 0.0
        %1616 = vmatpush2.msra.mxu0 0.0
        %1617 = vmatprep.subr.mxu0 0.0
        %1618 = vmatpush2.msra.mxu0 0.0
        %1619 = vmatprep.subr.mxu0 0.0
        %1620 = vmatpush2.msra.mxu0 0.0
        %1621 = vmatprep.subr.mxu0 0.0
        %1622 = vmatpush2.msra.mxu0 0.0
        %1623 = vmatprep.subr.mxu0 0.0
        %1624 = vmatpush2.msra.mxu0 0.0
        %1625 = vmatprep.subr.mxu0 0.0
        %1626 = vmatpush2.msra.mxu0 0.0
        %1627 = vmatprep.subr.mxu0 0.0
        %1628 = vmatpush2.msra.mxu0 0.0
        %1629 = vmatprep.mubr.f32.mxu0 0.0
        %1630 = vmatmul.mubr.f32.gmra.mxu0 %v241
        %v1631 = vpop.f32.mrf.mxu0
        %v1632 = vadd.f32 0.0, %v1631
        %v1633 = vpop.f32.mrf.mxu0
        %v1634 = vadd.f32 0.0, %v1633
        %1635 = vdwg.mxu0
        %1636 = vmatprep.subr.mxu0 0.0
        %1637 = vmatpush1.msra.mxu0 0.0
        %1638 = vmatprep.subr.mxu0 0.0
        %1639 = vmatpush1.msra.mxu0 0.0
        %1640 = vmatprep.subr.mxu0 0.0
        %1641 = vmatpush1.msra.mxu0 0.0
        %1642 = vmatprep.subr.mxu0 0.0
        %1643 = vmatpush1.msra.mxu0 0.0
        %1644 = vmatprep.subr.mxu0 0.0
        %1645 = vmatpush1.msra.mxu0 0.0
        %1646 = vmatprep.subr.mxu0 0.0
        %1647 = vmatpush1.msra.mxu0 0.0
        %1648 = vmatprep.subr.mxu0 0.0
        %1649 = vmatpush1.msra.mxu0 0.0
        %1650 = vmatprep.subr.mxu0 0.0
        %1651 = vmatpush1.msra.mxu0 0.0
        %1652 = vmatprep.subr.mxu0 0.0
        %1653 = vmatpush1.msra.mxu0 0.0
        %1654 = vmatprep.subr.mxu0 0.0
        %1655 = vmatpush1.msra.mxu0 0.0
        %1656 = vmatprep.subr.mxu0 0.0
        %1657 = vmatpush1.msra.mxu0 0.0
        %1658 = vmatprep.subr.mxu0 0.0
        %1659 = vmatpush1.msra.mxu0 0.0
        %1660 = vmatprep.subr.mxu0 0.0
        %1661 = vmatpush1.msra.mxu0 0.0
        %1662 = vmatprep.subr.mxu0 0.0
        %1663 = vmatpush1.msra.mxu0 0.0
        %1664 = vmatprep.subr.mxu0 %v1564
        %1665 = vmatpush1.msra.mxu0 %v1562
        %1666 = vmatprep.subr.mxu0 %v1556
        %1667 = vmatpush1.msra.mxu0 %v1554
        %1668 = vmatprep.subr.mxu0 0.0
        %1669 = vmatpush2.msra.mxu0 0.0
        %1670 = vmatprep.subr.mxu0 0.0
        %1671 = vmatpush2.msra.mxu0 0.0
        %1672 = vmatprep.subr.mxu0 0.0
        %1673 = vmatpush2.msra.mxu0 0.0
        %1674 = vmatprep.subr.mxu0 0.0
        %1675 = vmatpush2.msra.mxu0 0.0
        %1676 = vmatprep.subr.mxu0 0.0
        %1677 = vmatpush2.msra.mxu0 0.0
        %1678 = vmatprep.subr.mxu0 0.0
        %1679 = vmatpush2.msra.mxu0 0.0
        %1680 = vmatprep.subr.mxu0 0.0
        %1681 = vmatpush2.msra.mxu0 0.0
        %1682 = vmatprep.subr.mxu0 0.0
        %1683 = vmatpush2.msra.mxu0 0.0
        %1684 = vmatprep.subr.mxu0 0.0
        %1685 = vmatpush2.msra.mxu0 0.0
        %1686 = vmatprep.subr.mxu0 0.0
        %1687 = vmatpush2.msra.mxu0 0.0
        %1688 = vmatprep.subr.mxu0 0.0
        %1689 = vmatpush2.msra.mxu0 0.0
        %1690 = vmatprep.subr.mxu0 0.0
        %1691 = vmatpush2.msra.mxu0 0.0
        %1692 = vmatprep.subr.mxu0 0.0
        %1693 = vmatpush2.msra.mxu0 0.0
        %1694 = vmatprep.subr.mxu0 0.0
        %1695 = vmatpush2.msra.mxu0 0.0
        %1696 = vmatprep.subr.mxu0 0.0
        %1697 = vmatpush2.msra.mxu0 0.0
        %1698 = vmatprep.subr.mxu0 0.0
        %1699 = vmatpush2.msra.mxu0 0.0
        %1700 = vmatprep.mubr.f32.mxu0 0.0
        %1701 = vmatmul.mubr.f32.gmra.mxu0 %v241
        %v1702 = vpop.f32.mrf.mxu0
        %v1703 = vadd.f32 0.0, %v1702
        %v1704 = vpop.f32.mrf.mxu0
        %v1705 = vadd.f32 0.0, %v1704
        %1706 = vdwg.mxu0
        %v1707 = vld [vmem:[%s1100 + $0x300] sm:$0xff]
        %v1708 = vld [vmem:[%s1100 + $0x308] sm:$0xff]
        %v1709 = vld [vmem:[%s1100 + $0x310] sm:$0xff]
        %v1710 = vld [vmem:[%s1100 + $0x318] sm:$0xff]
        %v1711 = vld [vmem:[%s1100 + $0x380] sm:$0xff]
        %v1712 = vld [vmem:[%s1100 + $0x388] sm:$0xff]
        %v1713 = vld [vmem:[%s1100 + $0x390] sm:$0xff]
        %v1714 = vld [vmem:[%s1100 + $0x398] sm:$0xff]
        %v1715 = vmax.f32 %v1707, %v1711
        %v1716 = vrot.slane %v1715, 4
        %v1717 = vmax.f32 %v1715, %v1716
        %v1718 = vrot.slane %v1717, 2
        %v1719 = vmax.f32 %v1717, %v1718
        %v1720 = vrot.slane %v1719, 1
        %v1721 = vmax.f32 %v1719, %v1720
        %v1722 = vmax.f32 %v1708, %v1712
        %v1723 = vrot.slane %v1722, 4
        %v1724 = vmax.f32 %v1722, %v1723
        %v1725 = vrot.slane %v1724, 2
        %v1726 = vmax.f32 %v1724, %v1725
        %v1727 = vrot.slane %v1726, 1
        %v1728 = vmax.f32 %v1726, %v1727
        %v1729 = vmax.f32 %v1709, %v1713
        %v1730 = vrot.slane %v1729, 4
        %v1731 = vmax.f32 %v1729, %v1730
        %v1732 = vrot.slane %v1731, 2
        %v1733 = vmax.f32 %v1731, %v1732
        %v1734 = vrot.slane %v1733, 1
        %v1735 = vmax.f32 %v1733, %v1734
        %v1736 = vmax.f32 %v1710, %v1714
        %v1737 = vrot.slane %v1736, 4
        %v1738 = vmax.f32 %v1736, %v1737
        %v1739 = vrot.slane %v1738, 2
        %v1740 = vmax.f32 %v1738, %v1739
        %v1741 = vrot.slane %v1740, 1
        %v1742 = vmax.f32 %v1740, %v1741
        %v1743 = vsub.f32 %v1707, %v1721
        %v1744 = vsub.f32 %v1708, %v1728
        %v1745 = vsub.f32 %v1709, %v1735
        %v1746 = vsub.f32 %v1710, %v1742
        %v1747 = vsub.f32 %v1711, %v1721
        %v1748 = vsub.f32 %v1712, %v1728
        %v1749 = vsub.f32 %v1713, %v1735
        %v1750 = vsub.f32 %v1714, %v1742
        %v1751 = vmul.f32 %v1743, 1.442695
        %v1752 = vpow.pop %v1751
        %v1753 = vmul.f32 %v1744, 1.442695
        %v1754 = vpow.pop %v1753
        %v1755 = vmul.f32 %v1745, 1.442695
        %v1756 = vpow.pop %v1755
        %v1757 = vmul.f32 %v1746, 1.442695
        %v1758 = vpow.pop %v1757
        %v1759 = vmul.f32 %v1747, 1.442695
        %v1760 = vpow.pop %v1759
        %v1761 = vmul.f32 %v1748, 1.442695
        %v1762 = vpow.pop %v1761
        %v1763 = vmul.f32 %v1749, 1.442695
        %v1764 = vpow.pop %v1763
        %v1765 = vmul.f32 %v1750, 1.442695
        %v1766 = vpow.pop %v1765
        %1767 = vmatprep.subr.mxu0 0.0
        %1768 = vmatpush1.msra.mxu0 0.0
        %1769 = vmatprep.subr.mxu0 0.0
        %1770 = vmatpush1.msra.mxu0 0.0
        %1771 = vmatprep.subr.mxu0 0.0
        %1772 = vmatpush1.msra.mxu0 0.0
        %1773 = vmatprep.subr.mxu0 0.0
        %1774 = vmatpush1.msra.mxu0 0.0
        %1775 = vmatprep.subr.mxu0 0.0
        %1776 = vmatpush1.msra.mxu0 0.0
        %1777 = vmatprep.subr.mxu0 0.0
        %1778 = vmatpush1.msra.mxu0 0.0
        %1779 = vmatprep.subr.mxu0 0.0
        %1780 = vmatpush1.msra.mxu0 0.0
        %1781 = vmatprep.subr.mxu0 0.0
        %1782 = vmatpush1.msra.mxu0 0.0
        %1783 = vmatprep.subr.mxu0 0.0
        %1784 = vmatpush1.msra.mxu0 0.0
        %1785 = vmatprep.subr.mxu0 0.0
        %1786 = vmatpush1.msra.mxu0 0.0
        %1787 = vmatprep.subr.mxu0 0.0
        %1788 = vmatpush1.msra.mxu0 0.0
        %1789 = vmatprep.subr.mxu0 0.0
        %1790 = vmatpush1.msra.mxu0 0.0
        %1791 = vmatprep.subr.mxu0 0.0
        %1792 = vmatpush1.msra.mxu0 0.0
        %1793 = vmatprep.subr.mxu0 0.0
        %1794 = vmatpush1.msra.mxu0 0.0
        %1795 = vmatprep.subr.mxu0 %v1762
        %1796 = vmatpush1.msra.mxu0 %v1760
        %1797 = vmatprep.subr.mxu0 %v1754
        %1798 = vmatpush1.msra.mxu0 %v1752
        %1799 = vmatprep.subr.mxu0 0.0
        %1800 = vmatpush2.msra.mxu0 0.0
        %1801 = vmatprep.subr.mxu0 0.0
        %1802 = vmatpush2.msra.mxu0 0.0
        %1803 = vmatprep.subr.mxu0 0.0
        %1804 = vmatpush2.msra.mxu0 0.0
        %1805 = vmatprep.subr.mxu0 0.0
        %1806 = vmatpush2.msra.mxu0 0.0
        %1807 = vmatprep.subr.mxu0 0.0
        %1808 = vmatpush2.msra.mxu0 0.0
        %1809 = vmatprep.subr.mxu0 0.0
        %1810 = vmatpush2.msra.mxu0 0.0
        %1811 = vmatprep.subr.mxu0 0.0
        %1812 = vmatpush2.msra.mxu0 0.0
        %1813 = vmatprep.subr.mxu0 0.0
        %1814 = vmatpush2.msra.mxu0 0.0
        %1815 = vmatprep.subr.mxu0 0.0
        %1816 = vmatpush2.msra.mxu0 0.0
        %1817 = vmatprep.subr.mxu0 0.0
        %1818 = vmatpush2.msra.mxu0 0.0
        %1819 = vmatprep.subr.mxu0 0.0
        %1820 = vmatpush2.msra.mxu0 0.0
        %1821 = vmatprep.subr.mxu0 0.0
        %1822 = vmatpush2.msra.mxu0 0.0
        %1823 = vmatprep.subr.mxu0 0.0
        %1824 = vmatpush2.msra.mxu0 0.0
        %1825 = vmatprep.subr.mxu0 0.0
        %1826 = vmatpush2.msra.mxu0 0.0
        %1827 = vmatprep.subr.mxu0 0.0
        %1828 = vmatpush2.msra.mxu0 0.0
        %1829 = vmatprep.subr.mxu0 0.0
        %1830 = vmatpush2.msra.mxu0 0.0
        %1831 = vmatprep.mubr.f32.mxu0 0.0
        %1832 = vmatmul.mubr.f32.gmra.mxu0 %v241
        %v1833 = vpop.f32.mrf.mxu0
        %v1834 = vadd.f32 0.0, %v1833
        %v1835 = vpop.f32.mrf.mxu0
        %v1836 = vadd.f32 0.0, %v1835
        %1837 = vdwg.mxu0
        %1838 = vmatprep.subr.mxu0 0.0
        %1839 = vmatpush1.msra.mxu0 0.0
        %1840 = vmatprep.subr.mxu0 0.0
        %1841 = vmatpush1.msra.mxu0 0.0
        %1842 = vmatprep.subr.mxu0 0.0
        %1843 = vmatpush1.msra.mxu0 0.0
        %1844 = vmatprep.subr.mxu0 0.0
        %1845 = vmatpush1.msra.mxu0 0.0
        %1846 = vmatprep.subr.mxu0 0.0
        %1847 = vmatpush1.msra.mxu0 0.0
        %1848 = vmatprep.subr.mxu0 0.0
        %1849 = vmatpush1.msra.mxu0 0.0
        %1850 = vmatprep.subr.mxu0 0.0
        %1851 = vmatpush1.msra.mxu0 0.0
        %1852 = vmatprep.subr.mxu0 0.0
        %1853 = vmatpush1.msra.mxu0 0.0
        %1854 = vmatprep.subr.mxu0 0.0
        %1855 = vmatpush1.msra.mxu0 0.0
        %1856 = vmatprep.subr.mxu0 0.0
        %1857 = vmatpush1.msra.mxu0 0.0
        %1858 = vmatprep.subr.mxu0 0.0
        %1859 = vmatpush1.msra.mxu0 0.0
        %1860 = vmatprep.subr.mxu0 0.0
        %1861 = vmatpush1.msra.mxu0 0.0
        %1862 = vmatprep.subr.mxu0 0.0
        %1863 = vmatpush1.msra.mxu0 0.0
        %1864 = vmatprep.subr.mxu0 0.0
        %1865 = vmatpush1.msra.mxu0 0.0
        %1866 = vmatprep.subr.mxu0 %v1766
        %1867 = vmatpush1.msra.mxu0 %v1764
        %1868 = vmatprep.subr.mxu0 %v1758
        %1869 = vmatpush1.msra.mxu0 %v1756
        %1870 = vmatprep.subr.mxu0 0.0
        %1871 = vmatpush2.msra.mxu0 0.0
        %1872 = vmatprep.subr.mxu0 0.0
        %1873 = vmatpush2.msra.mxu0 0.0
        %1874 = vmatprep.subr.mxu0 0.0
        %1875 = vmatpush2.msra.mxu0 0.0
        %1876 = vmatprep.subr.mxu0 0.0
        %1877 = vmatpush2.msra.mxu0 0.0
        %1878 = vmatprep.subr.mxu0 0.0
        %1879 = vmatpush2.msra.mxu0 0.0
        %1880 = vmatprep.subr.mxu0 0.0
        %1881 = vmatpush2.msra.mxu0 0.0
        %1882 = vmatprep.subr.mxu0 0.0
        %1883 = vmatpush2.msra.mxu0 0.0
        %1884 = vmatprep.subr.mxu0 0.0
        %1885 = vmatpush2.msra.mxu0 0.0
        %1886 = vmatprep.subr.mxu0 0.0
        %1887 = vmatpush2.msra.mxu0 0.0
        %1888 = vmatprep.subr.mxu0 0.0
        %1889 = vmatpush2.msra.mxu0 0.0
        %1890 = vmatprep.subr.mxu0 0.0
        %1891 = vmatpush2.msra.mxu0 0.0
        %1892 = vmatprep.subr.mxu0 0.0
        %1893 = vmatpush2.msra.mxu0 0.0
        %1894 = vmatprep.subr.mxu0 0.0
        %1895 = vmatpush2.msra.mxu0 0.0
        %1896 = vmatprep.subr.mxu0 0.0
        %1897 = vmatpush2.msra.mxu0 0.0
        %1898 = vmatprep.subr.mxu0 0.0
        %1899 = vmatpush2.msra.mxu0 0.0
        %1900 = vmatprep.subr.mxu0 0.0
        %1901 = vmatpush2.msra.mxu0 0.0
        %1902 = vmatprep.mubr.f32.mxu0 0.0
        %1903 = vmatmul.mubr.f32.gmra.mxu0 %v241
        %v1904 = vpop.f32.mrf.mxu0
        %v1905 = vadd.f32 0.0, %v1904
        %v1906 = vpop.f32.mrf.mxu0
        %v1907 = vadd.f32 0.0, %v1906
        %1908 = vdwg.mxu0
        %v1913 = vrot.slane %v1430, 7
        %v1914 = vrot.slane %v1432, 7
        %v1915 = vrot.slane %v1501, 7
        %v1916 = vrot.slane %v1503, 7
        %v1925 = vrot.slane %v1632, 6
        %v1926 = vrot.slane %v1634, 6
        %v1927 = vrot.slane %v1703, 6
        %v1928 = vrot.slane %v1705, 6
        %v1937 = vrot.slane %v1834, 5
        %v1938 = vrot.slane %v1836, 5
        %v1939 = vrot.slane %v1905, 5
        %v1940 = vrot.slane %v1907, 5
        %v1945 = vsel %vm1027, %v1228, %v1913
        %v1946 = vsel %vm1027, %v1230, %v1914
        %v1947 = vsel %vm1027, %v1299, %v1915
        %v1948 = vsel %vm1027, %v1301, %v1916
        %v1949 = vsel %vm1032, %v1945, %v1925
        %v1950 = vsel %vm1032, %v1946, %v1926
        %v1951 = vsel %vm1032, %v1947, %v1927
        %v1952 = vsel %vm1032, %v1948, %v1928
        %v1953 = vsel %vm1037, %v1949, %v1937
        %v1954 = vsel %vm1037, %v1950, %v1938
        %v1955 = vsel %vm1037, %v1951, %v1939
        %v1956 = vsel %vm1037, %v1952, %v1940
        %v1961 = vrot.slane %v1228, 1
        %v1962 = vrot.slane %v1230, 1
        %v1963 = vrot.slane %v1299, 1
        %v1964 = vrot.slane %v1301, 1
        %v1969 = vrot.slane %v1632, 7
        %v1970 = vrot.slane %v1634, 7
        %v1971 = vrot.slane %v1703, 7
        %v1972 = vrot.slane %v1705, 7
        %v1977 = vrot.slane %v1834, 6
        %v1978 = vrot.slane %v1836, 6
        %v1979 = vrot.slane %v1905, 6
        %v1980 = vrot.slane %v1907, 6
        %v1985 = vsel %vm1027, %v1961, %v1430
        %v1986 = vsel %vm1027, %v1962, %v1432
        %v1987 = vsel %vm1027, %v1963, %v1501
        %v1988 = vsel %vm1027, %v1964, %v1503
        %v1989 = vsel %vm1032, %v1985, %v1969
        %v1990 = vsel %vm1032, %v1986, %v1970
        %v1991 = vsel %vm1032, %v1987, %v1971
        %v1992 = vsel %vm1032, %v1988, %v1972
        %v1993 = vsel %vm1037, %v1989, %v1977
        %v1994 = vsel %vm1037, %v1990, %v1978
        %v1995 = vsel %vm1037, %v1991, %v1979
        %v1996 = vsel %vm1037, %v1992, %v1980
        %v1997 = vrcp.pop %v1953
        %v1998 = vmul.f32 %v1993, %v1997
        %v1999 = vrcp.pop %v1954
        %v2000 = vmul.f32 %v1994, %v1999
        %v2001 = vrcp.pop %v1955
        %v2002 = vmul.f32 %v1995, %v2001
        %v2003 = vrcp.pop %v1956
        %v2004 = vmul.f32 %v1996, %v2003
        %v2009 = vcombine.low %v1998, %v2000
        %v2010 = vcombine.low %v2002, %v2004
        %s2013 = scalar_lea.vmem %s159, 16 [#allocation5]
        %2014 = vst [vmem:[%s2013] sm:$0xff] %v2009
        %2015 = vst [vmem:[%s2013 + $0x8] sm:$0xff] %v2010
        %s2016 = scalar_lea.vmem %s141, 64 [#allocation2]
        %v2017 = vld [vmem:[%s2016] sm:$0xff]
        %v2018 = vld [vmem:[%s2016 + $0x8] sm:$0xff]
        %v2019 = vld [vmem:[%s2016 + $0x10] sm:$0xff]
        %v2020 = vld [vmem:[%s2016 + $0x18] sm:$0xff]
        %v2021 = vld [vmem:[%s2016 + $0x80] sm:$0xff]
        %v2022 = vld [vmem:[%s2016 + $0x88] sm:$0xff]
        %v2023 = vld [vmem:[%s2016 + $0x90] sm:$0xff]
        %v2024 = vld [vmem:[%s2016 + $0x98] sm:$0xff]
        %v2025 = vmax.f32 %v2017, %v2021
        %v2026 = vrot.slane %v2025, 4
        %v2027 = vmax.f32 %v2025, %v2026
        %v2028 = vrot.slane %v2027, 2
        %v2029 = vmax.f32 %v2027, %v2028
        %v2030 = vrot.slane %v2029, 1
        %v2031 = vmax.f32 %v2029, %v2030
        %v2032 = vmax.f32 %v2018, %v2022
        %v2033 = vrot.slane %v2032, 4
        %v2034 = vmax.f32 %v2032, %v2033
        %v2035 = vrot.slane %v2034, 2
        %v2036 = vmax.f32 %v2034, %v2035
        %v2037 = vrot.slane %v2036, 1
        %v2038 = vmax.f32 %v2036, %v2037
        %v2039 = vmax.f32 %v2019, %v2023
        %v2040 = vrot.slane %v2039, 4
        %v2041 = vmax.f32 %v2039, %v2040
        %v2042 = vrot.slane %v2041, 2
        %v2043 = vmax.f32 %v2041, %v2042
        %v2044 = vrot.slane %v2043, 1
        %v2045 = vmax.f32 %v2043, %v2044
        %v2046 = vmax.f32 %v2020, %v2024
        %v2047 = vrot.slane %v2046, 4
        %v2048 = vmax.f32 %v2046, %v2047
        %v2049 = vrot.slane %v2048, 2
        %v2050 = vmax.f32 %v2048, %v2049
        %v2051 = vrot.slane %v2050, 1
        %v2052 = vmax.f32 %v2050, %v2051
        %v2053 = vsub.f32 %v2017, %v2031
        %v2054 = vsub.f32 %v2018, %v2038
        %v2055 = vsub.f32 %v2019, %v2045
        %v2056 = vsub.f32 %v2020, %v2052
        %v2057 = vsub.f32 %v2021, %v2031
        %v2058 = vsub.f32 %v2022, %v2038
        %v2059 = vsub.f32 %v2023, %v2045
        %v2060 = vsub.f32 %v2024, %v2052
        %v2061 = vmul.f32 %v2053, 1.442695
        %v2062 = vpow.pop %v2061
        %v2063 = vmul.f32 %v2054, 1.442695
        %v2064 = vpow.pop %v2063
        %v2065 = vmul.f32 %v2055, 1.442695
        %v2066 = vpow.pop %v2065
        %v2067 = vmul.f32 %v2056, 1.442695
        %v2068 = vpow.pop %v2067
        %v2069 = vmul.f32 %v2057, 1.442695
        %v2070 = vpow.pop %v2069
        %v2071 = vmul.f32 %v2058, 1.442695
        %v2072 = vpow.pop %v2071
        %v2073 = vmul.f32 %v2059, 1.442695
        %v2074 = vpow.pop %v2073
        %v2075 = vmul.f32 %v2060, 1.442695
        %v2076 = vpow.pop %v2075
        %2077 = vmatprep.subr.mxu0 0.0
        %2078 = vmatpush1.msra.mxu0 0.0
        %2079 = vmatprep.subr.mxu0 0.0
        %2080 = vmatpush1.msra.mxu0 0.0
        %2081 = vmatprep.subr.mxu0 0.0
        %2082 = vmatpush1.msra.mxu0 0.0
        %2083 = vmatprep.subr.mxu0 0.0
        %2084 = vmatpush1.msra.mxu0 0.0
        %2085 = vmatprep.subr.mxu0 0.0
        %2086 = vmatpush1.msra.mxu0 0.0
        %2087 = vmatprep.subr.mxu0 0.0
        %2088 = vmatpush1.msra.mxu0 0.0
        %2089 = vmatprep.subr.mxu0 0.0
        %2090 = vmatpush1.msra.mxu0 0.0
        %2091 = vmatprep.subr.mxu0 0.0
        %2092 = vmatpush1.msra.mxu0 0.0
        %2093 = vmatprep.subr.mxu0 0.0
        %2094 = vmatpush1.msra.mxu0 0.0
        %2095 = vmatprep.subr.mxu0 0.0
        %2096 = vmatpush1.msra.mxu0 0.0
        %2097 = vmatprep.subr.mxu0 0.0
        %2098 = vmatpush1.msra.mxu0 0.0
        %2099 = vmatprep.subr.mxu0 0.0
        %2100 = vmatpush1.msra.mxu0 0.0
        %2101 = vmatprep.subr.mxu0 0.0
        %2102 = vmatpush1.msra.mxu0 0.0
        %2103 = vmatprep.subr.mxu0 0.0
        %2104 = vmatpush1.msra.mxu0 0.0
        %2105 = vmatprep.subr.mxu0 %v2072
        %2106 = vmatpush1.msra.mxu0 %v2070
        %2107 = vmatprep.subr.mxu0 %v2064
        %2108 = vmatpush1.msra.mxu0 %v2062
        %2109 = vmatprep.subr.mxu0 0.0
        %2110 = vmatpush2.msra.mxu0 0.0
        %2111 = vmatprep.subr.mxu0 0.0
        %2112 = vmatpush2.msra.mxu0 0.0
        %2113 = vmatprep.subr.mxu0 0.0
        %2114 = vmatpush2.msra.mxu0 0.0
        %2115 = vmatprep.subr.mxu0 0.0
        %2116 = vmatpush2.msra.mxu0 0.0
        %2117 = vmatprep.subr.mxu0 0.0
        %2118 = vmatpush2.msra.mxu0 0.0
        %2119 = vmatprep.subr.mxu0 0.0
        %2120 = vmatpush2.msra.mxu0 0.0
        %2121 = vmatprep.subr.mxu0 0.0
        %2122 = vmatpush2.msra.mxu0 0.0
        %2123 = vmatprep.subr.mxu0 0.0
        %2124 = vmatpush2.msra.mxu0 0.0
        %2125 = vmatprep.subr.mxu0 0.0
        %2126 = vmatpush2.msra.mxu0 0.0
        %2127 = vmatprep.subr.mxu0 0.0
        %2128 = vmatpush2.msra.mxu0 0.0
        %2129 = vmatprep.subr.mxu0 0.0
        %2130 = vmatpush2.msra.mxu0 0.0
        %2131 = vmatprep.subr.mxu0 0.0
        %2132 = vmatpush2.msra.mxu0 0.0
        %2133 = vmatprep.subr.mxu0 0.0
        %2134 = vmatpush2.msra.mxu0 0.0
        %2135 = vmatprep.subr.mxu0 0.0
        %2136 = vmatpush2.msra.mxu0 0.0
        %2137 = vmatprep.subr.mxu0 0.0
        %2138 = vmatpush2.msra.mxu0 0.0
        %2139 = vmatprep.subr.mxu0 0.0
        %2140 = vmatpush2.msra.mxu0 0.0
        %2141 = vmatprep.mubr.f32.mxu0 0.0
        %2142 = vmatmul.mubr.f32.gmra.mxu0 %v241
        %v2143 = vpop.f32.mrf.mxu0
        %v2144 = vadd.f32 0.0, %v2143
        %v2145 = vpop.f32.mrf.mxu0
        %v2146 = vadd.f32 0.0, %v2145
        %2147 = vdwg.mxu0
        %2148 = vmatprep.subr.mxu0 0.0
        %2149 = vmatpush1.msra.mxu0 0.0
        %2150 = vmatprep.subr.mxu0 0.0
        %2151 = vmatpush1.msra.mxu0 0.0
        %2152 = vmatprep.subr.mxu0 0.0
        %2153 = vmatpush1.msra.mxu0 0.0
        %2154 = vmatprep.subr.mxu0 0.0
        %2155 = vmatpush1.msra.mxu0 0.0
        %2156 = vmatprep.subr.mxu0 0.0
        %2157 = vmatpush1.msra.mxu0 0.0
        %2158 = vmatprep.subr.mxu0 0.0
        %2159 = vmatpush1.msra.mxu0 0.0
        %2160 = vmatprep.subr.mxu0 0.0
        %2161 = vmatpush1.msra.mxu0 0.0
        %2162 = vmatprep.subr.mxu0 0.0
        %2163 = vmatpush1.msra.mxu0 0.0
        %2164 = vmatprep.subr.mxu0 0.0
        %2165 = vmatpush1.msra.mxu0 0.0
        %2166 = vmatprep.subr.mxu0 0.0
        %2167 = vmatpush1.msra.mxu0 0.0
        %2168 = vmatprep.subr.mxu0 0.0
        %2169 = vmatpush1.msra.mxu0 0.0
        %2170 = vmatprep.subr.mxu0 0.0
        %2171 = vmatpush1.msra.mxu0 0.0
        %2172 = vmatprep.subr.mxu0 0.0
        %2173 = vmatpush1.msra.mxu0 0.0
        %2174 = vmatprep.subr.mxu0 0.0
        %2175 = vmatpush1.msra.mxu0 0.0
        %2176 = vmatprep.subr.mxu0 %v2076
        %2177 = vmatpush1.msra.mxu0 %v2074
        %2178 = vmatprep.subr.mxu0 %v2068
        %2179 = vmatpush1.msra.mxu0 %v2066
        %2180 = vmatprep.subr.mxu0 0.0
        %2181 = vmatpush2.msra.mxu0 0.0
        %2182 = vmatprep.subr.mxu0 0.0
        %2183 = vmatpush2.msra.mxu0 0.0
        %2184 = vmatprep.subr.mxu0 0.0
        %2185 = vmatpush2.msra.mxu0 0.0
        %2186 = vmatprep.subr.mxu0 0.0
        %2187 = vmatpush2.msra.mxu0 0.0
        %2188 = vmatprep.subr.mxu0 0.0
        %2189 = vmatpush2.msra.mxu0 0.0
        %2190 = vmatprep.subr.mxu0 0.0
        %2191 = vmatpush2.msra.mxu0 0.0
        %2192 = vmatprep.subr.mxu0 0.0
        %2193 = vmatpush2.msra.mxu0 0.0
        %2194 = vmatprep.subr.mxu0 0.0
        %2195 = vmatpush2.msra.mxu0 0.0
        %2196 = vmatprep.subr.mxu0 0.0
        %2197 = vmatpush2.msra.mxu0 0.0
        %2198 = vmatprep.subr.mxu0 0.0
        %2199 = vmatpush2.msra.mxu0 0.0
        %2200 = vmatprep.subr.mxu0 0.0
        %2201 = vmatpush2.msra.mxu0 0.0
        %2202 = vmatprep.subr.mxu0 0.0
        %2203 = vmatpush2.msra.mxu0 0.0
        %2204 = vmatprep.subr.mxu0 0.0
        %2205 = vmatpush2.msra.mxu0 0.0
        %2206 = vmatprep.subr.mxu0 0.0
        %2207 = vmatpush2.msra.mxu0 0.0
        %2208 = vmatprep.subr.mxu0 0.0
        %2209 = vmatpush2.msra.mxu0 0.0
        %2210 = vmatprep.subr.mxu0 0.0
        %2211 = vmatpush2.msra.mxu0 0.0
        %2212 = vmatprep.mubr.f32.mxu0 0.0
        %2213 = vmatmul.mubr.f32.gmra.mxu0 %v241
        %v2214 = vpop.f32.mrf.mxu0
        %v2215 = vadd.f32 0.0, %v2214
        %v2216 = vpop.f32.mrf.mxu0
        %v2217 = vadd.f32 0.0, %v2216
        %2218 = vdwg.mxu0
        %v2219 = vld [vmem:[%s2016 + $0x100] sm:$0xff]
        %v2220 = vld [vmem:[%s2016 + $0x108] sm:$0xff]
        %v2221 = vld [vmem:[%s2016 + $0x110] sm:$0xff]
        %v2222 = vld [vmem:[%s2016 + $0x118] sm:$0xff]
        %v2223 = vld [vmem:[%s2016 + $0x180] sm:$0xff]
        %v2224 = vld [vmem:[%s2016 + $0x188] sm:$0xff]
        %v2225 = vld [vmem:[%s2016 + $0x190] sm:$0xff]
        %v2226 = vld [vmem:[%s2016 + $0x198] sm:$0xff]
        %v2227 = vmax.f32 %v2219, %v2223
        %v2228 = vrot.slane %v2227, 4
        %v2229 = vmax.f32 %v2227, %v2228
        %v2230 = vrot.slane %v2229, 2
        %v2231 = vmax.f32 %v2229, %v2230
        %v2232 = vrot.slane %v2231, 1
        %v2233 = vmax.f32 %v2231, %v2232
        %v2234 = vmax.f32 %v2220, %v2224
        %v2235 = vrot.slane %v2234, 4
        %v2236 = vmax.f32 %v2234, %v2235
        %v2237 = vrot.slane %v2236, 2
        %v2238 = vmax.f32 %v2236, %v2237
        %v2239 = vrot.slane %v2238, 1
        %v2240 = vmax.f32 %v2238, %v2239
        %v2241 = vmax.f32 %v2221, %v2225
        %v2242 = vrot.slane %v2241, 4
        %v2243 = vmax.f32 %v2241, %v2242
        %v2244 = vrot.slane %v2243, 2
        %v2245 = vmax.f32 %v2243, %v2244
        %v2246 = vrot.slane %v2245, 1
        %v2247 = vmax.f32 %v2245, %v2246
        %v2248 = vmax.f32 %v2222, %v2226
        %v2249 = vrot.slane %v2248, 4
        %v2250 = vmax.f32 %v2248, %v2249
        %v2251 = vrot.slane %v2250, 2
        %v2252 = vmax.f32 %v2250, %v2251
        %v2253 = vrot.slane %v2252, 1
        %v2254 = vmax.f32 %v2252, %v2253
        %v2255 = vsub.f32 %v2219, %v2233
        %v2256 = vsub.f32 %v2220, %v2240
        %v2257 = vsub.f32 %v2221, %v2247
        %v2258 = vsub.f32 %v2222, %v2254
        %v2259 = vsub.f32 %v2223, %v2233
        %v2260 = vsub.f32 %v2224, %v2240
        %v2261 = vsub.f32 %v2225, %v2247
        %v2262 = vsub.f32 %v2226, %v2254
        %v2263 = vmul.f32 %v2255, 1.442695
        %v2264 = vpow.pop %v2263
        %v2265 = vmul.f32 %v2256, 1.442695
        %v2266 = vpow.pop %v2265
        %v2267 = vmul.f32 %v2257, 1.442695
        %v2268 = vpow.pop %v2267
        %v2269 = vmul.f32 %v2258, 1.442695
        %v2270 = vpow.pop %v2269
        %v2271 = vmul.f32 %v2259, 1.442695
        %v2272 = vpow.pop %v2271
        %v2273 = vmul.f32 %v2260, 1.442695
        %v2274 = vpow.pop %v2273
        %v2275 = vmul.f32 %v2261, 1.442695
        %v2276 = vpow.pop %v2275
        %v2277 = vmul.f32 %v2262, 1.442695
        %v2278 = vpow.pop %v2277
        %2279 = vmatprep.subr.mxu0 0.0
        %2280 = vmatpush1.msra.mxu0 0.0
        %2281 = vmatprep.subr.mxu0 0.0
        %2282 = vmatpush1.msra.mxu0 0.0
        %2283 = vmatprep.subr.mxu0 0.0
        %2284 = vmatpush1.msra.mxu0 0.0
        %2285 = vmatprep.subr.mxu0 0.0
        %2286 = vmatpush1.msra.mxu0 0.0
        %2287 = vmatprep.subr.mxu0 0.0
        %2288 = vmatpush1.msra.mxu0 0.0
        %2289 = vmatprep.subr.mxu0 0.0
        %2290 = vmatpush1.msra.mxu0 0.0
        %2291 = vmatprep.subr.mxu0 0.0
        %2292 = vmatpush1.msra.mxu0 0.0
        %2293 = vmatprep.subr.mxu0 0.0
        %2294 = vmatpush1.msra.mxu0 0.0
        %2295 = vmatprep.subr.mxu0 0.0
        %2296 = vmatpush1.msra.mxu0 0.0
        %2297 = vmatprep.subr.mxu0 0.0
        %2298 = vmatpush1.msra.mxu0 0.0
        %2299 = vmatprep.subr.mxu0 0.0
        %2300 = vmatpush1.msra.mxu0 0.0
        %2301 = vmatprep.subr.mxu0 0.0
        %2302 = vmatpush1.msra.mxu0 0.0
        %2303 = vmatprep.subr.mxu0 0.0
        %2304 = vmatpush1.msra.mxu0 0.0
        %2305 = vmatprep.subr.mxu0 0.0
        %2306 = vmatpush1.msra.mxu0 0.0
        %2307 = vmatprep.subr.mxu0 %v2274
        %2308 = vmatpush1.msra.mxu0 %v2272
        %2309 = vmatprep.subr.mxu0 %v2266
        %2310 = vmatpush1.msra.mxu0 %v2264
        %2311 = vmatprep.subr.mxu0 0.0
        %2312 = vmatpush2.msra.mxu0 0.0
        %2313 = vmatprep.subr.mxu0 0.0
        %2314 = vmatpush2.msra.mxu0 0.0
        %2315 = vmatprep.subr.mxu0 0.0
        %2316 = vmatpush2.msra.mxu0 0.0
        %2317 = vmatprep.subr.mxu0 0.0
        %2318 = vmatpush2.msra.mxu0 0.0
        %2319 = vmatprep.subr.mxu0 0.0
        %2320 = vmatpush2.msra.mxu0 0.0
        %2321 = vmatprep.subr.mxu0 0.0
        %2322 = vmatpush2.msra.mxu0 0.0
        %2323 = vmatprep.subr.mxu0 0.0
        %2324 = vmatpush2.msra.mxu0 0.0
        %2325 = vmatprep.subr.mxu0 0.0
        %2326 = vmatpush2.msra.mxu0 0.0
        %2327 = vmatprep.subr.mxu0 0.0
        %2328 = vmatpush2.msra.mxu0 0.0
        %2329 = vmatprep.subr.mxu0 0.0
        %2330 = vmatpush2.msra.mxu0 0.0
        %2331 = vmatprep.subr.mxu0 0.0
        %2332 = vmatpush2.msra.mxu0 0.0
        %2333 = vmatprep.subr.mxu0 0.0
        %2334 = vmatpush2.msra.mxu0 0.0
        %2335 = vmatprep.subr.mxu0 0.0
        %2336 = vmatpush2.msra.mxu0 0.0
        %2337 = vmatprep.subr.mxu0 0.0
        %2338 = vmatpush2.msra.mxu0 0.0
        %2339 = vmatprep.subr.mxu0 0.0
        %2340 = vmatpush2.msra.mxu0 0.0
        %2341 = vmatprep.subr.mxu0 0.0
        %2342 = vmatpush2.msra.mxu0 0.0
        %2343 = vmatprep.mubr.f32.mxu0 0.0
        %2344 = vmatmul.mubr.f32.gmra.mxu0 %v241
        %v2345 = vpop.f32.mrf.mxu0
        %v2346 = vadd.f32 0.0, %v2345
        %v2347 = vpop.f32.mrf.mxu0
        %v2348 = vadd.f32 0.0, %v2347
        %2349 = vdwg.mxu0
        %2350 = vmatprep.subr.mxu0 0.0
        %2351 = vmatpush1.msra.mxu0 0.0
        %2352 = vmatprep.subr.mxu0 0.0
        %2353 = vmatpush1.msra.mxu0 0.0
        %2354 = vmatprep.subr.mxu0 0.0
        %2355 = vmatpush1.msra.mxu0 0.0
        %2356 = vmatprep.subr.mxu0 0.0
        %2357 = vmatpush1.msra.mxu0 0.0
        %2358 = vmatprep.subr.mxu0 0.0
        %2359 = vmatpush1.msra.mxu0 0.0
        %2360 = vmatprep.subr.mxu0 0.0
        %2361 = vmatpush1.msra.mxu0 0.0
        %2362 = vmatprep.subr.mxu0 0.0
        %2363 = vmatpush1.msra.mxu0 0.0
        %2364 = vmatprep.subr.mxu0 0.0
        %2365 = vmatpush1.msra.mxu0 0.0
        %2366 = vmatprep.subr.mxu0 0.0
        %2367 = vmatpush1.msra.mxu0 0.0
        %2368 = vmatprep.subr.mxu0 0.0
        %2369 = vmatpush1.msra.mxu0 0.0
        %2370 = vmatprep.subr.mxu0 0.0
        %2371 = vmatpush1.msra.mxu0 0.0
        %2372 = vmatprep.subr.mxu0 0.0
        %2373 = vmatpush1.msra.mxu0 0.0
        %2374 = vmatprep.subr.mxu0 0.0
        %2375 = vmatpush1.msra.mxu0 0.0
        %2376 = vmatprep.subr.mxu0 0.0
        %2377 = vmatpush1.msra.mxu0 0.0
        %2378 = vmatprep.subr.mxu0 %v2278
        %2379 = vmatpush1.msra.mxu0 %v2276
        %2380 = vmatprep.subr.mxu0 %v2270
        %2381 = vmatpush1.msra.mxu0 %v2268
        %2382 = vmatprep.subr.mxu0 0.0
        %2383 = vmatpush2.msra.mxu0 0.0
        %2384 = vmatprep.subr.mxu0 0.0
        %2385 = vmatpush2.msra.mxu0 0.0
        %2386 = vmatprep.subr.mxu0 0.0
        %2387 = vmatpush2.msra.mxu0 0.0
        %2388 = vmatprep.subr.mxu0 0.0
        %2389 = vmatpush2.msra.mxu0 0.0
        %2390 = vmatprep.subr.mxu0 0.0
        %2391 = vmatpush2.msra.mxu0 0.0
        %2392 = vmatprep.subr.mxu0 0.0
        %2393 = vmatpush2.msra.mxu0 0.0
        %2394 = vmatprep.subr.mxu0 0.0
        %2395 = vmatpush2.msra.mxu0 0.0
        %2396 = vmatprep.subr.mxu0 0.0
        %2397 = vmatpush2.msra.mxu0 0.0
        %2398 = vmatprep.subr.mxu0 0.0
        %2399 = vmatpush2.msra.mxu0 0.0
        %2400 = vmatprep.subr.mxu0 0.0
        %2401 = vmatpush2.msra.mxu0 0.0
        %2402 = vmatprep.subr.mxu0 0.0
        %2403 = vmatpush2.msra.mxu0 0.0
        %2404 = vmatprep.subr.mxu0 0.0
        %2405 = vmatpush2.msra.mxu0 0.0
        %2406 = vmatprep.subr.mxu0 0.0
        %2407 = vmatpush2.msra.mxu0 0.0
        %2408 = vmatprep.subr.mxu0 0.0
        %2409 = vmatpush2.msra.mxu0 0.0
        %2410 = vmatprep.subr.mxu0 0.0
        %2411 = vmatpush2.msra.mxu0 0.0
        %2412 = vmatprep.subr.mxu0 0.0
        %2413 = vmatpush2.msra.mxu0 0.0
        %2414 = vmatprep.mubr.f32.mxu0 0.0
        %2415 = vmatmul.mubr.f32.gmra.mxu0 %v241
        %v2416 = vpop.f32.mrf.mxu0
        %v2417 = vadd.f32 0.0, %v2416
        %v2418 = vpop.f32.mrf.mxu0
        %v2419 = vadd.f32 0.0, %v2418
        %2420 = vdwg.mxu0
        %v2421 = vld [vmem:[%s2016 + $0x200] sm:$0xff]
        %v2422 = vld [vmem:[%s2016 + $0x208] sm:$0xff]
        %v2423 = vld [vmem:[%s2016 + $0x210] sm:$0xff]
        %v2424 = vld [vmem:[%s2016 + $0x218] sm:$0xff]
        %v2425 = vld [vmem:[%s2016 + $0x280] sm:$0xff]
        %v2426 = vld [vmem:[%s2016 + $0x288] sm:$0xff]
        %v2427 = vld [vmem:[%s2016 + $0x290] sm:$0xff]
        %v2428 = vld [vmem:[%s2016 + $0x298] sm:$0xff]
        %v2429 = vmax.f32 %v2421, %v2425
        %v2430 = vrot.slane %v2429, 4
        %v2431 = vmax.f32 %v2429, %v2430
        %v2432 = vrot.slane %v2431, 2
        %v2433 = vmax.f32 %v2431, %v2432
        %v2434 = vrot.slane %v2433, 1
        %v2435 = vmax.f32 %v2433, %v2434
        %v2436 = vmax.f32 %v2422, %v2426
        %v2437 = vrot.slane %v2436, 4
        %v2438 = vmax.f32 %v2436, %v2437
        %v2439 = vrot.slane %v2438, 2
        %v2440 = vmax.f32 %v2438, %v2439
        %v2441 = vrot.slane %v2440, 1
        %v2442 = vmax.f32 %v2440, %v2441
        %v2443 = vmax.f32 %v2423, %v2427
        %v2444 = vrot.slane %v2443, 4
        %v2445 = vmax.f32 %v2443, %v2444
        %v2446 = vrot.slane %v2445, 2
        %v2447 = vmax.f32 %v2445, %v2446
        %v2448 = vrot.slane %v2447, 1
        %v2449 = vmax.f32 %v2447, %v2448
        %v2450 = vmax.f32 %v2424, %v2428
        %v2451 = vrot.slane %v2450, 4
        %v2452 = vmax.f32 %v2450, %v2451
        %v2453 = vrot.slane %v2452, 2
        %v2454 = vmax.f32 %v2452, %v2453
        %v2455 = vrot.slane %v2454, 1
        %v2456 = vmax.f32 %v2454, %v2455
        %v2457 = vsub.f32 %v2421, %v2435
        %v2458 = vsub.f32 %v2422, %v2442
        %v2459 = vsub.f32 %v2423, %v2449
        %v2460 = vsub.f32 %v2424, %v2456
        %v2461 = vsub.f32 %v2425, %v2435
        %v2462 = vsub.f32 %v2426, %v2442
        %v2463 = vsub.f32 %v2427, %v2449
        %v2464 = vsub.f32 %v2428, %v2456
        %v2465 = vmul.f32 %v2457, 1.442695
        %v2466 = vpow.pop %v2465
        %v2467 = vmul.f32 %v2458, 1.442695
        %v2468 = vpow.pop %v2467
        %v2469 = vmul.f32 %v2459, 1.442695
        %v2470 = vpow.pop %v2469
        %v2471 = vmul.f32 %v2460, 1.442695
        %v2472 = vpow.pop %v2471
        %v2473 = vmul.f32 %v2461, 1.442695
        %v2474 = vpow.pop %v2473
        %v2475 = vmul.f32 %v2462, 1.442695
        %v2476 = vpow.pop %v2475
        %v2477 = vmul.f32 %v2463, 1.442695
        %v2478 = vpow.pop %v2477
        %v2479 = vmul.f32 %v2464, 1.442695
        %v2480 = vpow.pop %v2479
        %2481 = vmatprep.subr.mxu0 0.0
        %2482 = vmatpush1.msra.mxu0 0.0
        %2483 = vmatprep.subr.mxu0 0.0
        %2484 = vmatpush1.msra.mxu0 0.0
        %2485 = vmatprep.subr.mxu0 0.0
        %2486 = vmatpush1.msra.mxu0 0.0
        %2487 = vmatprep.subr.mxu0 0.0
        %2488 = vmatpush1.msra.mxu0 0.0
        %2489 = vmatprep.subr.mxu0 0.0
        %2490 = vmatpush1.msra.mxu0 0.0
        %2491 = vmatprep.subr.mxu0 0.0
        %2492 = vmatpush1.msra.mxu0 0.0
        %2493 = vmatprep.subr.mxu0 0.0
        %2494 = vmatpush1.msra.mxu0 0.0
        %2495 = vmatprep.subr.mxu0 0.0
        %2496 = vmatpush1.msra.mxu0 0.0
        %2497 = vmatprep.subr.mxu0 0.0
        %2498 = vmatpush1.msra.mxu0 0.0
        %2499 = vmatprep.subr.mxu0 0.0
        %2500 = vmatpush1.msra.mxu0 0.0
        %2501 = vmatprep.subr.mxu0 0.0
        %2502 = vmatpush1.msra.mxu0 0.0
        %2503 = vmatprep.subr.mxu0 0.0
        %2504 = vmatpush1.msra.mxu0 0.0
        %2505 = vmatprep.subr.mxu0 0.0
        %2506 = vmatpush1.msra.mxu0 0.0
        %2507 = vmatprep.subr.mxu0 0.0
        %2508 = vmatpush1.msra.mxu0 0.0
        %2509 = vmatprep.subr.mxu0 %v2476
        %2510 = vmatpush1.msra.mxu0 %v2474
        %2511 = vmatprep.subr.mxu0 %v2468
        %2512 = vmatpush1.msra.mxu0 %v2466
        %2513 = vmatprep.subr.mxu0 0.0
        %2514 = vmatpush2.msra.mxu0 0.0
        %2515 = vmatprep.subr.mxu0 0.0
        %2516 = vmatpush2.msra.mxu0 0.0
        %2517 = vmatprep.subr.mxu0 0.0
        %2518 = vmatpush2.msra.mxu0 0.0
        %2519 = vmatprep.subr.mxu0 0.0
        %2520 = vmatpush2.msra.mxu0 0.0
        %2521 = vmatprep.subr.mxu0 0.0
        %2522 = vmatpush2.msra.mxu0 0.0
        %2523 = vmatprep.subr.mxu0 0.0
        %2524 = vmatpush2.msra.mxu0 0.0
        %2525 = vmatprep.subr.mxu0 0.0
        %2526 = vmatpush2.msra.mxu0 0.0
        %2527 = vmatprep.subr.mxu0 0.0
        %2528 = vmatpush2.msra.mxu0 0.0
        %2529 = vmatprep.subr.mxu0 0.0
        %2530 = vmatpush2.msra.mxu0 0.0
        %2531 = vmatprep.subr.mxu0 0.0
        %2532 = vmatpush2.msra.mxu0 0.0
        %2533 = vmatprep.subr.mxu0 0.0
        %2534 = vmatpush2.msra.mxu0 0.0
        %2535 = vmatprep.subr.mxu0 0.0
        %2536 = vmatpush2.msra.mxu0 0.0
        %2537 = vmatprep.subr.mxu0 0.0
        %2538 = vmatpush2.msra.mxu0 0.0
        %2539 = vmatprep.subr.mxu0 0.0
        %2540 = vmatpush2.msra.mxu0 0.0
        %2541 = vmatprep.subr.mxu0 0.0
        %2542 = vmatpush2.msra.mxu0 0.0
        %2543 = vmatprep.subr.mxu0 0.0
        %2544 = vmatpush2.msra.mxu0 0.0
        %2545 = vmatprep.mubr.f32.mxu0 0.0
        %2546 = vmatmul.mubr.f32.gmra.mxu0 %v241
        %v2547 = vpop.f32.mrf.mxu0
        %v2548 = vadd.f32 0.0, %v2547
        %v2549 = vpop.f32.mrf.mxu0
        %v2550 = vadd.f32 0.0, %v2549
        %2551 = vdwg.mxu0
        %2552 = vmatprep.subr.mxu0 0.0
        %2553 = vmatpush1.msra.mxu0 0.0
        %2554 = vmatprep.subr.mxu0 0.0
        %2555 = vmatpush1.msra.mxu0 0.0
        %2556 = vmatprep.subr.mxu0 0.0
        %2557 = vmatpush1.msra.mxu0 0.0
        %2558 = vmatprep.subr.mxu0 0.0
        %2559 = vmatpush1.msra.mxu0 0.0
        %2560 = vmatprep.subr.mxu0 0.0
        %2561 = vmatpush1.msra.mxu0 0.0
        %2562 = vmatprep.subr.mxu0 0.0
        %2563 = vmatpush1.msra.mxu0 0.0
        %2564 = vmatprep.subr.mxu0 0.0
        %2565 = vmatpush1.msra.mxu0 0.0
        %2566 = vmatprep.subr.mxu0 0.0
        %2567 = vmatpush1.msra.mxu0 0.0
        %2568 = vmatprep.subr.mxu0 0.0
        %2569 = vmatpush1.msra.mxu0 0.0
        %2570 = vmatprep.subr.mxu0 0.0
        %2571 = vmatpush1.msra.mxu0 0.0
        %2572 = vmatprep.subr.mxu0 0.0
        %2573 = vmatpush1.msra.mxu0 0.0
        %2574 = vmatprep.subr.mxu0 0.0
        %2575 = vmatpush1.msra.mxu0 0.0
        %2576 = vmatprep.subr.mxu0 0.0
        %2577 = vmatpush1.msra.mxu0 0.0
        %2578 = vmatprep.subr.mxu0 0.0
        %2579 = vmatpush1.msra.mxu0 0.0
        %2580 = vmatprep.subr.mxu0 %v2480
        %2581 = vmatpush1.msra.mxu0 %v2478
        %2582 = vmatprep.subr.mxu0 %v2472
        %2583 = vmatpush1.msra.mxu0 %v2470
        %2584 = vmatprep.subr.mxu0 0.0
        %2585 = vmatpush2.msra.mxu0 0.0
        %2586 = vmatprep.subr.mxu0 0.0
        %2587 = vmatpush2.msra.mxu0 0.0
        %2588 = vmatprep.subr.mxu0 0.0
        %2589 = vmatpush2.msra.mxu0 0.0
        %2590 = vmatprep.subr.mxu0 0.0
        %2591 = vmatpush2.msra.mxu0 0.0
        %2592 = vmatprep.subr.mxu0 0.0
        %2593 = vmatpush2.msra.mxu0 0.0
        %2594 = vmatprep.subr.mxu0 0.0
        %2595 = vmatpush2.msra.mxu0 0.0
        %2596 = vmatprep.subr.mxu0 0.0
        %2597 = vmatpush2.msra.mxu0 0.0
        %2598 = vmatprep.subr.mxu0 0.0
        %2599 = vmatpush2.msra.mxu0 0.0
        %2600 = vmatprep.subr.mxu0 0.0
        %2601 = vmatpush2.msra.mxu0 0.0
        %2602 = vmatprep.subr.mxu0 0.0
        %2603 = vmatpush2.msra.mxu0 0.0
        %2604 = vmatprep.subr.mxu0 0.0
        %2605 = vmatpush2.msra.mxu0 0.0
        %2606 = vmatprep.subr.mxu0 0.0
        %2607 = vmatpush2.msra.mxu0 0.0
        %2608 = vmatprep.subr.mxu0 0.0
        %2609 = vmatpush2.msra.mxu0 0.0
        %2610 = vmatprep.subr.mxu0 0.0
        %2611 = vmatpush2.msra.mxu0 0.0
        %2612 = vmatprep.subr.mxu0 0.0
        %2613 = vmatpush2.msra.mxu0 0.0
        %2614 = vmatprep.subr.mxu0 0.0
        %2615 = vmatpush2.msra.mxu0 0.0
        %2616 = vmatprep.mubr.f32.mxu0 0.0
        %2617 = vmatmul.mubr.f32.gmra.mxu0 %v241
        %v2618 = vpop.f32.mrf.mxu0
        %v2619 = vadd.f32 0.0, %v2618
        %v2620 = vpop.f32.mrf.mxu0
        %v2621 = vadd.f32 0.0, %v2620
        %2622 = vdwg.mxu0
        %v2623 = vld [vmem:[%s2016 + $0x300] sm:$0xff]
        %v2624 = vld [vmem:[%s2016 + $0x308] sm:$0xff]
        %v2625 = vld [vmem:[%s2016 + $0x310] sm:$0xff]
        %v2626 = vld [vmem:[%s2016 + $0x318] sm:$0xff]
        %v2627 = vld [vmem:[%s2016 + $0x380] sm:$0xff]
        %v2628 = vld [vmem:[%s2016 + $0x388] sm:$0xff]
        %v2629 = vld [vmem:[%s2016 + $0x390] sm:$0xff]
        %v2630 = vld [vmem:[%s2016 + $0x398] sm:$0xff]
        %v2631 = vmax.f32 %v2623, %v2627
        %v2632 = vrot.slane %v2631, 4
        %v2633 = vmax.f32 %v2631, %v2632
        %v2634 = vrot.slane %v2633, 2
        %v2635 = vmax.f32 %v2633, %v2634
        %v2636 = vrot.slane %v2635, 1
        %v2637 = vmax.f32 %v2635, %v2636
        %v2638 = vmax.f32 %v2624, %v2628
        %v2639 = vrot.slane %v2638, 4
        %v2640 = vmax.f32 %v2638, %v2639
        %v2641 = vrot.slane %v2640, 2
        %v2642 = vmax.f32 %v2640, %v2641
        %v2643 = vrot.slane %v2642, 1
        %v2644 = vmax.f32 %v2642, %v2643
        %v2645 = vmax.f32 %v2625, %v2629
        %v2646 = vrot.slane %v2645, 4
        %v2647 = vmax.f32 %v2645, %v2646
        %v2648 = vrot.slane %v2647, 2
        %v2649 = vmax.f32 %v2647, %v2648
        %v2650 = vrot.slane %v2649, 1
        %v2651 = vmax.f32 %v2649, %v2650
        %v2652 = vmax.f32 %v2626, %v2630
        %v2653 = vrot.slane %v2652, 4
        %v2654 = vmax.f32 %v2652, %v2653
        %v2655 = vrot.slane %v2654, 2
        %v2656 = vmax.f32 %v2654, %v2655
        %v2657 = vrot.slane %v2656, 1
        %v2658 = vmax.f32 %v2656, %v2657
        %v2659 = vsub.f32 %v2623, %v2637
        %v2660 = vsub.f32 %v2624, %v2644
        %v2661 = vsub.f32 %v2625, %v2651
        %v2662 = vsub.f32 %v2626, %v2658
        %v2663 = vsub.f32 %v2627, %v2637
        %v2664 = vsub.f32 %v2628, %v2644
        %v2665 = vsub.f32 %v2629, %v2651
        %v2666 = vsub.f32 %v2630, %v2658
        %v2667 = vmul.f32 %v2659, 1.442695
        %v2668 = vpow.pop %v2667
        %v2669 = vmul.f32 %v2660, 1.442695
        %v2670 = vpow.pop %v2669
        %v2671 = vmul.f32 %v2661, 1.442695
        %v2672 = vpow.pop %v2671
        %v2673 = vmul.f32 %v2662, 1.442695
        %v2674 = vpow.pop %v2673
        %v2675 = vmul.f32 %v2663, 1.442695
        %v2676 = vpow.pop %v2675
        %v2677 = vmul.f32 %v2664, 1.442695
        %v2678 = vpow.pop %v2677
        %v2679 = vmul.f32 %v2665, 1.442695
        %v2680 = vpow.pop %v2679
        %v2681 = vmul.f32 %v2666, 1.442695
        %v2682 = vpow.pop %v2681
        %2683 = vmatprep.subr.mxu0 0.0
        %2684 = vmatpush1.msra.mxu0 0.0
        %2685 = vmatprep.subr.mxu0 0.0
        %2686 = vmatpush1.msra.mxu0 0.0
        %2687 = vmatprep.subr.mxu0 0.0
        %2688 = vmatpush1.msra.mxu0 0.0
        %2689 = vmatprep.subr.mxu0 0.0
        %2690 = vmatpush1.msra.mxu0 0.0
        %2691 = vmatprep.subr.mxu0 0.0
        %2692 = vmatpush1.msra.mxu0 0.0
        %2693 = vmatprep.subr.mxu0 0.0
        %2694 = vmatpush1.msra.mxu0 0.0
        %2695 = vmatprep.subr.mxu0 0.0
        %2696 = vmatpush1.msra.mxu0 0.0
        %2697 = vmatprep.subr.mxu0 0.0
        %2698 = vmatpush1.msra.mxu0 0.0
        %2699 = vmatprep.subr.mxu0 0.0
        %2700 = vmatpush1.msra.mxu0 0.0
        %2701 = vmatprep.subr.mxu0 0.0
        %2702 = vmatpush1.msra.mxu0 0.0
        %2703 = vmatprep.subr.mxu0 0.0
        %2704 = vmatpush1.msra.mxu0 0.0
        %2705 = vmatprep.subr.mxu0 0.0
        %2706 = vmatpush1.msra.mxu0 0.0
        %2707 = vmatprep.subr.mxu0 0.0
        %2708 = vmatpush1.msra.mxu0 0.0
        %2709 = vmatprep.subr.mxu0 0.0
        %2710 = vmatpush1.msra.mxu0 0.0
        %2711 = vmatprep.subr.mxu0 %v2678
        %2712 = vmatpush1.msra.mxu0 %v2676
        %2713 = vmatprep.subr.mxu0 %v2670
        %2714 = vmatpush1.msra.mxu0 %v2668
        %2715 = vmatprep.subr.mxu0 0.0
        %2716 = vmatpush2.msra.mxu0 0.0
        %2717 = vmatprep.subr.mxu0 0.0
        %2718 = vmatpush2.msra.mxu0 0.0
        %2719 = vmatprep.subr.mxu0 0.0
        %2720 = vmatpush2.msra.mxu0 0.0
        %2721 = vmatprep.subr.mxu0 0.0
        %2722 = vmatpush2.msra.mxu0 0.0
        %2723 = vmatprep.subr.mxu0 0.0
        %2724 = vmatpush2.msra.mxu0 0.0
        %2725 = vmatprep.subr.mxu0 0.0
        %2726 = vmatpush2.msra.mxu0 0.0
        %2727 = vmatprep.subr.mxu0 0.0
        %2728 = vmatpush2.msra.mxu0 0.0
        %2729 = vmatprep.subr.mxu0 0.0
        %2730 = vmatpush2.msra.mxu0 0.0
        %2731 = vmatprep.subr.mxu0 0.0
        %2732 = vmatpush2.msra.mxu0 0.0
        %2733 = vmatprep.subr.mxu0 0.0
        %2734 = vmatpush2.msra.mxu0 0.0
        %2735 = vmatprep.subr.mxu0 0.0
        %2736 = vmatpush2.msra.mxu0 0.0
        %2737 = vmatprep.subr.mxu0 0.0
        %2738 = vmatpush2.msra.mxu0 0.0
        %2739 = vmatprep.subr.mxu0 0.0
        %2740 = vmatpush2.msra.mxu0 0.0
        %2741 = vmatprep.subr.mxu0 0.0
        %2742 = vmatpush2.msra.mxu0 0.0
        %2743 = vmatprep.subr.mxu0 0.0
        %2744 = vmatpush2.msra.mxu0 0.0
        %2745 = vmatprep.subr.mxu0 0.0
        %2746 = vmatpush2.msra.mxu0 0.0
        %2747 = vmatprep.mubr.f32.mxu0 0.0
        %2748 = vmatmul.mubr.f32.gmra.mxu0 %v241
        %v2749 = vpop.f32.mrf.mxu0
        %v2750 = vadd.f32 0.0, %v2749
        %v2751 = vpop.f32.mrf.mxu0
        %v2752 = vadd.f32 0.0, %v2751
        %2753 = vdwg.mxu0
        %2754 = vmatprep.subr.mxu0 0.0
        %2755 = vmatpush1.msra.mxu0 0.0
        %2756 = vmatprep.subr.mxu0 0.0
        %2757 = vmatpush1.msra.mxu0 0.0
        %2758 = vmatprep.subr.mxu0 0.0
        %2759 = vmatpush1.msra.mxu0 0.0
        %2760 = vmatprep.subr.mxu0 0.0
        %2761 = vmatpush1.msra.mxu0 0.0
        %2762 = vmatprep.subr.mxu0 0.0
        %2763 = vmatpush1.msra.mxu0 0.0
        %2764 = vmatprep.subr.mxu0 0.0
        %2765 = vmatpush1.msra.mxu0 0.0
        %2766 = vmatprep.subr.mxu0 0.0
        %2767 = vmatpush1.msra.mxu0 0.0
        %2768 = vmatprep.subr.mxu0 0.0
        %2769 = vmatpush1.msra.mxu0 0.0
        %2770 = vmatprep.subr.mxu0 0.0
        %2771 = vmatpush1.msra.mxu0 0.0
        %2772 = vmatprep.subr.mxu0 0.0
        %2773 = vmatpush1.msra.mxu0 0.0
        %2774 = vmatprep.subr.mxu0 0.0
        %2775 = vmatpush1.msra.mxu0 0.0
        %2776 = vmatprep.subr.mxu0 0.0
        %2777 = vmatpush1.msra.mxu0 0.0
        %2778 = vmatprep.subr.mxu0 0.0
        %2779 = vmatpush1.msra.mxu0 0.0
        %2780 = vmatprep.subr.mxu0 0.0
        %2781 = vmatpush1.msra.mxu0 0.0
        %2782 = vmatprep.subr.mxu0 %v2682
        %2783 = vmatpush1.msra.mxu0 %v2680
        %2784 = vmatprep.subr.mxu0 %v2674
        %2785 = vmatpush1.msra.mxu0 %v2672
        %2786 = vmatprep.subr.mxu0 0.0
        %2787 = vmatpush2.msra.mxu0 0.0
        %2788 = vmatprep.subr.mxu0 0.0
        %2789 = vmatpush2.msra.mxu0 0.0
        %2790 = vmatprep.subr.mxu0 0.0
        %2791 = vmatpush2.msra.mxu0 0.0
        %2792 = vmatprep.subr.mxu0 0.0
        %2793 = vmatpush2.msra.mxu0 0.0
        %2794 = vmatprep.subr.mxu0 0.0
        %2795 = vmatpush2.msra.mxu0 0.0
        %2796 = vmatprep.subr.mxu0 0.0
        %2797 = vmatpush2.msra.mxu0 0.0
        %2798 = vmatprep.subr.mxu0 0.0
        %2799 = vmatpush2.msra.mxu0 0.0
        %2800 = vmatprep.subr.mxu0 0.0
        %2801 = vmatpush2.msra.mxu0 0.0
        %2802 = vmatprep.subr.mxu0 0.0
        %2803 = vmatpush2.msra.mxu0 0.0
        %2804 = vmatprep.subr.mxu0 0.0
        %2805 = vmatpush2.msra.mxu0 0.0
        %2806 = vmatprep.subr.mxu0 0.0
        %2807 = vmatpush2.msra.mxu0 0.0
        %2808 = vmatprep.subr.mxu0 0.0
        %2809 = vmatpush2.msra.mxu0 0.0
        %2810 = vmatprep.subr.mxu0 0.0
        %2811 = vmatpush2.msra.mxu0 0.0
        %2812 = vmatprep.subr.mxu0 0.0
        %2813 = vmatpush2.msra.mxu0 0.0
        %2814 = vmatprep.subr.mxu0 0.0
        %2815 = vmatpush2.msra.mxu0 0.0
        %2816 = vmatprep.subr.mxu0 0.0
        %2817 = vmatpush2.msra.mxu0 0.0
        %2818 = vmatprep.mubr.f32.mxu0 0.0
        %2819 = vmatmul.mubr.f32.gmra.mxu0 %v241
        %v2820 = vpop.f32.mrf.mxu0
        %v2821 = vadd.f32 0.0, %v2820
        %v2822 = vpop.f32.mrf.mxu0
        %v2823 = vadd.f32 0.0, %v2822
        %2824 = vdwg.mxu0
        %v2829 = vrot.slane %v2346, 7
        %v2830 = vrot.slane %v2348, 7
        %v2831 = vrot.slane %v2417, 7
        %v2832 = vrot.slane %v2419, 7
        %v2841 = vrot.slane %v2548, 6
        %v2842 = vrot.slane %v2550, 6
        %v2843 = vrot.slane %v2619, 6
        %v2844 = vrot.slane %v2621, 6
        %v2853 = vrot.slane %v2750, 5
        %v2854 = vrot.slane %v2752, 5
        %v2855 = vrot.slane %v2821, 5
        %v2856 = vrot.slane %v2823, 5
        %v2861 = vsel %vm1027, %v2144, %v2829
        %v2862 = vsel %vm1027, %v2146, %v2830
        %v2863 = vsel %vm1027, %v2215, %v2831
        %v2864 = vsel %vm1027, %v2217, %v2832
        %v2865 = vsel %vm1032, %v2861, %v2841
        %v2866 = vsel %vm1032, %v2862, %v2842
        %v2867 = vsel %vm1032, %v2863, %v2843
        %v2868 = vsel %vm1032, %v2864, %v2844
        %v2869 = vsel %vm1037, %v2865, %v2853
        %v2870 = vsel %vm1037, %v2866, %v2854
        %v2871 = vsel %vm1037, %v2867, %v2855
        %v2872 = vsel %vm1037, %v2868, %v2856
        %v2877 = vrot.slane %v2144, 1
        %v2878 = vrot.slane %v2146, 1
        %v2879 = vrot.slane %v2215, 1
        %v2880 = vrot.slane %v2217, 1
        %v2885 = vrot.slane %v2548, 7
        %v2886 = vrot.slane %v2550, 7
        %v2887 = vrot.slane %v2619, 7
        %v2888 = vrot.slane %v2621, 7
        %v2893 = vrot.slane %v2750, 6
        %v2894 = vrot.slane %v2752, 6
        %v2895 = vrot.slane %v2821, 6
        %v2896 = vrot.slane %v2823, 6
        %v2901 = vsel %vm1027, %v2877, %v2346
        %v2902 = vsel %vm1027, %v2878, %v2348
        %v2903 = vsel %vm1027, %v2879, %v2417
        %v2904 = vsel %vm1027, %v2880, %v2419
        %v2905 = vsel %vm1032, %v2901, %v2885
        %v2906 = vsel %vm1032, %v2902, %v2886
        %v2907 = vsel %vm1032, %v2903, %v2887
        %v2908 = vsel %vm1032, %v2904, %v2888
        %v2909 = vsel %vm1037, %v2905, %v2893
        %v2910 = vsel %vm1037, %v2906, %v2894
        %v2911 = vsel %vm1037, %v2907, %v2895
        %v2912 = vsel %vm1037, %v2908, %v2896
        %v2913 = vrcp.pop %v2869
        %v2914 = vmul.f32 %v2909, %v2913
        %v2915 = vrcp.pop %v2870
        %v2916 = vmul.f32 %v2910, %v2915
        %v2917 = vrcp.pop %v2871
        %v2918 = vmul.f32 %v2911, %v2917
        %v2919 = vrcp.pop %v2872
        %v2920 = vmul.f32 %v2912, %v2919
        %v2925 = vcombine.low %v2914, %v2916
        %v2926 = vcombine.low %v2918, %v2920
        %s2929 = scalar_lea.vmem %s159, 32 [#allocation5]
        %2930 = vst [vmem:[%s2929] sm:$0xff] %v2925
        %2931 = vst [vmem:[%s2929 + $0x8] sm:$0xff] %v2926
        %s2932 = scalar_lea.vmem %s141, 96 [#allocation2]
        %v2933 = vld [vmem:[%s2932] sm:$0xff]
        %v2934 = vld [vmem:[%s2932 + $0x8] sm:$0xff]
        %v2935 = vld [vmem:[%s2932 + $0x10] sm:$0xff]
        %v2936 = vld [vmem:[%s2932 + $0x18] sm:$0xff]
        %v2937 = vld [vmem:[%s2932 + $0x80] sm:$0xff]
        %v2938 = vld [vmem:[%s2932 + $0x88] sm:$0xff]
        %v2939 = vld [vmem:[%s2932 + $0x90] sm:$0xff]
        %v2940 = vld [vmem:[%s2932 + $0x98] sm:$0xff]
        %v2941 = vmax.f32 %v2933, %v2937
        %v2942 = vrot.slane %v2941, 4
        %v2943 = vmax.f32 %v2941, %v2942
        %v2944 = vrot.slane %v2943, 2
        %v2945 = vmax.f32 %v2943, %v2944
        %v2946 = vrot.slane %v2945, 1
        %v2947 = vmax.f32 %v2945, %v2946
        %v2948 = vmax.f32 %v2934, %v2938
        %v2949 = vrot.slane %v2948, 4
        %v2950 = vmax.f32 %v2948, %v2949
        %v2951 = vrot.slane %v2950, 2
        %v2952 = vmax.f32 %v2950, %v2951
        %v2953 = vrot.slane %v2952, 1
        %v2954 = vmax.f32 %v2952, %v2953
        %v2955 = vmax.f32 %v2935, %v2939
        %v2956 = vrot.slane %v2955, 4
        %v2957 = vmax.f32 %v2955, %v2956
        %v2958 = vrot.slane %v2957, 2
        %v2959 = vmax.f32 %v2957, %v2958
        %v2960 = vrot.slane %v2959, 1
        %v2961 = vmax.f32 %v2959, %v2960
        %v2962 = vmax.f32 %v2936, %v2940
        %v2963 = vrot.slane %v2962, 4
        %v2964 = vmax.f32 %v2962, %v2963
        %v2965 = vrot.slane %v2964, 2
        %v2966 = vmax.f32 %v2964, %v2965
        %v2967 = vrot.slane %v2966, 1
        %v2968 = vmax.f32 %v2966, %v2967
        %v2969 = vsub.f32 %v2933, %v2947
        %v2970 = vsub.f32 %v2934, %v2954
        %v2971 = vsub.f32 %v2935, %v2961
        %v2972 = vsub.f32 %v2936, %v2968
        %v2973 = vsub.f32 %v2937, %v2947
        %v2974 = vsub.f32 %v2938, %v2954
        %v2975 = vsub.f32 %v2939, %v2961
        %v2976 = vsub.f32 %v2940, %v2968
        %v2977 = vmul.f32 %v2969, 1.442695
        %v2978 = vpow.pop %v2977
        %v2979 = vmul.f32 %v2970, 1.442695
        %v2980 = vpow.pop %v2979
        %v2981 = vmul.f32 %v2971, 1.442695
        %v2982 = vpow.pop %v2981
        %v2983 = vmul.f32 %v2972, 1.442695
        %v2984 = vpow.pop %v2983
        %v2985 = vmul.f32 %v2973, 1.442695
        %v2986 = vpow.pop %v2985
        %v2987 = vmul.f32 %v2974, 1.442695
        %v2988 = vpow.pop %v2987
        %v2989 = vmul.f32 %v2975, 1.442695
        %v2990 = vpow.pop %v2989
        %v2991 = vmul.f32 %v2976, 1.442695
        %v2992 = vpow.pop %v2991
        %2993 = vmatprep.subr.mxu0 0.0
        %2994 = vmatpush1.msra.mxu0 0.0
        %2995 = vmatprep.subr.mxu0 0.0
        %2996 = vmatpush1.msra.mxu0 0.0
        %2997 = vmatprep.subr.mxu0 0.0
        %2998 = vmatpush1.msra.mxu0 0.0
        %2999 = vmatprep.subr.mxu0 0.0
        %3000 = vmatpush1.msra.mxu0 0.0
        %3001 = vmatprep.subr.mxu0 0.0
        %3002 = vmatpush1.msra.mxu0 0.0
        %3003 = vmatprep.subr.mxu0 0.0
        %3004 = vmatpush1.msra.mxu0 0.0
        %3005 = vmatprep.subr.mxu0 0.0
        %3006 = vmatpush1.msra.mxu0 0.0
        %3007 = vmatprep.subr.mxu0 0.0
        %3008 = vmatpush1.msra.mxu0 0.0
        %3009 = vmatprep.subr.mxu0 0.0
        %3010 = vmatpush1.msra.mxu0 0.0
        %3011 = vmatprep.subr.mxu0 0.0
        %3012 = vmatpush1.msra.mxu0 0.0
        %3013 = vmatprep.subr.mxu0 0.0
        %3014 = vmatpush1.msra.mxu0 0.0
        %3015 = vmatprep.subr.mxu0 0.0
        %3016 = vmatpush1.msra.mxu0 0.0
        %3017 = vmatprep.subr.mxu0 0.0
        %3018 = vmatpush1.msra.mxu0 0.0
        %3019 = vmatprep.subr.mxu0 0.0
        %3020 = vmatpush1.msra.mxu0 0.0
        %3021 = vmatprep.subr.mxu0 %v2988
        %3022 = vmatpush1.msra.mxu0 %v2986
        %3023 = vmatprep.subr.mxu0 %v2980
        %3024 = vmatpush1.msra.mxu0 %v2978
        %3025 = vmatprep.subr.mxu0 0.0
        %3026 = vmatpush2.msra.mxu0 0.0
        %3027 = vmatprep.subr.mxu0 0.0
        %3028 = vmatpush2.msra.mxu0 0.0
        %3029 = vmatprep.subr.mxu0 0.0
        %3030 = vmatpush2.msra.mxu0 0.0
        %3031 = vmatprep.subr.mxu0 0.0
        %3032 = vmatpush2.msra.mxu0 0.0
        %3033 = vmatprep.subr.mxu0 0.0
        %3034 = vmatpush2.msra.mxu0 0.0
        %3035 = vmatprep.subr.mxu0 0.0
        %3036 = vmatpush2.msra.mxu0 0.0
        %3037 = vmatprep.subr.mxu0 0.0
        %3038 = vmatpush2.msra.mxu0 0.0
        %3039 = vmatprep.subr.mxu0 0.0
        %3040 = vmatpush2.msra.mxu0 0.0
        %3041 = vmatprep.subr.mxu0 0.0
        %3042 = vmatpush2.msra.mxu0 0.0
        %3043 = vmatprep.subr.mxu0 0.0
        %3044 = vmatpush2.msra.mxu0 0.0
        %3045 = vmatprep.subr.mxu0 0.0
        %3046 = vmatpush2.msra.mxu0 0.0
        %3047 = vmatprep.subr.mxu0 0.0
        %3048 = vmatpush2.msra.mxu0 0.0
        %3049 = vmatprep.subr.mxu0 0.0
        %3050 = vmatpush2.msra.mxu0 0.0
        %3051 = vmatprep.subr.mxu0 0.0
        %3052 = vmatpush2.msra.mxu0 0.0
        %3053 = vmatprep.subr.mxu0 0.0
        %3054 = vmatpush2.msra.mxu0 0.0
        %3055 = vmatprep.subr.mxu0 0.0
        %3056 = vmatpush2.msra.mxu0 0.0
        %3057 = vmatprep.mubr.f32.mxu0 0.0
        %3058 = vmatmul.mubr.f32.gmra.mxu0 %v241
        %v3059 = vpop.f32.mrf.mxu0
        %v3060 = vadd.f32 0.0, %v3059
        %v3061 = vpop.f32.mrf.mxu0
        %v3062 = vadd.f32 0.0, %v3061
        %3063 = vdwg.mxu0
        %3064 = vmatprep.subr.mxu0 0.0
        %3065 = vmatpush1.msra.mxu0 0.0
        %3066 = vmatprep.subr.mxu0 0.0
        %3067 = vmatpush1.msra.mxu0 0.0
        %3068 = vmatprep.subr.mxu0 0.0
        %3069 = vmatpush1.msra.mxu0 0.0
        %3070 = vmatprep.subr.mxu0 0.0
        %3071 = vmatpush1.msra.mxu0 0.0
        %3072 = vmatprep.subr.mxu0 0.0
        %3073 = vmatpush1.msra.mxu0 0.0
        %3074 = vmatprep.subr.mxu0 0.0
        %3075 = vmatpush1.msra.mxu0 0.0
        %3076 = vmatprep.subr.mxu0 0.0
        %3077 = vmatpush1.msra.mxu0 0.0
        %3078 = vmatprep.subr.mxu0 0.0
        %3079 = vmatpush1.msra.mxu0 0.0
        %3080 = vmatprep.subr.mxu0 0.0
        %3081 = vmatpush1.msra.mxu0 0.0
        %3082 = vmatprep.subr.mxu0 0.0
        %3083 = vmatpush1.msra.mxu0 0.0
        %3084 = vmatprep.subr.mxu0 0.0
        %3085 = vmatpush1.msra.mxu0 0.0
        %3086 = vmatprep.subr.mxu0 0.0
        %3087 = vmatpush1.msra.mxu0 0.0
        %3088 = vmatprep.subr.mxu0 0.0
        %3089 = vmatpush1.msra.mxu0 0.0
        %3090 = vmatprep.subr.mxu0 0.0
        %3091 = vmatpush1.msra.mxu0 0.0
        %3092 = vmatprep.subr.mxu0 %v2992
        %3093 = vmatpush1.msra.mxu0 %v2990
        %3094 = vmatprep.subr.mxu0 %v2984
        %3095 = vmatpush1.msra.mxu0 %v2982
        %3096 = vmatprep.subr.mxu0 0.0
        %3097 = vmatpush2.msra.mxu0 0.0
        %3098 = vmatprep.subr.mxu0 0.0
        %3099 = vmatpush2.msra.mxu0 0.0
        %3100 = vmatprep.subr.mxu0 0.0
        %3101 = vmatpush2.msra.mxu0 0.0
        %3102 = vmatprep.subr.mxu0 0.0
        %3103 = vmatpush2.msra.mxu0 0.0
        %3104 = vmatprep.subr.mxu0 0.0
        %3105 = vmatpush2.msra.mxu0 0.0
        %3106 = vmatprep.subr.mxu0 0.0
        %3107 = vmatpush2.msra.mxu0 0.0
        %3108 = vmatprep.subr.mxu0 0.0
        %3109 = vmatpush2.msra.mxu0 0.0
        %3110 = vmatprep.subr.mxu0 0.0
        %3111 = vmatpush2.msra.mxu0 0.0
        %3112 = vmatprep.subr.mxu0 0.0
        %3113 = vmatpush2.msra.mxu0 0.0
        %3114 = vmatprep.subr.mxu0 0.0
        %3115 = vmatpush2.msra.mxu0 0.0
        %3116 = vmatprep.subr.mxu0 0.0
        %3117 = vmatpush2.msra.mxu0 0.0
        %3118 = vmatprep.subr.mxu0 0.0
        %3119 = vmatpush2.msra.mxu0 0.0
        %3120 = vmatprep.subr.mxu0 0.0
        %3121 = vmatpush2.msra.mxu0 0.0
        %3122 = vmatprep.subr.mxu0 0.0
        %3123 = vmatpush2.msra.mxu0 0.0
        %3124 = vmatprep.subr.mxu0 0.0
        %3125 = vmatpush2.msra.mxu0 0.0
        %3126 = vmatprep.subr.mxu0 0.0
        %3127 = vmatpush2.msra.mxu0 0.0
        %3128 = vmatprep.mubr.f32.mxu0 0.0
        %3129 = vmatmul.mubr.f32.gmra.mxu0 %v241
        %v3130 = vpop.f32.mrf.mxu0
        %v3131 = vadd.f32 0.0, %v3130
        %v3132 = vpop.f32.mrf.mxu0
        %v3133 = vadd.f32 0.0, %v3132
        %3134 = vdwg.mxu0
        %v3135 = vld [vmem:[%s2932 + $0x100] sm:$0xff]
        %v3136 = vld [vmem:[%s2932 + $0x108] sm:$0xff]
        %v3137 = vld [vmem:[%s2932 + $0x110] sm:$0xff]
        %v3138 = vld [vmem:[%s2932 + $0x118] sm:$0xff]
        %v3139 = vld [vmem:[%s2932 + $0x180] sm:$0xff]
        %v3140 = vld [vmem:[%s2932 + $0x188] sm:$0xff]
        %v3141 = vld [vmem:[%s2932 + $0x190] sm:$0xff]
        %v3142 = vld [vmem:[%s2932 + $0x198] sm:$0xff]
        %v3143 = vmax.f32 %v3135, %v3139
        %v3144 = vrot.slane %v3143, 4
        %v3145 = vmax.f32 %v3143, %v3144
        %v3146 = vrot.slane %v3145, 2
        %v3147 = vmax.f32 %v3145, %v3146
        %v3148 = vrot.slane %v3147, 1
        %v3149 = vmax.f32 %v3147, %v3148
        %v3150 = vmax.f32 %v3136, %v3140
        %v3151 = vrot.slane %v3150, 4
        %v3152 = vmax.f32 %v3150, %v3151
        %v3153 = vrot.slane %v3152, 2
        %v3154 = vmax.f32 %v3152, %v3153
        %v3155 = vrot.slane %v3154, 1
        %v3156 = vmax.f32 %v3154, %v3155
        %v3157 = vmax.f32 %v3137, %v3141
        %v3158 = vrot.slane %v3157, 4
        %v3159 = vmax.f32 %v3157, %v3158
        %v3160 = vrot.slane %v3159, 2
        %v3161 = vmax.f32 %v3159, %v3160
        %v3162 = vrot.slane %v3161, 1
        %v3163 = vmax.f32 %v3161, %v3162
        %v3164 = vmax.f32 %v3138, %v3142
        %v3165 = vrot.slane %v3164, 4
        %v3166 = vmax.f32 %v3164, %v3165
        %v3167 = vrot.slane %v3166, 2
        %v3168 = vmax.f32 %v3166, %v3167
        %v3169 = vrot.slane %v3168, 1
        %v3170 = vmax.f32 %v3168, %v3169
        %v3171 = vsub.f32 %v3135, %v3149
        %v3172 = vsub.f32 %v3136, %v3156
        %v3173 = vsub.f32 %v3137, %v3163
        %v3174 = vsub.f32 %v3138, %v3170
        %v3175 = vsub.f32 %v3139, %v3149
        %v3176 = vsub.f32 %v3140, %v3156
        %v3177 = vsub.f32 %v3141, %v3163
        %v3178 = vsub.f32 %v3142, %v3170
        %v3179 = vmul.f32 %v3171, 1.442695
        %v3180 = vpow.pop %v3179
        %v3181 = vmul.f32 %v3172, 1.442695
        %v3182 = vpow.pop %v3181
        %v3183 = vmul.f32 %v3173, 1.442695
        %v3184 = vpow.pop %v3183
        %v3185 = vmul.f32 %v3174, 1.442695
        %v3186 = vpow.pop %v3185
        %v3187 = vmul.f32 %v3175, 1.442695
        %v3188 = vpow.pop %v3187
        %v3189 = vmul.f32 %v3176, 1.442695
        %v3190 = vpow.pop %v3189
        %v3191 = vmul.f32 %v3177, 1.442695
        %v3192 = vpow.pop %v3191
        %v3193 = vmul.f32 %v3178, 1.442695
        %v3194 = vpow.pop %v3193
        %3195 = vmatprep.subr.mxu0 0.0
        %3196 = vmatpush1.msra.mxu0 0.0
        %3197 = vmatprep.subr.mxu0 0.0
        %3198 = vmatpush1.msra.mxu0 0.0
        %3199 = vmatprep.subr.mxu0 0.0
        %3200 = vmatpush1.msra.mxu0 0.0
        %3201 = vmatprep.subr.mxu0 0.0
        %3202 = vmatpush1.msra.mxu0 0.0
        %3203 = vmatprep.subr.mxu0 0.0
        %3204 = vmatpush1.msra.mxu0 0.0
        %3205 = vmatprep.subr.mxu0 0.0
        %3206 = vmatpush1.msra.mxu0 0.0
        %3207 = vmatprep.subr.mxu0 0.0
        %3208 = vmatpush1.msra.mxu0 0.0
        %3209 = vmatprep.subr.mxu0 0.0
        %3210 = vmatpush1.msra.mxu0 0.0
        %3211 = vmatprep.subr.mxu0 0.0
        %3212 = vmatpush1.msra.mxu0 0.0
        %3213 = vmatprep.subr.mxu0 0.0
        %3214 = vmatpush1.msra.mxu0 0.0
        %3215 = vmatprep.subr.mxu0 0.0
        %3216 = vmatpush1.msra.mxu0 0.0
        %3217 = vmatprep.subr.mxu0 0.0
        %3218 = vmatpush1.msra.mxu0 0.0
        %3219 = vmatprep.subr.mxu0 0.0
        %3220 = vmatpush1.msra.mxu0 0.0
        %3221 = vmatprep.subr.mxu0 0.0
        %3222 = vmatpush1.msra.mxu0 0.0
        %3223 = vmatprep.subr.mxu0 %v3190
        %3224 = vmatpush1.msra.mxu0 %v3188
        %3225 = vmatprep.subr.mxu0 %v3182
        %3226 = vmatpush1.msra.mxu0 %v3180
        %3227 = vmatprep.subr.mxu0 0.0
        %3228 = vmatpush2.msra.mxu0 0.0
        %3229 = vmatprep.subr.mxu0 0.0
        %3230 = vmatpush2.msra.mxu0 0.0
        %3231 = vmatprep.subr.mxu0 0.0
        %3232 = vmatpush2.msra.mxu0 0.0
        %3233 = vmatprep.subr.mxu0 0.0
        %3234 = vmatpush2.msra.mxu0 0.0
        %3235 = vmatprep.subr.mxu0 0.0
        %3236 = vmatpush2.msra.mxu0 0.0
        %3237 = vmatprep.subr.mxu0 0.0
        %3238 = vmatpush2.msra.mxu0 0.0
        %3239 = vmatprep.subr.mxu0 0.0
        %3240 = vmatpush2.msra.mxu0 0.0
        %3241 = vmatprep.subr.mxu0 0.0
        %3242 = vmatpush2.msra.mxu0 0.0
        %3243 = vmatprep.subr.mxu0 0.0
        %3244 = vmatpush2.msra.mxu0 0.0
        %3245 = vmatprep.subr.mxu0 0.0
        %3246 = vmatpush2.msra.mxu0 0.0
        %3247 = vmatprep.subr.mxu0 0.0
        %3248 = vmatpush2.msra.mxu0 0.0
        %3249 = vmatprep.subr.mxu0 0.0
        %3250 = vmatpush2.msra.mxu0 0.0
        %3251 = vmatprep.subr.mxu0 0.0
        %3252 = vmatpush2.msra.mxu0 0.0
        %3253 = vmatprep.subr.mxu0 0.0
        %3254 = vmatpush2.msra.mxu0 0.0
        %3255 = vmatprep.subr.mxu0 0.0
        %3256 = vmatpush2.msra.mxu0 0.0
        %3257 = vmatprep.subr.mxu0 0.0
        %3258 = vmatpush2.msra.mxu0 0.0
        %3259 = vmatprep.mubr.f32.mxu0 0.0
        %3260 = vmatmul.mubr.f32.gmra.mxu0 %v241
        %v3261 = vpop.f32.mrf.mxu0
        %v3262 = vadd.f32 0.0, %v3261
        %v3263 = vpop.f32.mrf.mxu0
        %v3264 = vadd.f32 0.0, %v3263
        %3265 = vdwg.mxu0
        %3266 = vmatprep.subr.mxu0 0.0
        %3267 = vmatpush1.msra.mxu0 0.0
        %3268 = vmatprep.subr.mxu0 0.0
        %3269 = vmatpush1.msra.mxu0 0.0
        %3270 = vmatprep.subr.mxu0 0.0
        %3271 = vmatpush1.msra.mxu0 0.0
        %3272 = vmatprep.subr.mxu0 0.0
        %3273 = vmatpush1.msra.mxu0 0.0
        %3274 = vmatprep.subr.mxu0 0.0
        %3275 = vmatpush1.msra.mxu0 0.0
        %3276 = vmatprep.subr.mxu0 0.0
        %3277 = vmatpush1.msra.mxu0 0.0
        %3278 = vmatprep.subr.mxu0 0.0
        %3279 = vmatpush1.msra.mxu0 0.0
        %3280 = vmatprep.subr.mxu0 0.0
        %3281 = vmatpush1.msra.mxu0 0.0
        %3282 = vmatprep.subr.mxu0 0.0
        %3283 = vmatpush1.msra.mxu0 0.0
        %3284 = vmatprep.subr.mxu0 0.0
        %3285 = vmatpush1.msra.mxu0 0.0
        %3286 = vmatprep.subr.mxu0 0.0
        %3287 = vmatpush1.msra.mxu0 0.0
        %3288 = vmatprep.subr.mxu0 0.0
        %3289 = vmatpush1.msra.mxu0 0.0
        %3290 = vmatprep.subr.mxu0 0.0
        %3291 = vmatpush1.msra.mxu0 0.0
        %3292 = vmatprep.subr.mxu0 0.0
        %3293 = vmatpush1.msra.mxu0 0.0
        %3294 = vmatprep.subr.mxu0 %v3194
        %3295 = vmatpush1.msra.mxu0 %v3192
        %3296 = vmatprep.subr.mxu0 %v3186
        %3297 = vmatpush1.msra.mxu0 %v3184
        %3298 = vmatprep.subr.mxu0 0.0
        %3299 = vmatpush2.msra.mxu0 0.0
        %3300 = vmatprep.subr.mxu0 0.0
        %3301 = vmatpush2.msra.mxu0 0.0
        %3302 = vmatprep.subr.mxu0 0.0
        %3303 = vmatpush2.msra.mxu0 0.0
        %3304 = vmatprep.subr.mxu0 0.0
        %3305 = vmatpush2.msra.mxu0 0.0
        %3306 = vmatprep.subr.mxu0 0.0
        %3307 = vmatpush2.msra.mxu0 0.0
        %3308 = vmatprep.subr.mxu0 0.0
        %3309 = vmatpush2.msra.mxu0 0.0
        %3310 = vmatprep.subr.mxu0 0.0
        %3311 = vmatpush2.msra.mxu0 0.0
        %3312 = vmatprep.subr.mxu0 0.0
        %3313 = vmatpush2.msra.mxu0 0.0
        %3314 = vmatprep.subr.mxu0 0.0
        %3315 = vmatpush2.msra.mxu0 0.0
        %3316 = vmatprep.subr.mxu0 0.0
        %3317 = vmatpush2.msra.mxu0 0.0
        %3318 = vmatprep.subr.mxu0 0.0
        %3319 = vmatpush2.msra.mxu0 0.0
        %3320 = vmatprep.subr.mxu0 0.0
        %3321 = vmatpush2.msra.mxu0 0.0
        %3322 = vmatprep.subr.mxu0 0.0
        %3323 = vmatpush2.msra.mxu0 0.0
        %3324 = vmatprep.subr.mxu0 0.0
        %3325 = vmatpush2.msra.mxu0 0.0
        %3326 = vmatprep.subr.mxu0 0.0
        %3327 = vmatpush2.msra.mxu0 0.0
        %3328 = vmatprep.subr.mxu0 0.0
        %3329 = vmatpush2.msra.mxu0 0.0
        %3330 = vmatprep.mubr.f32.mxu0 0.0
        %3331 = vmatmul.mubr.f32.gmra.mxu0 %v241
        %v3332 = vpop.f32.mrf.mxu0
        %v3333 = vadd.f32 0.0, %v3332
        %v3334 = vpop.f32.mrf.mxu0
        %v3335 = vadd.f32 0.0, %v3334
        %3336 = vdwg.mxu0
        %v3337 = vld [vmem:[%s2932 + $0x200] sm:$0xff]
        %v3338 = vld [vmem:[%s2932 + $0x208] sm:$0xff]
        %v3339 = vld [vmem:[%s2932 + $0x210] sm:$0xff]
        %v3340 = vld [vmem:[%s2932 + $0x218] sm:$0xff]
        %v3341 = vld [vmem:[%s2932 + $0x280] sm:$0xff]
        %v3342 = vld [vmem:[%s2932 + $0x288] sm:$0xff]
        %v3343 = vld [vmem:[%s2932 + $0x290] sm:$0xff]
        %v3344 = vld [vmem:[%s2932 + $0x298] sm:$0xff]
        %v3345 = vmax.f32 %v3337, %v3341
        %v3346 = vrot.slane %v3345, 4
        %v3347 = vmax.f32 %v3345, %v3346
        %v3348 = vrot.slane %v3347, 2
        %v3349 = vmax.f32 %v3347, %v3348
        %v3350 = vrot.slane %v3349, 1
        %v3351 = vmax.f32 %v3349, %v3350
        %v3352 = vmax.f32 %v3338, %v3342
        %v3353 = vrot.slane %v3352, 4
        %v3354 = vmax.f32 %v3352, %v3353
        %v3355 = vrot.slane %v3354, 2
        %v3356 = vmax.f32 %v3354, %v3355
        %v3357 = vrot.slane %v3356, 1
        %v3358 = vmax.f32 %v3356, %v3357
        %v3359 = vmax.f32 %v3339, %v3343
        %v3360 = vrot.slane %v3359, 4
        %v3361 = vmax.f32 %v3359, %v3360
        %v3362 = vrot.slane %v3361, 2
        %v3363 = vmax.f32 %v3361, %v3362
        %v3364 = vrot.slane %v3363, 1
        %v3365 = vmax.f32 %v3363, %v3364
        %v3366 = vmax.f32 %v3340, %v3344
        %v3367 = vrot.slane %v3366, 4
        %v3368 = vmax.f32 %v3366, %v3367
        %v3369 = vrot.slane %v3368, 2
        %v3370 = vmax.f32 %v3368, %v3369
        %v3371 = vrot.slane %v3370, 1
        %v3372 = vmax.f32 %v3370, %v3371
        %v3373 = vsub.f32 %v3337, %v3351
        %v3374 = vsub.f32 %v3338, %v3358
        %v3375 = vsub.f32 %v3339, %v3365
        %v3376 = vsub.f32 %v3340, %v3372
        %v3377 = vsub.f32 %v3341, %v3351
        %v3378 = vsub.f32 %v3342, %v3358
        %v3379 = vsub.f32 %v3343, %v3365
        %v3380 = vsub.f32 %v3344, %v3372
        %v3381 = vmul.f32 %v3373, 1.442695
        %v3382 = vpow.pop %v3381
        %v3383 = vmul.f32 %v3374, 1.442695
        %v3384 = vpow.pop %v3383
        %v3385 = vmul.f32 %v3375, 1.442695
        %v3386 = vpow.pop %v3385
        %v3387 = vmul.f32 %v3376, 1.442695
        %v3388 = vpow.pop %v3387
        %v3389 = vmul.f32 %v3377, 1.442695
        %v3390 = vpow.pop %v3389
        %v3391 = vmul.f32 %v3378, 1.442695
        %v3392 = vpow.pop %v3391
        %v3393 = vmul.f32 %v3379, 1.442695
        %v3394 = vpow.pop %v3393
        %v3395 = vmul.f32 %v3380, 1.442695
        %v3396 = vpow.pop %v3395
        %3397 = vmatprep.subr.mxu0 0.0
        %3398 = vmatpush1.msra.mxu0 0.0
        %3399 = vmatprep.subr.mxu0 0.0
        %3400 = vmatpush1.msra.mxu0 0.0
        %3401 = vmatprep.subr.mxu0 0.0
        %3402 = vmatpush1.msra.mxu0 0.0
        %3403 = vmatprep.subr.mxu0 0.0
        %3404 = vmatpush1.msra.mxu0 0.0
        %3405 = vmatprep.subr.mxu0 0.0
        %3406 = vmatpush1.msra.mxu0 0.0
        %3407 = vmatprep.subr.mxu0 0.0
        %3408 = vmatpush1.msra.mxu0 0.0
        %3409 = vmatprep.subr.mxu0 0.0
        %3410 = vmatpush1.msra.mxu0 0.0
        %3411 = vmatprep.subr.mxu0 0.0
        %3412 = vmatpush1.msra.mxu0 0.0
        %3413 = vmatprep.subr.mxu0 0.0
        %3414 = vmatpush1.msra.mxu0 0.0
        %3415 = vmatprep.subr.mxu0 0.0
        %3416 = vmatpush1.msra.mxu0 0.0
        %3417 = vmatprep.subr.mxu0 0.0
        %3418 = vmatpush1.msra.mxu0 0.0
        %3419 = vmatprep.subr.mxu0 0.0
        %3420 = vmatpush1.msra.mxu0 0.0
        %3421 = vmatprep.subr.mxu0 0.0
        %3422 = vmatpush1.msra.mxu0 0.0
        %3423 = vmatprep.subr.mxu0 0.0
        %3424 = vmatpush1.msra.mxu0 0.0
        %3425 = vmatprep.subr.mxu0 %v3392
        %3426 = vmatpush1.msra.mxu0 %v3390
        %3427 = vmatprep.subr.mxu0 %v3384
        %3428 = vmatpush1.msra.mxu0 %v3382
        %3429 = vmatprep.subr.mxu0 0.0
        %3430 = vmatpush2.msra.mxu0 0.0
        %3431 = vmatprep.subr.mxu0 0.0
        %3432 = vmatpush2.msra.mxu0 0.0
        %3433 = vmatprep.subr.mxu0 0.0
        %3434 = vmatpush2.msra.mxu0 0.0
        %3435 = vmatprep.subr.mxu0 0.0
        %3436 = vmatpush2.msra.mxu0 0.0
        %3437 = vmatprep.subr.mxu0 0.0
        %3438 = vmatpush2.msra.mxu0 0.0
        %3439 = vmatprep.subr.mxu0 0.0
        %3440 = vmatpush2.msra.mxu0 0.0
        %3441 = vmatprep.subr.mxu0 0.0
        %3442 = vmatpush2.msra.mxu0 0.0
        %3443 = vmatprep.subr.mxu0 0.0
        %3444 = vmatpush2.msra.mxu0 0.0
        %3445 = vmatprep.subr.mxu0 0.0
        %3446 = vmatpush2.msra.mxu0 0.0
        %3447 = vmatprep.subr.mxu0 0.0
        %3448 = vmatpush2.msra.mxu0 0.0
        %3449 = vmatprep.subr.mxu0 0.0
        %3450 = vmatpush2.msra.mxu0 0.0
        %3451 = vmatprep.subr.mxu0 0.0
        %3452 = vmatpush2.msra.mxu0 0.0
        %3453 = vmatprep.subr.mxu0 0.0
        %3454 = vmatpush2.msra.mxu0 0.0
        %3455 = vmatprep.subr.mxu0 0.0
        %3456 = vmatpush2.msra.mxu0 0.0
        %3457 = vmatprep.subr.mxu0 0.0
        %3458 = vmatpush2.msra.mxu0 0.0
        %3459 = vmatprep.subr.mxu0 0.0
        %3460 = vmatpush2.msra.mxu0 0.0
        %3461 = vmatprep.mubr.f32.mxu0 0.0
        %3462 = vmatmul.mubr.f32.gmra.mxu0 %v241
        %v3463 = vpop.f32.mrf.mxu0
        %v3464 = vadd.f32 0.0, %v3463
        %v3465 = vpop.f32.mrf.mxu0
        %v3466 = vadd.f32 0.0, %v3465
        %3467 = vdwg.mxu0
        %3468 = vmatprep.subr.mxu0 0.0
        %3469 = vmatpush1.msra.mxu0 0.0
        %3470 = vmatprep.subr.mxu0 0.0
        %3471 = vmatpush1.msra.mxu0 0.0
        %3472 = vmatprep.subr.mxu0 0.0
        %3473 = vmatpush1.msra.mxu0 0.0
        %3474 = vmatprep.subr.mxu0 0.0
        %3475 = vmatpush1.msra.mxu0 0.0
        %3476 = vmatprep.subr.mxu0 0.0
        %3477 = vmatpush1.msra.mxu0 0.0
        %3478 = vmatprep.subr.mxu0 0.0
        %3479 = vmatpush1.msra.mxu0 0.0
        %3480 = vmatprep.subr.mxu0 0.0
        %3481 = vmatpush1.msra.mxu0 0.0
        %3482 = vmatprep.subr.mxu0 0.0
        %3483 = vmatpush1.msra.mxu0 0.0
        %3484 = vmatprep.subr.mxu0 0.0
        %3485 = vmatpush1.msra.mxu0 0.0
        %3486 = vmatprep.subr.mxu0 0.0
        %3487 = vmatpush1.msra.mxu0 0.0
        %3488 = vmatprep.subr.mxu0 0.0
        %3489 = vmatpush1.msra.mxu0 0.0
        %3490 = vmatprep.subr.mxu0 0.0
        %3491 = vmatpush1.msra.mxu0 0.0
        %3492 = vmatprep.subr.mxu0 0.0
        %3493 = vmatpush1.msra.mxu0 0.0
        %3494 = vmatprep.subr.mxu0 0.0
        %3495 = vmatpush1.msra.mxu0 0.0
        %3496 = vmatprep.subr.mxu0 %v3396
        %3497 = vmatpush1.msra.mxu0 %v3394
        %3498 = vmatprep.subr.mxu0 %v3388
        %3499 = vmatpush1.msra.mxu0 %v3386
        %3500 = vmatprep.subr.mxu0 0.0
        %3501 = vmatpush2.msra.mxu0 0.0
        %3502 = vmatprep.subr.mxu0 0.0
        %3503 = vmatpush2.msra.mxu0 0.0
        %3504 = vmatprep.subr.mxu0 0.0
        %3505 = vmatpush2.msra.mxu0 0.0
        %3506 = vmatprep.subr.mxu0 0.0
        %3507 = vmatpush2.msra.mxu0 0.0
        %3508 = vmatprep.subr.mxu0 0.0
        %3509 = vmatpush2.msra.mxu0 0.0
        %3510 = vmatprep.subr.mxu0 0.0
        %3511 = vmatpush2.msra.mxu0 0.0
        %3512 = vmatprep.subr.mxu0 0.0
        %3513 = vmatpush2.msra.mxu0 0.0
        %3514 = vmatprep.subr.mxu0 0.0
        %3515 = vmatpush2.msra.mxu0 0.0
        %3516 = vmatprep.subr.mxu0 0.0
        %3517 = vmatpush2.msra.mxu0 0.0
        %3518 = vmatprep.subr.mxu0 0.0
        %3519 = vmatpush2.msra.mxu0 0.0
        %3520 = vmatprep.subr.mxu0 0.0
        %3521 = vmatpush2.msra.mxu0 0.0
        %3522 = vmatprep.subr.mxu0 0.0
        %3523 = vmatpush2.msra.mxu0 0.0
        %3524 = vmatprep.subr.mxu0 0.0
        %3525 = vmatpush2.msra.mxu0 0.0
        %3526 = vmatprep.subr.mxu0 0.0
        %3527 = vmatpush2.msra.mxu0 0.0
        %3528 = vmatprep.subr.mxu0 0.0
        %3529 = vmatpush2.msra.mxu0 0.0
        %3530 = vmatprep.subr.mxu0 0.0
        %3531 = vmatpush2.msra.mxu0 0.0
        %3532 = vmatprep.mubr.f32.mxu0 0.0
        %3533 = vmatmul.mubr.f32.gmra.mxu0 %v241
        %v3534 = vpop.f32.mrf.mxu0
        %v3535 = vadd.f32 0.0, %v3534
        %v3536 = vpop.f32.mrf.mxu0
        %v3537 = vadd.f32 0.0, %v3536
        %3538 = vdwg.mxu0
        %v3539 = vld [vmem:[%s2932 + $0x300] sm:$0xff]
        %v3540 = vld [vmem:[%s2932 + $0x308] sm:$0xff]
        %v3541 = vld [vmem:[%s2932 + $0x310] sm:$0xff]
        %v3542 = vld [vmem:[%s2932 + $0x318] sm:$0xff]
        %v3543 = vld [vmem:[%s2932 + $0x380] sm:$0xff]
        %v3544 = vld [vmem:[%s2932 + $0x388] sm:$0xff]
        %v3545 = vld [vmem:[%s2932 + $0x390] sm:$0xff]
        %v3546 = vld [vmem:[%s2932 + $0x398] sm:$0xff]
        %v3547 = vmax.f32 %v3539, %v3543
        %v3548 = vrot.slane %v3547, 4
        %v3549 = vmax.f32 %v3547, %v3548
        %v3550 = vrot.slane %v3549, 2
        %v3551 = vmax.f32 %v3549, %v3550
        %v3552 = vrot.slane %v3551, 1
        %v3553 = vmax.f32 %v3551, %v3552
        %v3554 = vmax.f32 %v3540, %v3544
        %v3555 = vrot.slane %v3554, 4
        %v3556 = vmax.f32 %v3554, %v3555
        %v3557 = vrot.slane %v3556, 2
        %v3558 = vmax.f32 %v3556, %v3557
        %v3559 = vrot.slane %v3558, 1
        %v3560 = vmax.f32 %v3558, %v3559
        %v3561 = vmax.f32 %v3541, %v3545
        %v3562 = vrot.slane %v3561, 4
        %v3563 = vmax.f32 %v3561, %v3562
        %v3564 = vrot.slane %v3563, 2
        %v3565 = vmax.f32 %v3563, %v3564
        %v3566 = vrot.slane %v3565, 1
        %v3567 = vmax.f32 %v3565, %v3566
        %v3568 = vmax.f32 %v3542, %v3546
        %v3569 = vrot.slane %v3568, 4
        %v3570 = vmax.f32 %v3568, %v3569
        %v3571 = vrot.slane %v3570, 2
        %v3572 = vmax.f32 %v3570, %v3571
        %v3573 = vrot.slane %v3572, 1
        %v3574 = vmax.f32 %v3572, %v3573
        %v3575 = vsub.f32 %v3539, %v3553
        %v3576 = vsub.f32 %v3540, %v3560
        %v3577 = vsub.f32 %v3541, %v3567
        %v3578 = vsub.f32 %v3542, %v3574
        %v3579 = vsub.f32 %v3543, %v3553
        %v3580 = vsub.f32 %v3544, %v3560
        %v3581 = vsub.f32 %v3545, %v3567
        %v3582 = vsub.f32 %v3546, %v3574
        %v3583 = vmul.f32 %v3575, 1.442695
        %v3584 = vpow.pop %v3583
        %v3585 = vmul.f32 %v3576, 1.442695
        %v3586 = vpow.pop %v3585
        %v3587 = vmul.f32 %v3577, 1.442695
        %v3588 = vpow.pop %v3587
        %v3589 = vmul.f32 %v3578, 1.442695
        %v3590 = vpow.pop %v3589
        %v3591 = vmul.f32 %v3579, 1.442695
        %v3592 = vpow.pop %v3591
        %v3593 = vmul.f32 %v3580, 1.442695
        %v3594 = vpow.pop %v3593
        %v3595 = vmul.f32 %v3581, 1.442695
        %v3596 = vpow.pop %v3595
        %v3597 = vmul.f32 %v3582, 1.442695
        %v3598 = vpow.pop %v3597
        %3599 = vmatprep.subr.mxu0 0.0
        %3600 = vmatpush1.msra.mxu0 0.0
        %3601 = vmatprep.subr.mxu0 0.0
        %3602 = vmatpush1.msra.mxu0 0.0
        %3603 = vmatprep.subr.mxu0 0.0
        %3604 = vmatpush1.msra.mxu0 0.0
        %3605 = vmatprep.subr.mxu0 0.0
        %3606 = vmatpush1.msra.mxu0 0.0
        %3607 = vmatprep.subr.mxu0 0.0
        %3608 = vmatpush1.msra.mxu0 0.0
        %3609 = vmatprep.subr.mxu0 0.0
        %3610 = vmatpush1.msra.mxu0 0.0
        %3611 = vmatprep.subr.mxu0 0.0
        %3612 = vmatpush1.msra.mxu0 0.0
        %3613 = vmatprep.subr.mxu0 0.0
        %3614 = vmatpush1.msra.mxu0 0.0
        %3615 = vmatprep.subr.mxu0 0.0
        %3616 = vmatpush1.msra.mxu0 0.0
        %3617 = vmatprep.subr.mxu0 0.0
        %3618 = vmatpush1.msra.mxu0 0.0
        %3619 = vmatprep.subr.mxu0 0.0
        %3620 = vmatpush1.msra.mxu0 0.0
        %3621 = vmatprep.subr.mxu0 0.0
        %3622 = vmatpush1.msra.mxu0 0.0
        %3623 = vmatprep.subr.mxu0 0.0
        %3624 = vmatpush1.msra.mxu0 0.0
        %3625 = vmatprep.subr.mxu0 0.0
        %3626 = vmatpush1.msra.mxu0 0.0
        %3627 = vmatprep.subr.mxu0 %v3594
        %3628 = vmatpush1.msra.mxu0 %v3592
        %3629 = vmatprep.subr.mxu0 %v3586
        %3630 = vmatpush1.msra.mxu0 %v3584
        %3631 = vmatprep.subr.mxu0 0.0
        %3632 = vmatpush2.msra.mxu0 0.0
        %3633 = vmatprep.subr.mxu0 0.0
        %3634 = vmatpush2.msra.mxu0 0.0
        %3635 = vmatprep.subr.mxu0 0.0
        %3636 = vmatpush2.msra.mxu0 0.0
        %3637 = vmatprep.subr.mxu0 0.0
        %3638 = vmatpush2.msra.mxu0 0.0
        %3639 = vmatprep.subr.mxu0 0.0
        %3640 = vmatpush2.msra.mxu0 0.0
        %3641 = vmatprep.subr.mxu0 0.0
        %3642 = vmatpush2.msra.mxu0 0.0
        %3643 = vmatprep.subr.mxu0 0.0
        %3644 = vmatpush2.msra.mxu0 0.0
        %3645 = vmatprep.subr.mxu0 0.0
        %3646 = vmatpush2.msra.mxu0 0.0
        %3647 = vmatprep.subr.mxu0 0.0
        %3648 = vmatpush2.msra.mxu0 0.0
        %3649 = vmatprep.subr.mxu0 0.0
        %3650 = vmatpush2.msra.mxu0 0.0
        %3651 = vmatprep.subr.mxu0 0.0
        %3652 = vmatpush2.msra.mxu0 0.0
        %3653 = vmatprep.subr.mxu0 0.0
        %3654 = vmatpush2.msra.mxu0 0.0
        %3655 = vmatprep.subr.mxu0 0.0
        %3656 = vmatpush2.msra.mxu0 0.0
        %3657 = vmatprep.subr.mxu0 0.0
        %3658 = vmatpush2.msra.mxu0 0.0
        %3659 = vmatprep.subr.mxu0 0.0
        %3660 = vmatpush2.msra.mxu0 0.0
        %3661 = vmatprep.subr.mxu0 0.0
        %3662 = vmatpush2.msra.mxu0 0.0
        %3663 = vmatprep.mubr.f32.mxu0 0.0
        %3664 = vmatmul.mubr.f32.gmra.mxu0 %v241
        %v3665 = vpop.f32.mrf.mxu0
        %v3666 = vadd.f32 0.0, %v3665
        %v3667 = vpop.f32.mrf.mxu0
        %v3668 = vadd.f32 0.0, %v3667
        %3669 = vdwg.mxu0
        %3670 = vmatprep.subr.mxu0 0.0
        %3671 = vmatpush1.msra.mxu0 0.0
        %3672 = vmatprep.subr.mxu0 0.0
        %3673 = vmatpush1.msra.mxu0 0.0
        %3674 = vmatprep.subr.mxu0 0.0
        %3675 = vmatpush1.msra.mxu0 0.0
        %3676 = vmatprep.subr.mxu0 0.0
        %3677 = vmatpush1.msra.mxu0 0.0
        %3678 = vmatprep.subr.mxu0 0.0
        %3679 = vmatpush1.msra.mxu0 0.0
        %3680 = vmatprep.subr.mxu0 0.0
        %3681 = vmatpush1.msra.mxu0 0.0
        %3682 = vmatprep.subr.mxu0 0.0
        %3683 = vmatpush1.msra.mxu0 0.0
        %3684 = vmatprep.subr.mxu0 0.0
        %3685 = vmatpush1.msra.mxu0 0.0
        %3686 = vmatprep.subr.mxu0 0.0
        %3687 = vmatpush1.msra.mxu0 0.0
        %3688 = vmatprep.subr.mxu0 0.0
        %3689 = vmatpush1.msra.mxu0 0.0
        %3690 = vmatprep.subr.mxu0 0.0
        %3691 = vmatpush1.msra.mxu0 0.0
        %3692 = vmatprep.subr.mxu0 0.0
        %3693 = vmatpush1.msra.mxu0 0.0
        %3694 = vmatprep.subr.mxu0 0.0
        %3695 = vmatpush1.msra.mxu0 0.0
        %3696 = vmatprep.subr.mxu0 0.0
        %3697 = vmatpush1.msra.mxu0 0.0
        %3698 = vmatprep.subr.mxu0 %v3598
        %3699 = vmatpush1.msra.mxu0 %v3596
        %3700 = vmatprep.subr.mxu0 %v3590
        %3701 = vmatpush1.msra.mxu0 %v3588
        %3702 = vmatprep.subr.mxu0 0.0
        %3703 = vmatpush2.msra.mxu0 0.0
        %3704 = vmatprep.subr.mxu0 0.0
        %3705 = vmatpush2.msra.mxu0 0.0
        %3706 = vmatprep.subr.mxu0 0.0
        %3707 = vmatpush2.msra.mxu0 0.0
        %3708 = vmatprep.subr.mxu0 0.0
        %3709 = vmatpush2.msra.mxu0 0.0
        %3710 = vmatprep.subr.mxu0 0.0
        %3711 = vmatpush2.msra.mxu0 0.0
        %3712 = vmatprep.subr.mxu0 0.0
        %3713 = vmatpush2.msra.mxu0 0.0
        %3714 = vmatprep.subr.mxu0 0.0
        %3715 = vmatpush2.msra.mxu0 0.0
        %3716 = vmatprep.subr.mxu0 0.0
        %3717 = vmatpush2.msra.mxu0 0.0
        %3718 = vmatprep.subr.mxu0 0.0
        %3719 = vmatpush2.msra.mxu0 0.0
        %3720 = vmatprep.subr.mxu0 0.0
        %3721 = vmatpush2.msra.mxu0 0.0
        %3722 = vmatprep.subr.mxu0 0.0
        %3723 = vmatpush2.msra.mxu0 0.0
        %3724 = vmatprep.subr.mxu0 0.0
        %3725 = vmatpush2.msra.mxu0 0.0
        %3726 = vmatprep.subr.mxu0 0.0
        %3727 = vmatpush2.msra.mxu0 0.0
        %3728 = vmatprep.subr.mxu0 0.0
        %3729 = vmatpush2.msra.mxu0 0.0
        %3730 = vmatprep.subr.mxu0 0.0
        %3731 = vmatpush2.msra.mxu0 0.0
        %3732 = vmatprep.subr.mxu0 0.0
        %3733 = vmatpush2.msra.mxu0 0.0
        %3734 = vmatprep.mubr.f32.mxu0 0.0
        %3735 = vmatmul.mubr.f32.gmra.mxu0 %v241
        %v3736 = vpop.f32.mrf.mxu0
        %v3737 = vadd.f32 0.0, %v3736
        %v3738 = vpop.f32.mrf.mxu0
        %v3739 = vadd.f32 0.0, %v3738
        %3740 = vdwg.mxu0
        %v3745 = vrot.slane %v3262, 7
        %v3746 = vrot.slane %v3264, 7
        %v3747 = vrot.slane %v3333, 7
        %v3748 = vrot.slane %v3335, 7
        %v3757 = vrot.slane %v3464, 6
        %v3758 = vrot.slane %v3466, 6
        %v3759 = vrot.slane %v3535, 6
        %v3760 = vrot.slane %v3537, 6
        %v3769 = vrot.slane %v3666, 5
        %v3770 = vrot.slane %v3668, 5
        %v3771 = vrot.slane %v3737, 5
        %v3772 = vrot.slane %v3739, 5
        %v3777 = vsel %vm1027, %v3060, %v3745
        %v3778 = vsel %vm1027, %v3062, %v3746
        %v3779 = vsel %vm1027, %v3131, %v3747
        %v3780 = vsel %vm1027, %v3133, %v3748
        %v3781 = vsel %vm1032, %v3777, %v3757
        %v3782 = vsel %vm1032, %v3778, %v3758
        %v3783 = vsel %vm1032, %v3779, %v3759
        %v3784 = vsel %vm1032, %v3780, %v3760
        %v3785 = vsel %vm1037, %v3781, %v3769
        %v3786 = vsel %vm1037, %v3782, %v3770
        %v3787 = vsel %vm1037, %v3783, %v3771
        %v3788 = vsel %vm1037, %v3784, %v3772
        %v3793 = vrot.slane %v3060, 1
        %v3794 = vrot.slane %v3062, 1
        %v3795 = vrot.slane %v3131, 1
        %v3796 = vrot.slane %v3133, 1
        %v3801 = vrot.slane %v3464, 7
        %v3802 = vrot.slane %v3466, 7
        %v3803 = vrot.slane %v3535, 7
        %v3804 = vrot.slane %v3537, 7
        %v3809 = vrot.slane %v3666, 6
        %v3810 = vrot.slane %v3668, 6
        %v3811 = vrot.slane %v3737, 6
        %v3812 = vrot.slane %v3739, 6
        %v3817 = vsel %vm1027, %v3793, %v3262
        %v3818 = vsel %vm1027, %v3794, %v3264
        %v3819 = vsel %vm1027, %v3795, %v3333
        %v3820 = vsel %vm1027, %v3796, %v3335
        %v3821 = vsel %vm1032, %v3817, %v3801
        %v3822 = vsel %vm1032, %v3818, %v3802
        %v3823 = vsel %vm1032, %v3819, %v3803
        %v3824 = vsel %vm1032, %v3820, %v3804
        %v3825 = vsel %vm1037, %v3821, %v3809
        %v3826 = vsel %vm1037, %v3822, %v3810
        %v3827 = vsel %vm1037, %v3823, %v3811
        %v3828 = vsel %vm1037, %v3824, %v3812
        %v3829 = vrcp.pop %v3785
        %v3830 = vmul.f32 %v3825, %v3829
        %v3831 = vrcp.pop %v3786
        %v3832 = vmul.f32 %v3826, %v3831
        %v3833 = vrcp.pop %v3787
        %v3834 = vmul.f32 %v3827, %v3833
        %v3835 = vrcp.pop %v3788
        %v3836 = vmul.f32 %v3828, %v3835
        %v3841 = vcombine.low %v3830, %v3832
        %v3842 = vcombine.low %v3834, %v3836
        %s3845 = scalar_lea.vmem %s159, 48 [#allocation5]
        %3846 = vst [vmem:[%s3845] sm:$0xff] %v3841
        %3847 = vst [vmem:[%s3845 + $0x8] sm:$0xff] %v3842
        %s3848 = sand.u32 %s68, 1
        %s3849 = scalar_lea.sflag [#allocation4], %s3848
        %s3850 = sand.u32 %s68, 1
        %s3851 = smul.addr %s3850, 64
        %s3852 = scalar_lea.vmem [#allocation5], %s3851
        // Predicated region
        $region29: #{tpu_custom_call.1} parent=23 // pred_check
          %p3853 = pneg %p78
        $region30: #{tpu_custom_call.1} parent=23 // pred_check_branch
          %3855 = sbr.rel (%p3853) target = $region32
        $region31: #{tpu_custom_call.1} parent=23 // pred_region
          %s3856 = smul.u32 16, %s23
          %s3857 = ssub.s32 17, %s3856
          %p3858 = scmp.lt.s32.totalorder %s3857, 16
          %s3859 = scalar_select %p3858, %s3857, 16
          %s3860 = smul.u32 64, %s3859
          %s3862 = ssub.s32 1024, %s3860
          %3863 = vsyncadd %s3849, %s3862
          %p3864 = scmp.ne.s32.totalorder 0, %s3860
          %s3865 = smul.addr %s22, 17
          %s3866 = sadd.s32 %s3856, %s3865
          %s3867 = smul.addr %s3866, 64
          %s3868 = scalar_lea.hbm %s1, %s3867
          %s3869 = smul.u32 %s3859, 4
          %s3870 = sshll.u32 %s3869, 4
          %s3871 = sshll.u32 %s3852, 4
          %s3872 = int_to_ptr.vmem [resolvable:$true] %s3871
          %3874 = dma.vmem_to_hbm [thread:$0]  (%p3864), %s3872, %s3870, %s3868, %s3849
        $region32: #{tpu_custom_call.1} parent=23 // pred_fallthru
          _
      $region24: #{tpu_custom_call.1} parent=5 // pred_fallthru
        _
      %p3875 = scmp.le.s32.totalorder 2, %s13
      // Predicated region
      $region33: #{tpu_custom_call.1} parent=5 // pred_check
        %p3876 = pneg %p3875
      $region34: #{tpu_custom_call.1} parent=5 // pred_check_branch
        %3878 = sbr.rel (%p3876) target = $region36
      $region35: #{tpu_custom_call.1} parent=5 // pred_region
        %s3879 = ssub.s32 %s13, 2
        // Predicated region
        $region37: #{tpu_custom_call.1} parent=35 // pred_check
          %p3880 = pneg %p84
        $region38: #{tpu_custom_call.1} parent=35 // pred_check_branch
          %3882 = sbr.rel (%p3880) target = $region40
        $region39: #{tpu_custom_call.1} parent=35 // pred_region
          %s3883 = sand.u32 %s69, 1
          %s3884 = scalar_lea.sflag [#allocation4], %s3883
          %s3885 = sand.u32 %s69, 1
          %s3886 = smul.addr %s3885, 64
          %s3887 = scalar_lea.vmem [#allocation5], %s3886
          %3888 = dma.done %s3884, 1024
        $region40: #{tpu_custom_call.1} parent=35 // pred_fallthru
          _
      $region36: #{tpu_custom_call.1} parent=5 // pred_fallthru
        _
    $region6: #{tpu_custom_call.1} parent=1 // loop_footer
      %s17 = sadd.s32 1, %s13
    $region7: #{tpu_custom_call.1} parent=1 // loop_footer_branch
      %12 = sbr.rel target = $region3
    $region8: #{tpu_custom_call.1} parent=1 // loop_exit
      _
    %3889 = vsyncpa [#allocation3], 1
    %s3890 = scalar_lea.sflag [#allocation3], 1
    %3891 = vsyncpa %s3890, 1
    %3892 = vsyncpa [#allocation4], 1
    %s3893 = scalar_lea.sflag [#allocation4], 1
    %3894 = vsyncpa %s3893, 1

</llo_original>
